<compile_context>
chip_gen: v7x
topology: tpu7x:2x2x1
jax: 0.10.0
libtpu: 0.0.40
codegen_flags: <defaults>
</compile_context>

<pallas_src>
import functools
import math

import jax
import jax.numpy as jnp
from jax.experimental import pallas as pl
from jax.experimental.pallas import tpu as pltpu


# ---------------------------- Pallas kernels ----------------------------

def encoder_layer_kernel(*refs, nhead, apply_pe, pe_scale, want_attn, eps=1e-5):
    # One grid step per batch element.
    idx = 0
    x_ref = refs[idx]; idx += 1
    if apply_pe:
        pe_ref = refs[idx]; idx += 1
    w_qkv_ref = refs[idx]; idx += 1
    b_qkv_ref = refs[idx]; idx += 1
    w_out_ref = refs[idx]; idx += 1
    b_out_ref = refs[idx]; idx += 1
    w1_ref = refs[idx]; idx += 1
    w2_ref = refs[idx]; idx += 1
    y_ref = refs[idx]; idx += 1
    attn_ref = refs[idx] if want_attn else None

    L, E = x_ref.shape[1], x_ref.shape[2]
    hd = E // nhead

    x = x_ref[0]                                          # [L, E]
    if apply_pe:
        # fused: emb * sqrt(E) + sinusoidal positional encoding (f32)
        x = x.astype(jnp.float32) * pe_scale + pe_ref[...]
    xb = x.astype(jnp.bfloat16)

    # --- QKV projection: single [L,E] @ [E,3E] MXU contraction.
    # 1/sqrt(head_dim) is pre-folded into the Q columns of w_qkv / b_qkv.
    qkv = jnp.dot(xb, w_qkv_ref[...],
                  preferred_element_type=jnp.float32) + b_qkv_ref[...]
    qkv_bf = qkv.astype(jnp.bfloat16)                     # single [L,3E] cast

    # Head split: value-level lane slices stacked to [nhead, L, hd]
    # (no VMEM scratch store+reload, no per-head matmuls).
    qh = jnp.stack([qkv_bf[:, h * hd:(h + 1) * hd] for h in range(nhead)], axis=0)
    kh = jnp.stack([qkv_bf[:, E + h * hd:E + (h + 1) * hd] for h in range(nhead)], axis=0)
    vh = jnp.stack([qkv_bf[:, 2 * E + h * hd:2 * E + (h + 1) * hd] for h in range(nhead)], axis=0)

    # --- scores / softmax for all heads in one batched contraction ---
    scores = jnp.einsum('hqd,hkd->hqk', qh, kh,
                        preferred_element_type=jnp.float32)     # [nhead, L, L]
    # Causal mask generated in-kernel (assumes the standard square-subsequent
    # mask of the reference module); finite fill value -> NaN-safe.
    row = jax.lax.broadcasted_iota(jnp.int32, (L, L), 0)
    col = jax.lax.broadcasted_iota(jnp.int32, (L, L), 1)
    causal = col <= row
    scores = jnp.where(causal[None, :, :], scores, -1e30)

    m = jnp.max(scores, axis=-1, keepdims=True)
    p = jnp.exp(scores - m)
    denom = jnp.sum(p, axis=-1, keepdims=True)
    a = p * pl.reciprocal(denom, approx=True)             # [nhead, L, L]

    if want_attn:
        # head-averaged attention weights (only requested for the last layer)
        attn_ref[0] = jnp.sum(a, axis=0) * (1.0 / nhead)

    # --- context (one batched contraction) + single fused out-projection ---
    ctx = jnp.einsum('hqk,hkd->hqd', a.astype(jnp.bfloat16), vh,
                     preferred_element_type=jnp.float32)  # [nhead, L, hd]
    ctx_cat = jnp.concatenate([ctx[h] for h in range(nhead)],
                              axis=-1).astype(jnp.bfloat16)       # [L, E]
    attn_out = jnp.dot(ctx_cat, w_out_ref[...],
                       preferred_element_type=jnp.float32) + b_out_ref[...]

    # --- PoswiseFeedForwardNet: Linear->ReLU->Linear (no bias), +residual, LN ---
    h1 = jnp.maximum(
        jnp.dot(attn_out.astype(jnp.bfloat16), w1_ref[...],
                preferred_element_type=jnp.float32), 0.0)
    h2 = jnp.dot(h1.astype(jnp.bfloat16), w2_ref[...],
                 preferred_element_type=jnp.float32)
    pre = h2 + attn_out                                   # residual = attn output
    mu = jnp.mean(pre, axis=-1, keepdims=True)
    cen = pre - mu
    var = jnp.mean(cen * cen, axis=-1, keepdims=True)     # centered variance
    y_ref[0] = (cen * jax.lax.rsqrt(var + eps)).astype(y_ref.dtype)  # LN: gamma=1, beta=0


def decoder_kernel(x_ref, w_ref, b_ref, o_ref):
    o_ref[...] = (jnp.dot(x_ref[...], w_ref[...],
                          preferred_element_type=jnp.float32) + b_ref[...])


# ---------------------------- pallas_call wrappers ----------------------------

def encoder_layer(x, layer, nhead, pe=None, pe_scale=None, want_attn=False):
    B, L, E = x.shape
    d_ff = layer["w1_t"].shape[1]
    apply_pe = pe is not None

    kernel = functools.partial(encoder_layer_kernel, nhead=nhead,
                               apply_pe=apply_pe, pe_scale=pe_scale,
                               want_attn=want_attn)

    in_specs = [pl.BlockSpec((1, L, E), lambda b: (b, 0, 0))]
    operands = [x]
    if apply_pe:
        in_specs.append(pl.BlockSpec((L, E), lambda b: (0, 0)))
        operands.append(pe)
    # Grid-invariant weights: constant index_map -> DMA'd once.  At very large
    # E/d_ff add pipeline_mode=pl.Buffered(1) to halve their VMEM footprint.
    in_specs += [
        pl.BlockSpec((E, 3 * E), lambda b: (0, 0)),      # w_qkv (pre-transposed, bf16)
        pl.BlockSpec((1, 3 * E), lambda b: (0, 0)),      # b_in (Q part pre-scaled)
        pl.BlockSpec((E, E), lambda b: (0, 0)),          # w_out (pre-transposed, bf16)
        pl.BlockSpec((1, E), lambda b: (0, 0)),          # b_out
        pl.BlockSpec((E, d_ff), lambda b: (0, 0)),       # w1 (pre-transposed, bf16)
        pl.BlockSpec((d_ff, E), lambda b: (0, 0)),       # w2 (pre-transposed, bf16)
    ]
    operands += [layer["w_qkv_t"], layer["b_in"], layer["w_out_t"],
                 layer["b_out"], layer["w1_t"], layer["w2_t"]]

    if want_attn:
        out_shape = (jax.ShapeDtypeStruct((B, L, E), jnp.bfloat16),
                     jax.ShapeDtypeStruct((B, L, L), jnp.float32))
        out_specs = (pl.BlockSpec((1, L, E), lambda b: (b, 0, 0)),
                     pl.BlockSpec((1, L, L), lambda b: (b, 0, 0)))
    else:
        out_shape = jax.ShapeDtypeStruct((B, L, E), jnp.bfloat16)
        out_specs = pl.BlockSpec((1, L, E), lambda b: (b, 0, 0))

    return pl.pallas_call(
        kernel,
        out_shape=out_shape,
        grid=(B,),
        in_specs=in_specs,
        out_specs=out_specs,
        compiler_params=pltpu.CompilerParams(
            dimension_semantics=("parallel",),
            vmem_limit_bytes=64 * 1024 * 1024),
    )(*operands)


def decode(x2d, w_t, b):
    # x2d: [M, E] bf16 (batch-first flatten), w_t: [E, V] bf16 (pre-transposed),
    # b: [1, V] f32.  Vocab-tile axis is the OUTER grid dim so the large [E,V]
    # weight streams through HBM exactly once (x tiles are re-streamed instead).
    M, E = x2d.shape
    V = w_t.shape[1]
    TM = min(M, 512)
    TV = min(V, 2048 if E < 4096 else 1024)   # trim weight tile at large E (v7x VMEM)
    grid = (pl.cdiv(V, TV), pl.cdiv(M, TM))   # (vocab outer, rows inner)
    return pl.pallas_call(
        decoder_kernel,
        out_shape=jax.ShapeDtypeStruct((M, V), jnp.float32),
        grid=grid,
        in_specs=[pl.BlockSpec((TM, E), lambda j, i: (i, 0)),
                  pl.BlockSpec((E, TV), lambda j, i: (0, j)),
                  pl.BlockSpec((1, TV), lambda j, i: (0, j))],
        out_specs=pl.BlockSpec((TM, TV), lambda j, i: (i, j)),
        compiler_params=pltpu.CompilerParams(
            dimension_semantics=("parallel", "parallel")),
    )(x2d, w_t, b)


# ---------------------------- model glue ----------------------------

def transformer_forward(tokens_lb, mask_ll, params, *, nhead):
    # tokens_lb: [L, B] int32 (seq-first, like the PyTorch module).
    # mask_ll is accepted for signature parity but unused: the standard causal
    # mask (generate_square_subsequent_mask) is generated inside the kernel.
    del mask_ll
    L, B = tokens_lb.shape
    nvoc, E = params["emb"].shape
    # Embedding gather stays in JAX (host-side glue); posenc is fused into the
    # first encoder-layer kernel.
    x = params["emb"][tokens_lb.T]                        # [B, L, E] f32
    pe = params["pe"][:L]                                 # [L, E]
    scale = math.sqrt(E)

    n_layers = len(params["layers"])
    attn = None
    for idx, layer in enumerate(params["layers"]):
        is_first = idx == 0
        is_last = idx == n_layers - 1
        out = encoder_layer(x, layer, nhead,
                            pe=pe if is_first else None,
                            pe_scale=scale if is_first else None,
                            want_attn=is_last)
        if is_last:
            x, attn = out
        else:
            x = out

    # Batch-first flatten is a free reshape (no HBM transpose of activations);
    # only the final logits are transposed back to the [L, B, V] layout.
    x_flat = x.reshape(B * L, E)                          # bf16
    decoded = decode(x_flat, params["dec_w_t"], params["dec_b"])
    decoded = jnp.transpose(decoded.reshape(B, L, nvoc), (1, 0, 2))
    return decoded, attn


def make_causal_mask(sz):
    # Equivalent of Transformer.generate_square_subsequent_mask (kept for API
    # parity; the kernels regenerate this mask internally).
    i = jnp.arange(sz)[:, None]
    j = jnp.arange(sz)[None, :]
    return jnp.where(j <= i, 0.0, -jnp.inf).astype(jnp.float32)


def init_params(key, nvoc, ninput, nhead, nhid, nlayers, max_len=5000):
    assert ninput % nhead == 0 and ninput % 2 == 0
    k_emb, k_layer, k_dec = jax.random.split(key, 3)
    params = {}
    params["emb"] = jax.random.uniform(k_emb, (nvoc, ninput), jnp.float32, -0.1, 0.1)

    # sinusoidal positional-encoding buffer (stored as [max_len, E])
    position = jnp.arange(max_len, dtype=jnp.float32)[:, None]
    div_term = jnp.exp(jnp.arange(0, ninput, 2, dtype=jnp.float32)
                       * (-math.log(10000.0) / ninput))
    pe = jnp.zeros((max_len, ninput), jnp.float32)
    pe = pe.at[:, 0::2].set(jnp.sin(position * div_term))
    pe = pe.at[:, 1::2].set(jnp.cos(position * div_term))
    params["pe"] = pe

    k1, k2, k3, k4 = jax.random.split(k_layer, 4)
    bound_in = math.sqrt(6.0 / (3 * ninput + ninput))     # xavier_uniform-ish
    bound_out = 1.0 / math.sqrt(ninput)
    bound_ff1 = 1.0 / math.sqrt(ninput)
    bound_ff2 = 1.0 / math.sqrt(nhid)
    w_in = jax.random.uniform(k1, (3 * ninput, ninput), jnp.float32, -bound_in, bound_in)
    w_out = jax.random.uniform(k2, (ninput, ninput), jnp.float32, -bound_out, bound_out)
    w1 = jax.random.uniform(k3, (nhid, ninput), jnp.float32, -bound_ff1, bound_ff1)
    w2 = jax.random.uniform(k4, (ninput, nhid), jnp.float32, -bound_ff2, bound_ff2)
    b_in = jnp.zeros((3 * ninput,), jnp.float32)

    # Fold the 1/sqrt(head_dim) attention scale into the Q columns / Q bias.
    inv_sqrt_hd = 1.0 / math.sqrt(ninput // nhead)
    q_scale = jnp.concatenate([jnp.full((ninput,), inv_sqrt_hd, jnp.float32),
                               jnp.ones((2 * ninput,), jnp.float32)])
    layer = {
        # pre-transposed (lane-dense RHS) bf16 weights; f32 biases
        "w_qkv_t": (w_in.T * q_scale[None, :]).astype(jnp.bfloat16),   # [E, 3E]
        "b_in": (b_in * q_scale)[None, :],                              # [1, 3E]
        "w_out_t": w_out.T.astype(jnp.bfloat16),          # [E, E]
        "b_out": jnp.zeros((1, ninput), jnp.float32),
        "w1_t": w1.T.astype(jnp.bfloat16),                # [E, d_ff]
        "w2_t": w2.T.astype(jnp.bfloat16),                # [d_ff, E]
    }
    # PyTorch TransformerEncoder deep-copies the layer -> all layers share the
    # same initial weights; replicate that exactly.
    params["layers"] = [layer] * nlayers

    dec_w = jax.random.uniform(k_dec, (nvoc, ninput), jnp.float32, -0.1, 0.1)
    params["dec_w_t"] = dec_w.T.astype(jnp.bfloat16)      # [E, V]
    params["dec_b"] = jnp.zeros((1, nvoc), jnp.float32)
    return params


if __name__ == "__main__":
    nvoc, ninput, nhead, nhid, nlayers = 32, 32, 4, 64, 2
    L, B = 8, 2

    key = jax.random.PRNGKey(0)
    k_params, k_tok = jax.random.split(key)
    params = init_params(k_params, nvoc, ninput, nhead, nhid, nlayers)
    tokens = jax.random.randint(k_tok, (L, B), 0, nvoc, dtype=jnp.int32)
    mask = make_causal_mask(L)        # same as generate_square_subsequent_mask(L)

    fwd = jax.jit(functools.partial(transformer_forward, nhead=nhead))
    decoded, attn = fwd(tokens, mask, params)
    jax.block_until_ready((decoded, attn))

    assert decoded.shape == (L, B, nvoc)
    assert attn.shape == (B, L, L)
    assert bool(jnp.all(jnp.isfinite(decoded))) and bool(jnp.all(jnp.isfinite(attn)))
    print("KERNEL_OK")
</pallas_src>

<mosaic_0001>
module attributes {stable_mosaic.version = 11 : i64} {
  func.func @encoder_layer_kernel(%arg0: i32, %arg1: memref<1x8x32xf32, #tpu.memory_space<vmem>>, %arg2: memref<8x32xf32, #tpu.memory_space<vmem>>, %arg3: memref<32x96xbf16, #tpu.memory_space<vmem>>, %arg4: memref<1x96xf32, #tpu.memory_space<vmem>>, %arg5: memref<32x32xbf16, #tpu.memory_space<vmem>>, %arg6: memref<1x32xf32, #tpu.memory_space<vmem>>, %arg7: memref<32x64xbf16, #tpu.memory_space<vmem>>, %arg8: memref<64x32xbf16, #tpu.memory_space<vmem>>, %arg9: memref<1x8x32xbf16, #tpu.memory_space<vmem>>) attributes {dimension_semantics = [#tpu.dimension_semantics<parallel>], iteration_bounds = array<i64: 2>, scalar_prefetch = 0 : i64, scratch_operands = 0 : i64, tpu.core_type = #tpu.core_type<tc>, window_params = [{transform_indices = @transform_0, window_bounds = array<i64: 1, 8, 32>}, {pipeline_mode = #tpu.pipeline_mode<synchronous>, transform_indices = @transform_1, window_bounds = array<i64: 8, 32>}, {pipeline_mode = #tpu.pipeline_mode<synchronous>, transform_indices = @transform_2, window_bounds = array<i64: 32, 96>}, {pipeline_mode = #tpu.pipeline_mode<synchronous>, transform_indices = @transform_3, window_bounds = array<i64: 1, 96>}, {pipeline_mode = #tpu.pipeline_mode<synchronous>, transform_indices = @transform_4, window_bounds = array<i64: 32, 32>}, {pipeline_mode = #tpu.pipeline_mode<synchronous>, transform_indices = @transform_5, window_bounds = array<i64: 1, 32>}, {pipeline_mode = #tpu.pipeline_mode<synchronous>, transform_indices = @transform_6, window_bounds = array<i64: 32, 64>}, {pipeline_mode = #tpu.pipeline_mode<synchronous>, transform_indices = @transform_7, window_bounds = array<i64: 64, 32>}, {transform_indices = @transform_8, window_bounds = array<i64: 1, 8, 32>}]} {
    %c0 = arith.constant 0 : index
    %c0_0 = arith.constant 0 : index
    %c0_1 = arith.constant 0 : index
    %0 = vector.load %arg1[%c0, %c0_0, %c0_1] : memref<1x8x32xf32, #tpu.memory_space<vmem>>, vector<1x8x32xf32>
    %1 = vector.shape_cast %0 : vector<1x8x32xf32> to vector<8x32xf32>
    %cst = arith.constant 5.65685415 : f32
    %2 = vector.broadcast %cst : f32 to vector<8x32xf32>
    %3 = arith.mulf %1, %2 : vector<8x32xf32>
    %c0_2 = arith.constant 0 : index
    %c0_3 = arith.constant 0 : index
    %4 = vector.load %arg2[%c0_2, %c0_3] : memref<8x32xf32, #tpu.memory_space<vmem>>, vector<8x32xf32>
    %5 = arith.addf %3, %4 : vector<8x32xf32>
    %6 = arith.truncf %5 : vector<8x32xf32> to vector<8x32xbf16>
    %c0_4 = arith.constant 0 : index
    %c0_5 = arith.constant 0 : index
    %7 = vector.load %arg3[%c0_4, %c0_5] : memref<32x96xbf16, #tpu.memory_space<vmem>>, vector<32x96xbf16>
    %cst_6 = arith.constant dense<0.000000e+00> : vector<8x96xf32>
    %8 = tpu.matmul %6, %7, %cst_6 {dimension_numbers = #tpu.dot_dimension_numbers<[1], [0], [0], [1], [0, 0, 1, 1], [], []>} : vector<8x32xbf16>, vector<32x96xbf16>, vector<8x96xf32> -> vector<8x96xf32>
    %c0_7 = arith.constant 0 : index
    %c0_8 = arith.constant 0 : index
    %9 = vector.load %arg4[%c0_7, %c0_8] : memref<1x96xf32, #tpu.memory_space<vmem>>, vector<1x96xf32>
    %10 = vector.broadcast %9 : vector<1x96xf32> to vector<8x96xf32>
    %11 = arith.addf %8, %10 : vector<8x96xf32>
    %12 = arith.truncf %11 : vector<8x96xf32> to vector<8x96xbf16>
    %13 = vector.extract_strided_slice %12 {offsets = [0, 0], sizes = [8, 8], strides = [1, 1]} : vector<8x96xbf16> to vector<8x8xbf16>
    %14 = vector.extract_strided_slice %12 {offsets = [0, 8], sizes = [8, 8], strides = [1, 1]} : vector<8x96xbf16> to vector<8x8xbf16>
    %15 = vector.extract_strided_slice %12 {offsets = [0, 16], sizes = [8, 8], strides = [1, 1]} : vector<8x96xbf16> to vector<8x8xbf16>
    %16 = vector.extract_strided_slice %12 {offsets = [0, 24], sizes = [8, 8], strides = [1, 1]} : vector<8x96xbf16> to vector<8x8xbf16>
    %17 = vector.shape_cast %13 : vector<8x8xbf16> to vector<1x8x8xbf16>
    %18 = vector.shape_cast %14 : vector<8x8xbf16> to vector<1x8x8xbf16>
    %19 = vector.shape_cast %15 : vector<8x8xbf16> to vector<1x8x8xbf16>
    %20 = vector.shape_cast %16 : vector<8x8xbf16> to vector<1x8x8xbf16>
    %21 = tpu.concatenate %17, %18, %19, %20 in 0 : vector<1x8x8xbf16>, vector<1x8x8xbf16>, vector<1x8x8xbf16>, vector<1x8x8xbf16> -> vector<4x8x8xbf16>
    %22 = vector.extract_strided_slice %12 {offsets = [0, 32], sizes = [8, 8], strides = [1, 1]} : vector<8x96xbf16> to vector<8x8xbf16>
    %23 = vector.extract_strided_slice %12 {offsets = [0, 40], sizes = [8, 8], strides = [1, 1]} : vector<8x96xbf16> to vector<8x8xbf16>
    %24 = vector.extract_strided_slice %12 {offsets = [0, 48], sizes = [8, 8], strides = [1, 1]} : vector<8x96xbf16> to vector<8x8xbf16>
    %25 = vector.extract_strided_slice %12 {offsets = [0, 56], sizes = [8, 8], strides = [1, 1]} : vector<8x96xbf16> to vector<8x8xbf16>
    %26 = vector.shape_cast %22 : vector<8x8xbf16> to vector<1x8x8xbf16>
    %27 = vector.shape_cast %23 : vector<8x8xbf16> to vector<1x8x8xbf16>
    %28 = vector.shape_cast %24 : vector<8x8xbf16> to vector<1x8x8xbf16>
    %29 = vector.shape_cast %25 : vector<8x8xbf16> to vector<1x8x8xbf16>
    %30 = tpu.concatenate %26, %27, %28, %29 in 0 : vector<1x8x8xbf16>, vector<1x8x8xbf16>, vector<1x8x8xbf16>, vector<1x8x8xbf16> -> vector<4x8x8xbf16>
    %31 = vector.extract_strided_slice %12 {offsets = [0, 64], sizes = [8, 8], strides = [1, 1]} : vector<8x96xbf16> to vector<8x8xbf16>
    %32 = vector.extract_strided_slice %12 {offsets = [0, 72], sizes = [8, 8], strides = [1, 1]} : vector<8x96xbf16> to vector<8x8xbf16>
    %33 = vector.extract_strided_slice %12 {offsets = [0, 80], sizes = [8, 8], strides = [1, 1]} : vector<8x96xbf16> to vector<8x8xbf16>
    %34 = vector.extract_strided_slice %12 {offsets = [0, 88], sizes = [8, 8], strides = [1, 1]} : vector<8x96xbf16> to vector<8x8xbf16>
    %35 = vector.shape_cast %31 : vector<8x8xbf16> to vector<1x8x8xbf16>
    %36 = vector.shape_cast %32 : vector<8x8xbf16> to vector<1x8x8xbf16>
    %37 = vector.shape_cast %33 : vector<8x8xbf16> to vector<1x8x8xbf16>
    %38 = vector.shape_cast %34 : vector<8x8xbf16> to vector<1x8x8xbf16>
    %39 = tpu.concatenate %35, %36, %37, %38 in 0 : vector<1x8x8xbf16>, vector<1x8x8xbf16>, vector<1x8x8xbf16>, vector<1x8x8xbf16> -> vector<4x8x8xbf16>
    "tpu.trace_start"() <{level = 10 : i32, message = "hqd,hkd->hqk"}> : () -> ()
    %cst_9 = arith.constant dense<0.000000e+00> : vector<4x8x8xf32>
    %40 = tpu.matmul %21, %30, %cst_9 {dimension_numbers = #tpu.dot_dimension_numbers<[2], [2], [1], [1], [0, 0, 0, 1, 1, 1], [0], [0]>} : vector<4x8x8xbf16>, vector<4x8x8xbf16>, vector<4x8x8xf32> -> vector<4x8x8xf32>
    "tpu.trace_stop"() : () -> ()
    %41 = tpu.iota {dimensions = array<i32: 0>} : vector<8x8xi32>
    %42 = tpu.iota {dimensions = array<i32: 1>} : vector<8x8xi32>
    %43 = arith.cmpi sle, %42, %41 : vector<8x8xi32>
    %44 = vector.shape_cast %43 : vector<8x8xi1> to vector<1x8x8xi1>
    %cst_10 = arith.constant -1.000000e+30 : f32
    %45 = vector.shape_cast %44 : vector<1x8x8xi1> to vector<1x8x8xi1>
    %46 = vector.broadcast %45 : vector<1x8x8xi1> to vector<4x8x8xi1>
    %47 = vector.broadcast %cst_10 : f32 to vector<4x8x8xf32>
    %48 = arith.select %46, %40, %47 : vector<4x8x8xi1>, vector<4x8x8xf32>
    %cst_11 = arith.constant dense<0xFF800000> : vector<4x8xf32>
    %49 = vector.multi_reduction <maximumf>, %48, %cst_11 [2] : vector<4x8x8xf32> to vector<4x8xf32>
    %50 = vector.shape_cast %49 : vector<4x8xf32> to vector<4x8x1xf32>
    %51 = vector.broadcast %50 : vector<4x8x1xf32> to vector<4x8x8xf32>
    %52 = arith.subf %48, %51 : vector<4x8x8xf32>
    %53 = math.exp %52 : vector<4x8x8xf32>
    %cst_12 = arith.constant dense<0.000000e+00> : vector<4x8xf32>
    %54 = vector.multi_reduction <add>, %53, %cst_12 [2] : vector<4x8x8xf32> to vector<4x8xf32>
    %55 = vector.shape_cast %54 : vector<4x8xf32> to vector<4x8x1xf32>
    %56 = tpu.reciprocal %55 {approx = true} : vector<4x8x1xf32> -> vector<4x8x1xf32>
    %57 = vector.broadcast %56 : vector<4x8x1xf32> to vector<4x8x8xf32>
    %58 = arith.mulf %53, %57 : vector<4x8x8xf32>
    %59 = arith.truncf %58 : vector<4x8x8xf32> to vector<4x8x8xbf16>
    "tpu.trace_start"() <{level = 10 : i32, message = "hqk,hkd->hqd"}> : () -> ()
    %cst_13 = arith.constant dense<0.000000e+00> : vector<4x8x8xf32>
    %60 = tpu.matmul %59, %39, %cst_13 {dimension_numbers = #tpu.dot_dimension_numbers<[2], [1], [1], [2], [0, 0, 0, 1, 1, 2], [0], [0]>} : vector<4x8x8xbf16>, vector<4x8x8xbf16>, vector<4x8x8xf32> -> vector<4x8x8xf32>
    "tpu.trace_stop"() : () -> ()
    %61 = vector.extract_strided_slice %60 {offsets = [0, 0, 0], sizes = [1, 8, 8], strides = [1, 1, 1]} : vector<4x8x8xf32> to vector<1x8x8xf32>
    %62 = vector.shape_cast %61 : vector<1x8x8xf32> to vector<8x8xf32>
    %63 = vector.extract_strided_slice %60 {offsets = [1, 0, 0], sizes = [1, 8, 8], strides = [1, 1, 1]} : vector<4x8x8xf32> to vector<1x8x8xf32>
    %64 = vector.shape_cast %63 : vector<1x8x8xf32> to vector<8x8xf32>
    %65 = vector.extract_strided_slice %60 {offsets = [2, 0, 0], sizes = [1, 8, 8], strides = [1, 1, 1]} : vector<4x8x8xf32> to vector<1x8x8xf32>
    %66 = vector.shape_cast %65 : vector<1x8x8xf32> to vector<8x8xf32>
    %67 = vector.extract_strided_slice %60 {offsets = [3, 0, 0], sizes = [1, 8, 8], strides = [1, 1, 1]} : vector<4x8x8xf32> to vector<1x8x8xf32>
    %68 = vector.shape_cast %67 : vector<1x8x8xf32> to vector<8x8xf32>
    %69 = tpu.concatenate %62, %64, %66, %68 in 1 : vector<8x8xf32>, vector<8x8xf32>, vector<8x8xf32>, vector<8x8xf32> -> vector<8x32xf32>
    %70 = arith.truncf %69 : vector<8x32xf32> to vector<8x32xbf16>
    %c0_14 = arith.constant 0 : index
    %c0_15 = arith.constant 0 : index
    %71 = vector.load %arg5[%c0_14, %c0_15] : memref<32x32xbf16, #tpu.memory_space<vmem>>, vector<32x32xbf16>
    %cst_16 = arith.constant dense<0.000000e+00> : vector<8x32xf32>
    %72 = tpu.matmul %70, %71, %cst_16 {dimension_numbers = #tpu.dot_dimension_numbers<[1], [0], [0], [1], [0, 0, 1, 1], [], []>} : vector<8x32xbf16>, vector<32x32xbf16>, vector<8x32xf32> -> vector<8x32xf32>
    %c0_17 = arith.constant 0 : index
    %c0_18 = arith.constant 0 : index
    %73 = vector.load %arg6[%c0_17, %c0_18] : memref<1x32xf32, #tpu.memory_space<vmem>>, vector<1x32xf32>
    %74 = vector.broadcast %73 : vector<1x32xf32> to vector<8x32xf32>
    %75 = arith.addf %72, %74 : vector<8x32xf32>
    %76 = arith.truncf %75 : vector<8x32xf32> to vector<8x32xbf16>
    %c0_19 = arith.constant 0 : index
    %c0_20 = arith.constant 0 : index
    %77 = vector.load %arg7[%c0_19, %c0_20] : memref<32x64xbf16, #tpu.memory_space<vmem>>, vector<32x64xbf16>
    %cst_21 = arith.constant dense<0.000000e+00> : vector<8x64xf32>
    %78 = tpu.matmul %76, %77, %cst_21 {dimension_numbers = #tpu.dot_dimension_numbers<[1], [0], [0], [1], [0, 0, 1, 1], [], []>} : vector<8x32xbf16>, vector<32x64xbf16>, vector<8x64xf32> -> vector<8x64xf32>
    %cst_22 = arith.constant 0.000000e+00 : f32
    %79 = vector.broadcast %cst_22 : f32 to vector<8x64xf32>
    %80 = arith.maximumf %78, %79 : vector<8x64xf32>
    %81 = arith.truncf %80 : vector<8x64xf32> to vector<8x64xbf16>
    %c0_23 = arith.constant 0 : index
    %c0_24 = arith.constant 0 : index
    %82 = vector.load %arg8[%c0_23, %c0_24] : memref<64x32xbf16, #tpu.memory_space<vmem>>, vector<64x32xbf16>
    %cst_25 = arith.constant dense<0.000000e+00> : vector<8x32xf32>
    %83 = tpu.matmul %81, %82, %cst_25 {dimension_numbers = #tpu.dot_dimension_numbers<[1], [0], [0], [1], [0, 0, 1, 1], [], []>} : vector<8x64xbf16>, vector<64x32xbf16>, vector<8x32xf32> -> vector<8x32xf32>
    %84 = arith.addf %83, %75 : vector<8x32xf32>
    %cst_26 = arith.constant dense<0.000000e+00> : vector<8xf32>
    %85 = vector.multi_reduction <add>, %84, %cst_26 [1] : vector<8x32xf32> to vector<8xf32>
    %86 = vector.shape_cast %85 : vector<8xf32> to vector<8x1xf32>
    %cst_27 = arith.constant 3.200000e+01 : f32
    %87 = vector.broadcast %cst_27 : f32 to vector<8x1xf32>
    %88 = arith.divf %86, %87 : vector<8x1xf32>
    %89 = vector.broadcast %88 : vector<8x1xf32> to vector<8x32xf32>
    %90 = arith.subf %84, %89 : vector<8x32xf32>
    %91 = arith.mulf %90, %90 : vector<8x32xf32>
    %cst_28 = arith.constant dense<0.000000e+00> : vector<8xf32>
    %92 = vector.multi_reduction <add>, %91, %cst_28 [1] : vector<8x32xf32> to vector<8xf32>
    %93 = vector.shape_cast %92 : vector<8xf32> to vector<8x1xf32>
    %cst_29 = arith.constant 3.200000e+01 : f32
    %94 = vector.broadcast %cst_29 : f32 to vector<8x1xf32>
    %95 = arith.divf %93, %94 : vector<8x1xf32>
    %cst_30 = arith.constant 9.99999974E-6 : f32
    %96 = vector.broadcast %cst_30 : f32 to vector<8x1xf32>
    %97 = arith.addf %95, %96 : vector<8x1xf32>
    %98 = math.rsqrt %97 : vector<8x1xf32>
    %99 = vector.broadcast %98 : vector<8x1xf32> to vector<8x32xf32>
    %100 = arith.mulf %90, %99 : vector<8x32xf32>
    %101 = arith.truncf %100 : vector<8x32xf32> to vector<8x32xbf16>
    %c0_31 = arith.constant 0 : index
    %c0_32 = arith.constant 0 : index
    %c0_33 = arith.constant 0 : index
    %102 = vector.load %arg9[%c0_31, %c0_32, %c0_33] : memref<1x8x32xbf16, #tpu.memory_space<vmem>>, vector<1x8x32xbf16>
    %103 = vector.shape_cast %102 : vector<1x8x32xbf16> to vector<8x32xbf16>
    %104 = vector.shape_cast %101 : vector<8x32xbf16> to vector<1x8x32xbf16>
    tpu.vector_store %arg9[%c0_31, %c0_32, %c0_33], %104 {strides = array<i32>} : memref<1x8x32xbf16, #tpu.memory_space<vmem>>, vector<1x8x32xbf16>,
    return
  }
  func.func @transform_0(%arg0: i32) -> (i32, i32, i32) {
    %c0_i32 = arith.constant 0 : i32
    %c0_i32_0 = arith.constant 0 : i32
    %c0_i32_1 = arith.constant 0 : i32
    return %arg0, %c0_i32, %c0_i32_0 : i32, i32, i32
  }
  func.func @transform_1(%arg0: i32) -> (i32, i32) {
    %c0_i32 = arith.constant 0 : i32
    %c0_i32_0 = arith.constant 0 : i32
    %c0_i32_1 = arith.constant 0 : i32
    return %c0_i32, %c0_i32_0 : i32, i32
  }
  func.func @transform_2(%arg0: i32) -> (i32, i32) {
    %c0_i32 = arith.constant 0 : i32
    %c0_i32_0 = arith.constant 0 : i32
    %c0_i32_1 = arith.constant 0 : i32
    return %c0_i32, %c0_i32_0 : i32, i32
  }
  func.func @transform_3(%arg0: i32) -> (i32, i32) {
    %c0_i32 = arith.constant 0 : i32
    %c0_i32_0 = arith.constant 0 : i32
    %c0_i32_1 = arith.constant 0 : i32
    return %c0_i32, %c0_i32_0 : i32, i32
  }
  func.func @transform_4(%arg0: i32) -> (i32, i32) {
    %c0_i32 = arith.constant 0 : i32
    %c0_i32_0 = arith.constant 0 : i32
    %c0_i32_1 = arith.constant 0 : i32
    return %c0_i32, %c0_i32_0 : i32, i32
  }
  func.func @transform_5(%arg0: i32) -> (i32, i32) {
    %c0_i32 = arith.constant 0 : i32
    %c0_i32_0 = arith.constant 0 : i32
    %c0_i32_1 = arith.constant 0 : i32
    return %c0_i32, %c0_i32_0 : i32, i32
  }
  func.func @transform_6(%arg0: i32) -> (i32, i32) {
    %c0_i32 = arith.constant 0 : i32
    %c0_i32_0 = arith.constant 0 : i32
    %c0_i32_1 = arith.constant 0 : i32
    return %c0_i32, %c0_i32_0 : i32, i32
  }
  func.func @transform_7(%arg0: i32) -> (i32, i32) {
    %c0_i32 = arith.constant 0 : i32
    %c0_i32_0 = arith.constant 0 : i32
    %c0_i32_1 = arith.constant 0 : i32
    return %c0_i32, %c0_i32_0 : i32, i32
  }
  func.func @transform_8(%arg0: i32) -> (i32, i32, i32) {
    %c0_i32 = arith.constant 0 : i32
    %c0_i32_0 = arith.constant 0 : i32
    %c0_i32_1 = arith.constant 0 : i32
    return %arg0, %c0_i32, %c0_i32_0 : i32, i32, i32
  }
}

module attributes {stable_mosaic.version = 11 : i64} {
  func.func @encoder_layer_kernel(%arg0: i32, %arg1: memref<1x8x32xbf16, #tpu.memory_space<vmem>>, %arg2: memref<32x96xbf16, #tpu.memory_space<vmem>>, %arg3: memref<1x96xf32, #tpu.memory_space<vmem>>, %arg4: memref<32x32xbf16, #tpu.memory_space<vmem>>, %arg5: memref<1x32xf32, #tpu.memory_space<vmem>>, %arg6: memref<32x64xbf16, #tpu.memory_space<vmem>>, %arg7: memref<64x32xbf16, #tpu.memory_space<vmem>>, %arg8: memref<1x8x32xbf16, #tpu.memory_space<vmem>>, %arg9: memref<1x8x8xf32, #tpu.memory_space<vmem>>) attributes {dimension_semantics = [#tpu.dimension_semantics<parallel>], iteration_bounds = array<i64: 2>, scalar_prefetch = 0 : i64, scratch_operands = 0 : i64, tpu.core_type = #tpu.core_type<tc>, window_params = [{transform_indices = @transform_0, window_bounds = array<i64: 1, 8, 32>}, {pipeline_mode = #tpu.pipeline_mode<synchronous>, transform_indices = @transform_1, window_bounds = array<i64: 32, 96>}, {pipeline_mode = #tpu.pipeline_mode<synchronous>, transform_indices = @transform_2, window_bounds = array<i64: 1, 96>}, {pipeline_mode = #tpu.pipeline_mode<synchronous>, transform_indices = @transform_3, window_bounds = array<i64: 32, 32>}, {pipeline_mode = #tpu.pipeline_mode<synchronous>, transform_indices = @transform_4, window_bounds = array<i64: 1, 32>}, {pipeline_mode = #tpu.pipeline_mode<synchronous>, transform_indices = @transform_5, window_bounds = array<i64: 32, 64>}, {pipeline_mode = #tpu.pipeline_mode<synchronous>, transform_indices = @transform_6, window_bounds = array<i64: 64, 32>}, {transform_indices = @transform_7, window_bounds = array<i64: 1, 8, 32>}, {transform_indices = @transform_8, window_bounds = array<i64: 1, 8, 8>}]} {
    %c0 = arith.constant 0 : index
    %c0_0 = arith.constant 0 : index
    %c0_1 = arith.constant 0 : index
    %0 = vector.load %arg1[%c0, %c0_0, %c0_1] : memref<1x8x32xbf16, #tpu.memory_space<vmem>>, vector<1x8x32xbf16>
    %1 = vector.shape_cast %0 : vector<1x8x32xbf16> to vector<8x32xbf16>
    %c0_2 = arith.constant 0 : index
    %c0_3 = arith.constant 0 : index
    %2 = vector.load %arg2[%c0_2, %c0_3] : memref<32x96xbf16, #tpu.memory_space<vmem>>, vector<32x96xbf16>
    %cst = arith.constant dense<0.000000e+00> : vector<8x96xf32>
    %3 = tpu.matmul %1, %2, %cst {dimension_numbers = #tpu.dot_dimension_numbers<[1], [0], [0], [1], [0, 0, 1, 1], [], []>} : vector<8x32xbf16>, vector<32x96xbf16>, vector<8x96xf32> -> vector<8x96xf32>
    %c0_4 = arith.constant 0 : index
    %c0_5 = arith.constant 0 : index
    %4 = vector.load %arg3[%c0_4, %c0_5] : memref<1x96xf32, #tpu.memory_space<vmem>>, vector<1x96xf32>
    %5 = vector.broadcast %4 : vector<1x96xf32> to vector<8x96xf32>
    %6 = arith.addf %3, %5 : vector<8x96xf32>
    %7 = arith.truncf %6 : vector<8x96xf32> to vector<8x96xbf16>
    %8 = vector.extract_strided_slice %7 {offsets = [0, 0], sizes = [8, 8], strides = [1, 1]} : vector<8x96xbf16> to vector<8x8xbf16>
    %9 = vector.extract_strided_slice %7 {offsets = [0, 8], sizes = [8, 8], strides = [1, 1]} : vector<8x96xbf16> to vector<8x8xbf16>
    %10 = vector.extract_strided_slice %7 {offsets = [0, 16], sizes = [8, 8], strides = [1, 1]} : vector<8x96xbf16> to vector<8x8xbf16>
    %11 = vector.extract_strided_slice %7 {offsets = [0, 24], sizes = [8, 8], strides = [1, 1]} : vector<8x96xbf16> to vector<8x8xbf16>
    %12 = vector.shape_cast %8 : vector<8x8xbf16> to vector<1x8x8xbf16>
    %13 = vector.shape_cast %9 : vector<8x8xbf16> to vector<1x8x8xbf16>
    %14 = vector.shape_cast %10 : vector<8x8xbf16> to vector<1x8x8xbf16>
    %15 = vector.shape_cast %11 : vector<8x8xbf16> to vector<1x8x8xbf16>
    %16 = tpu.concatenate %12, %13, %14, %15 in 0 : vector<1x8x8xbf16>, vector<1x8x8xbf16>, vector<1x8x8xbf16>, vector<1x8x8xbf16> -> vector<4x8x8xbf16>
    %17 = vector.extract_strided_slice %7 {offsets = [0, 32], sizes = [8, 8], strides = [1, 1]} : vector<8x96xbf16> to vector<8x8xbf16>
    %18 = vector.extract_strided_slice %7 {offsets = [0, 40], sizes = [8, 8], strides = [1, 1]} : vector<8x96xbf16> to vector<8x8xbf16>
    %19 = vector.extract_strided_slice %7 {offsets = [0, 48], sizes = [8, 8], strides = [1, 1]} : vector<8x96xbf16> to vector<8x8xbf16>
    %20 = vector.extract_strided_slice %7 {offsets = [0, 56], sizes = [8, 8], strides = [1, 1]} : vector<8x96xbf16> to vector<8x8xbf16>
    %21 = vector.shape_cast %17 : vector<8x8xbf16> to vector<1x8x8xbf16>
    %22 = vector.shape_cast %18 : vector<8x8xbf16> to vector<1x8x8xbf16>
    %23 = vector.shape_cast %19 : vector<8x8xbf16> to vector<1x8x8xbf16>
    %24 = vector.shape_cast %20 : vector<8x8xbf16> to vector<1x8x8xbf16>
    %25 = tpu.concatenate %21, %22, %23, %24 in 0 : vector<1x8x8xbf16>, vector<1x8x8xbf16>, vector<1x8x8xbf16>, vector<1x8x8xbf16> -> vector<4x8x8xbf16>
    %26 = vector.extract_strided_slice %7 {offsets = [0, 64], sizes = [8, 8], strides = [1, 1]} : vector<8x96xbf16> to vector<8x8xbf16>
    %27 = vector.extract_strided_slice %7 {offsets = [0, 72], sizes = [8, 8], strides = [1, 1]} : vector<8x96xbf16> to vector<8x8xbf16>
    %28 = vector.extract_strided_slice %7 {offsets = [0, 80], sizes = [8, 8], strides = [1, 1]} : vector<8x96xbf16> to vector<8x8xbf16>
    %29 = vector.extract_strided_slice %7 {offsets = [0, 88], sizes = [8, 8], strides = [1, 1]} : vector<8x96xbf16> to vector<8x8xbf16>
    %30 = vector.shape_cast %26 : vector<8x8xbf16> to vector<1x8x8xbf16>
    %31 = vector.shape_cast %27 : vector<8x8xbf16> to vector<1x8x8xbf16>
    %32 = vector.shape_cast %28 : vector<8x8xbf16> to vector<1x8x8xbf16>
    %33 = vector.shape_cast %29 : vector<8x8xbf16> to vector<1x8x8xbf16>
    %34 = tpu.concatenate %30, %31, %32, %33 in 0 : vector<1x8x8xbf16>, vector<1x8x8xbf16>, vector<1x8x8xbf16>, vector<1x8x8xbf16> -> vector<4x8x8xbf16>
    "tpu.trace_start"() <{level = 10 : i32, message = "hqd,hkd->hqk"}> : () -> ()
    %cst_6 = arith.constant dense<0.000000e+00> : vector<4x8x8xf32>
    %35 = tpu.matmul %16, %25, %cst_6 {dimension_numbers = #tpu.dot_dimension_numbers<[2], [2], [1], [1], [0, 0, 0, 1, 1, 1], [0], [0]>} : vector<4x8x8xbf16>, vector<4x8x8xbf16>, vector<4x8x8xf32> -> vector<4x8x8xf32>
    "tpu.trace_stop"() : () -> ()
    %36 = tpu.iota {dimensions = array<i32: 0>} : vector<8x8xi32>
    %37 = tpu.iota {dimensions = array<i32: 1>} : vector<8x8xi32>
    %38 = arith.cmpi sle, %37, %36 : vector<8x8xi32>
    %39 = vector.shape_cast %38 : vector<8x8xi1> to vector<1x8x8xi1>
    %cst_7 = arith.constant -1.000000e+30 : f32
    %40 = vector.shape_cast %39 : vector<1x8x8xi1> to vector<1x8x8xi1>
    %41 = vector.broadcast %40 : vector<1x8x8xi1> to vector<4x8x8xi1>
    %42 = vector.broadcast %cst_7 : f32 to vector<4x8x8xf32>
    %43 = arith.select %41, %35, %42 : vector<4x8x8xi1>, vector<4x8x8xf32>
    %cst_8 = arith.constant dense<0xFF800000> : vector<4x8xf32>
    %44 = vector.multi_reduction <maximumf>, %43, %cst_8 [2] : vector<4x8x8xf32> to vector<4x8xf32>
    %45 = vector.shape_cast %44 : vector<4x8xf32> to vector<4x8x1xf32>
    %46 = vector.broadcast %45 : vector<4x8x1xf32> to vector<4x8x8xf32>
    %47 = arith.subf %43, %46 : vector<4x8x8xf32>
    %48 = math.exp %47 : vector<4x8x8xf32>
    %cst_9 = arith.constant dense<0.000000e+00> : vector<4x8xf32>
    %49 = vector.multi_reduction <add>, %48, %cst_9 [2] : vector<4x8x8xf32> to vector<4x8xf32>
    %50 = vector.shape_cast %49 : vector<4x8xf32> to vector<4x8x1xf32>
    %51 = tpu.reciprocal %50 {approx = true} : vector<4x8x1xf32> -> vector<4x8x1xf32>
    %52 = vector.broadcast %51 : vector<4x8x1xf32> to vector<4x8x8xf32>
    %53 = arith.mulf %48, %52 : vector<4x8x8xf32>
    %cst_10 = arith.constant dense<0.000000e+00> : vector<8x8xf32>
    %54 = vector.multi_reduction <add>, %53, %cst_10 [0] : vector<4x8x8xf32> to vector<8x8xf32>
    %cst_11 = arith.constant 2.500000e-01 : f32
    %55 = vector.broadcast %cst_11 : f32 to vector<8x8xf32>
    %56 = arith.mulf %54, %55 : vector<8x8xf32>
    %c0_12 = arith.constant 0 : index
    %c0_13 = arith.constant 0 : index
    %c0_14 = arith.constant 0 : index
    %57 = vector.load %arg9[%c0_12, %c0_13, %c0_14] : memref<1x8x8xf32, #tpu.memory_space<vmem>>, vector<1x8x8xf32>
    %58 = vector.shape_cast %57 : vector<1x8x8xf32> to vector<8x8xf32>
    %59 = vector.shape_cast %56 : vector<8x8xf32> to vector<1x8x8xf32>
    tpu.vector_store %arg9[%c0_12, %c0_13, %c0_14], %59 {strides = array<i32>} : memref<1x8x8xf32, #tpu.memory_space<vmem>>, vector<1x8x8xf32>,
    %60 = arith.truncf %53 : vector<4x8x8xf32> to vector<4x8x8xbf16>
    "tpu.trace_start"() <{level = 10 : i32, message = "hqk,hkd->hqd"}> : () -> ()
    %cst_15 = arith.constant dense<0.000000e+00> : vector<4x8x8xf32>
    %61 = tpu.matmul %60, %34, %cst_15 {dimension_numbers = #tpu.dot_dimension_numbers<[2], [1], [1], [2], [0, 0, 0, 1, 1, 2], [0], [0]>} : vector<4x8x8xbf16>, vector<4x8x8xbf16>, vector<4x8x8xf32> -> vector<4x8x8xf32>
    "tpu.trace_stop"() : () -> ()
    %62 = vector.extract_strided_slice %61 {offsets = [0, 0, 0], sizes = [1, 8, 8], strides = [1, 1, 1]} : vector<4x8x8xf32> to vector<1x8x8xf32>
    %63 = vector.shape_cast %62 : vector<1x8x8xf32> to vector<8x8xf32>
    %64 = vector.extract_strided_slice %61 {offsets = [1, 0, 0], sizes = [1, 8, 8], strides = [1, 1, 1]} : vector<4x8x8xf32> to vector<1x8x8xf32>
    %65 = vector.shape_cast %64 : vector<1x8x8xf32> to vector<8x8xf32>
    %66 = vector.extract_strided_slice %61 {offsets = [2, 0, 0], sizes = [1, 8, 8], strides = [1, 1, 1]} : vector<4x8x8xf32> to vector<1x8x8xf32>
    %67 = vector.shape_cast %66 : vector<1x8x8xf32> to vector<8x8xf32>
    %68 = vector.extract_strided_slice %61 {offsets = [3, 0, 0], sizes = [1, 8, 8], strides = [1, 1, 1]} : vector<4x8x8xf32> to vector<1x8x8xf32>
    %69 = vector.shape_cast %68 : vector<1x8x8xf32> to vector<8x8xf32>
    %70 = tpu.concatenate %63, %65, %67, %69 in 1 : vector<8x8xf32>, vector<8x8xf32>, vector<8x8xf32>, vector<8x8xf32> -> vector<8x32xf32>
    %71 = arith.truncf %70 : vector<8x32xf32> to vector<8x32xbf16>
    %c0_16 = arith.constant 0 : index
    %c0_17 = arith.constant 0 : index
    %72 = vector.load %arg4[%c0_16, %c0_17] : memref<32x32xbf16, #tpu.memory_space<vmem>>, vector<32x32xbf16>
    %cst_18 = arith.constant dense<0.000000e+00> : vector<8x32xf32>
    %73 = tpu.matmul %71, %72, %cst_18 {dimension_numbers = #tpu.dot_dimension_numbers<[1], [0], [0], [1], [0, 0, 1, 1], [], []>} : vector<8x32xbf16>, vector<32x32xbf16>, vector<8x32xf32> -> vector<8x32xf32>
    %c0_19 = arith.constant 0 : index
    %c0_20 = arith.constant 0 : index
    %74 = vector.load %arg5[%c0_19, %c0_20] : memref<1x32xf32, #tpu.memory_space<vmem>>, vector<1x32xf32>
    %75 = vector.broadcast %74 : vector<1x32xf32> to vector<8x32xf32>
    %76 = arith.addf %73, %75 : vector<8x32xf32>
    %77 = arith.truncf %76 : vector<8x32xf32> to vector<8x32xbf16>
    %c0_21 = arith.constant 0 : index
    %c0_22 = arith.constant 0 : index
    %78 = vector.load %arg6[%c0_21, %c0_22] : memref<32x64xbf16, #tpu.memory_space<vmem>>, vector<32x64xbf16>
    %cst_23 = arith.constant dense<0.000000e+00> : vector<8x64xf32>
    %79 = tpu.matmul %77, %78, %cst_23 {dimension_numbers = #tpu.dot_dimension_numbers<[1], [0], [0], [1], [0, 0, 1, 1], [], []>} : vector<8x32xbf16>, vector<32x64xbf16>, vector<8x64xf32> -> vector<8x64xf32>
    %cst_24 = arith.constant 0.000000e+00 : f32
    %80 = vector.broadcast %cst_24 : f32 to vector<8x64xf32>
    %81 = arith.maximumf %79, %80 : vector<8x64xf32>
    %82 = arith.truncf %81 : vector<8x64xf32> to vector<8x64xbf16>
    %c0_25 = arith.constant 0 : index
    %c0_26 = arith.constant 0 : index
    %83 = vector.load %arg7[%c0_25, %c0_26] : memref<64x32xbf16, #tpu.memory_space<vmem>>, vector<64x32xbf16>
    %cst_27 = arith.constant dense<0.000000e+00> : vector<8x32xf32>
    %84 = tpu.matmul %82, %83, %cst_27 {dimension_numbers = #tpu.dot_dimension_numbers<[1], [0], [0], [1], [0, 0, 1, 1], [], []>} : vector<8x64xbf16>, vector<64x32xbf16>, vector<8x32xf32> -> vector<8x32xf32>
    %85 = arith.addf %84, %76 : vector<8x32xf32>
    %cst_28 = arith.constant dense<0.000000e+00> : vector<8xf32>
    %86 = vector.multi_reduction <add>, %85, %cst_28 [1] : vector<8x32xf32> to vector<8xf32>
    %87 = vector.shape_cast %86 : vector<8xf32> to vector<8x1xf32>
    %cst_29 = arith.constant 3.200000e+01 : f32
    %88 = vector.broadcast %cst_29 : f32 to vector<8x1xf32>
    %89 = arith.divf %87, %88 : vector<8x1xf32>
    %90 = vector.broadcast %89 : vector<8x1xf32> to vector<8x32xf32>
    %91 = arith.subf %85, %90 : vector<8x32xf32>
    %92 = arith.mulf %91, %91 : vector<8x32xf32>
    %cst_30 = arith.constant dense<0.000000e+00> : vector<8xf32>
    %93 = vector.multi_reduction <add>, %92, %cst_30 [1] : vector<8x32xf32> to vector<8xf32>
    %94 = vector.shape_cast %93 : vector<8xf32> to vector<8x1xf32>
    %cst_31 = arith.constant 3.200000e+01 : f32
    %95 = vector.broadcast %cst_31 : f32 to vector<8x1xf32>
    %96 = arith.divf %94, %95 : vector<8x1xf32>
    %cst_32 = arith.constant 9.99999974E-6 : f32
    %97 = vector.broadcast %cst_32 : f32 to vector<8x1xf32>
    %98 = arith.addf %96, %97 : vector<8x1xf32>
    %99 = math.rsqrt %98 : vector<8x1xf32>
    %100 = vector.broadcast %99 : vector<8x1xf32> to vector<8x32xf32>
    %101 = arith.mulf %91, %100 : vector<8x32xf32>
    %102 = arith.truncf %101 : vector<8x32xf32> to vector<8x32xbf16>
    %c0_33 = arith.constant 0 : index
    %c0_34 = arith.constant 0 : index
    %c0_35 = arith.constant 0 : index
    %103 = vector.load %arg8[%c0_33, %c0_34, %c0_35] : memref<1x8x32xbf16, #tpu.memory_space<vmem>>, vector<1x8x32xbf16>
    %104 = vector.shape_cast %103 : vector<1x8x32xbf16> to vector<8x32xbf16>
    %105 = vector.shape_cast %102 : vector<8x32xbf16> to vector<1x8x32xbf16>
    tpu.vector_store %arg8[%c0_33, %c0_34, %c0_35], %105 {strides = array<i32>} : memref<1x8x32xbf16, #tpu.memory_space<vmem>>, vector<1x8x32xbf16>,
    return
  }
  func.func @transform_0(%arg0: i32) -> (i32, i32, i32) {
    %c0_i32 = arith.constant 0 : i32
    %c0_i32_0 = arith.constant 0 : i32
    %c0_i32_1 = arith.constant 0 : i32
    return %arg0, %c0_i32, %c0_i32_0 : i32, i32, i32
  }
  func.func @transform_1(%arg0: i32) -> (i32, i32) {
    %c0_i32 = arith.constant 0 : i32
    %c0_i32_0 = arith.constant 0 : i32
    %c0_i32_1 = arith.constant 0 : i32
    return %c0_i32, %c0_i32_0 : i32, i32
  }
  func.func @transform_2(%arg0: i32) -> (i32, i32) {
    %c0_i32 = arith.constant 0 : i32
    %c0_i32_0 = arith.constant 0 : i32
    %c0_i32_1 = arith.constant 0 : i32
    return %c0_i32, %c0_i32_0 : i32, i32
  }
  func.func @transform_3(%arg0: i32) -> (i32, i32) {
    %c0_i32 = arith.constant 0 : i32
    %c0_i32_0 = arith.constant 0 : i32
    %c0_i32_1 = arith.constant 0 : i32
    return %c0_i32, %c0_i32_0 : i32, i32
  }
  func.func @transform_4(%arg0: i32) -> (i32, i32) {
    %c0_i32 = arith.constant 0 : i32
    %c0_i32_0 = arith.constant 0 : i32
    %c0_i32_1 = arith.constant 0 : i32
    return %c0_i32, %c0_i32_0 : i32, i32
  }
  func.func @transform_5(%arg0: i32) -> (i32, i32) {
    %c0_i32 = arith.constant 0 : i32
    %c0_i32_0 = arith.constant 0 : i32
    %c0_i32_1 = arith.constant 0 : i32
    return %c0_i32, %c0_i32_0 : i32, i32
  }
  func.func @transform_6(%arg0: i32) -> (i32, i32) {
    %c0_i32 = arith.constant 0 : i32
    %c0_i32_0 = arith.constant 0 : i32
    %c0_i32_1 = arith.constant 0 : i32
    return %c0_i32, %c0_i32_0 : i32, i32
  }
  func.func @transform_7(%arg0: i32) -> (i32, i32, i32) {
    %c0_i32 = arith.constant 0 : i32
    %c0_i32_0 = arith.constant 0 : i32
    %c0_i32_1 = arith.constant 0 : i32
    return %arg0, %c0_i32, %c0_i32_0 : i32, i32, i32
  }
  func.func @transform_8(%arg0: i32) -> (i32, i32, i32) {
    %c0_i32 = arith.constant 0 : i32
    %c0_i32_0 = arith.constant 0 : i32
    %c0_i32_1 = arith.constant 0 : i32
    return %arg0, %c0_i32, %c0_i32_0 : i32, i32, i32
  }
}

module attributes {stable_mosaic.version = 11 : i64} {
  func.func @decoder_kernel(%arg0: i32, %arg1: i32, %arg2: memref<16x32xbf16, #tpu.memory_space<vmem>>, %arg3: memref<32x32xbf16, #tpu.memory_space<vmem>>, %arg4: memref<1x32xf32, #tpu.memory_space<vmem>>, %arg5: memref<16x32xf32, #tpu.memory_space<vmem>>) attributes {dimension_semantics = [#tpu.dimension_semantics<parallel>, #tpu.dimension_semantics<parallel>], iteration_bounds = array<i64: 1, 1>, scalar_prefetch = 0 : i64, scratch_operands = 0 : i64, tpu.core_type = #tpu.core_type<tc>, window_params = [{transform_indices = @transform_0, window_bounds = array<i64: 16, 32>}, {transform_indices = @transform_1, window_bounds = array<i64: 32, 32>}, {transform_indices = @transform_2, window_bounds = array<i64: 1, 32>}, {transform_indices = @transform_3, window_bounds = array<i64: 16, 32>}]} {
    %c0 = arith.constant 0 : index
    %c0_0 = arith.constant 0 : index
    %0 = vector.load %arg2[%c0, %c0_0] : memref<16x32xbf16, #tpu.memory_space<vmem>>, vector<16x32xbf16>
    %c0_1 = arith.constant 0 : index
    %c0_2 = arith.constant 0 : index
    %1 = vector.load %arg3[%c0_1, %c0_2] : memref<32x32xbf16, #tpu.memory_space<vmem>>, vector<32x32xbf16>
    %cst = arith.constant dense<0.000000e+00> : vector<16x32xf32>
    %2 = tpu.matmul %0, %1, %cst {dimension_numbers = #tpu.dot_dimension_numbers<[1], [0], [0], [1], [0, 0, 1, 1], [], []>} : vector<16x32xbf16>, vector<32x32xbf16>, vector<16x32xf32> -> vector<16x32xf32>
    %c0_3 = arith.constant 0 : index
    %c0_4 = arith.constant 0 : index
    %3 = vector.load %arg4[%c0_3, %c0_4] : memref<1x32xf32, #tpu.memory_space<vmem>>, vector<1x32xf32>
    %4 = vector.broadcast %3 : vector<1x32xf32> to vector<16x32xf32>
    %5 = arith.addf %2, %4 : vector<16x32xf32>
    %c0_5 = arith.constant 0 : index
    %c0_6 = arith.constant 0 : index
    %6 = vector.load %arg5[%c0_5, %c0_6] : memref<16x32xf32, #tpu.memory_space<vmem>>, vector<16x32xf32>
    tpu.vector_store %arg5[%c0_5, %c0_6], %5 {strides = array<i32>} : memref<16x32xf32, #tpu.memory_space<vmem>>, vector<16x32xf32>,
    return
  }
  func.func @transform_0(%arg0: i32, %arg1: i32) -> (i32, i32) {
    %c0_i32 = arith.constant 0 : i32
    %c0_i32_0 = arith.constant 0 : i32
    return %arg1, %c0_i32 : i32, i32
  }
  func.func @transform_1(%arg0: i32, %arg1: i32) -> (i32, i32) {
    %c0_i32 = arith.constant 0 : i32
    %c0_i32_0 = arith.constant 0 : i32
    return %c0_i32, %arg0 : i32, i32
  }
  func.func @transform_2(%arg0: i32, %arg1: i32) -> (i32, i32) {
    %c0_i32 = arith.constant 0 : i32
    %c0_i32_0 = arith.constant 0 : i32
    return %c0_i32, %arg0 : i32, i32
  }
  func.func @transform_3(%arg0: i32, %arg1: i32) -> (i32, i32) {
    %c0_i32 = arith.constant 0 : i32
    return %arg1, %arg0 : i32, i32
  }
}

</mosaic_0001>

<llo_original>
// kernel: transformer_forward.5
$region0: #{transformer_forward.5}
  #allocation0 [shape = 'u32[]', space=smem, size = 0x4, offset = 0x4, fixed_abs, tag = 'smem constant byte address 0x4 - core index']
  #allocation1 [shape = 'u32[144,128]{1,0:T(1,128)}', space=vmem, size = 0x12000, scoped, tag = 'internal scratch']
  %s0 = inlined_call_operand.hbm [shape: bf16[16,32], index: 0, kind: input, shape index: {}]
  %s1 = inlined_call_operand.hbm [shape: bf16[32,32], index: 1, kind: input, shape index: {}]
  %s2 = inlined_call_operand.vmem [shape: f32[1,32], index: 2, kind: input, shape index: {}]
  %s3 = inlined_call_operand.vmem [shape: f32[16,32], index: 3, kind: output, shape index: {}]
  %s4 = sld [smem:[#allocation0]]
  $region30: #{transformer_forward.5} parent=0
    _
  %s6 = ssub.s32 1, %s4
  %s7 = scalar_select 0, %s6, %s4
  $region1: #{transformer_forward.5} parent=0
    #allocation2 [shape = 'u8[4096]{0}', space=vmem, size = 0x1000, scoped, tag = 'input window, operand 0, single buffered']
    #allocation3 [shape = 's32[1]{0}', space=sflag, size = 0x4, scoped, tag = 'scoped memory for transformer_forward.5']
    #allocation4 [shape = 'u8[8192]{0}', space=vmem, size = 0x2000, scoped, tag = 'input window, operand 1, single buffered']
    #allocation5 [shape = 's32[1]{0}', space=sflag, size = 0x4, scoped, tag = 'scoped memory for transformer_forward.5']
    %8 = vsyncpa [#allocation3], 0
    %9 = vsyncpa [#allocation5], 0
    // Predicated region
    $region2: #{transformer_forward.5} parent=1 // pred_check
      _
    $region3: #{transformer_forward.5} parent=1 // pred_check_branch
      %11 = sbr.rel (0) target = $region5
    $region4: #{transformer_forward.5} parent=1 // pred_region
      %s13 = ssub.s32 128, 128
      %14 = vsyncadd [#allocation3], %s13
      %s15 = sshll.u32 [#allocation2], 4
      %s16 = int_to_ptr.vmem [resolvable:$true] %s15
      %21 = dma.hbm_to_vmem [thread:$0]  %s0, 128, %s16, [#allocation3], 64, 64, 4
    $region5: #{transformer_forward.5} parent=1 // pred_fallthru
      _
    // Predicated region
    $region6: #{transformer_forward.5} parent=1 // pred_check
      _
    $region7: #{transformer_forward.5} parent=1 // pred_check_branch
      %23 = sbr.rel (0) target = $region9
    $region8: #{transformer_forward.5} parent=1 // pred_region
      %s25 = ssub.s32 256, 256
      %26 = vsyncadd [#allocation5], %s25
      %s27 = sshll.u32 [#allocation4], 4
      %s28 = int_to_ptr.vmem [resolvable:$true] %s27
      %33 = dma.hbm_to_vmem [thread:$0]  %s1, 256, %s28, [#allocation5], 64, 64, 4
    $region9: #{transformer_forward.5} parent=1 // pred_fallthru
      _
    // Predicated region
    $region10: #{transformer_forward.5} parent=1 // pred_check
      _
    $region11: #{transformer_forward.5} parent=1 // pred_check_branch
      %35 = sbr.rel (0) target = $region13
    $region12: #{transformer_forward.5} parent=1 // pred_region
      _
    $region13: #{transformer_forward.5} parent=1 // pred_fallthru
      _
    // Predicated region
    $region14: #{transformer_forward.5} parent=1 // pred_check
      _
    $region15: #{transformer_forward.5} parent=1 // pred_check_branch
      %37 = sbr.rel (0) target = $region17
    $region16: #{transformer_forward.5} parent=1 // pred_region
      %38 = dma.done [#allocation3], 128
    $region17: #{transformer_forward.5} parent=1 // pred_fallthru
      _
    // Predicated region
    $region18: #{transformer_forward.5} parent=1 // pred_check
      _
    $region19: #{transformer_forward.5} parent=1 // pred_check_branch
      %40 = sbr.rel (0) target = $region21
    $region20: #{transformer_forward.5} parent=1 // pred_region
      %41 = dma.done [#allocation5], 256
    $region21: #{transformer_forward.5} parent=1 // pred_fallthru
      _
    %v43 = vld [vmem:[#allocation2] sm:$0xf]
    %v44 = vld [vmem:[#allocation2 + $0x4] sm:$0xf]
    %v45 = vld [vmem:[#allocation4] sm:$0xf]
    %v46 = vld [vmem:[#allocation4 + $0x4] sm:$0xf]
    %v47 = vld [vmem:[#allocation4 + $0x8] sm:$0xf]
    %v48 = vld [vmem:[#allocation4 + $0xc] sm:$0xf]
    %v49 = vld [vmem:[%s2] sm:$0x1]
    %v51 = vlaneseq
    %v52 = vshrl.u32 %v51, 7
    %v53 = vsub.s32 0, %v52
    %v54 = vrot.slane %v49, %v53
    %v58 = vunpack.c.l.b16 %v43
    %v59 = vunpack.c.l.b16 %v44
    %v60 = vpack.c.b16 %v59, %v58
    %v65 = vunpack.c.l.b16 %v45
    %v66 = vunpack.c.l.b16 %v46
    %v67 = vunpack.c.l.b16 %v47
    %v68 = vunpack.c.l.b16 %v48
    %v69 = vpack.c.b16 %v66, %v65
    %v70 = vpack.c.b16 %v68, %v67
    %vm73 = vcmask 261120
    %v75 = vsel %vm73, %v60, 0
    %77 = vmatprep.subr.bf16.mxu0 0
    %78 = vmatpush1.bf16.msra.mxu0 %v69
    %79 = vmatprep.subr.bf16.mxu0 0
    %80 = vmatpush1.bf16.msra.mxu0 %v70
    %81 = vmatprep.subr.bf16.mxu0 0
    %82 = vmatpush1.bf16.msra.mxu0 0
    %83 = vmatprep.subr.bf16.mxu0 0
    %84 = vmatpush1.bf16.msra.mxu0 0
    %85 = vmatprep.subr.bf16.mxu0 0
    %86 = vmatpush1.bf16.msra.mxu0 0
    %87 = vmatprep.subr.bf16.mxu0 0
    %88 = vmatpush1.bf16.msra.mxu0 0
    %89 = vmatprep.subr.bf16.mxu0 0
    %90 = vmatpush1.bf16.msra.mxu0 0
    %91 = vmatprep.subr.bf16.mxu0 0
    %92 = vmatpush1.bf16.msra.mxu0 0
    %93 = vmatprep.subr.bf16.mxu0 0
    %94 = vmatpush1.bf16.msra.mxu0 0
    %95 = vmatprep.subr.bf16.mxu0 0
    %96 = vmatpush1.bf16.msra.mxu0 0
    %97 = vmatprep.subr.bf16.mxu0 0
    %98 = vmatpush1.bf16.msra.mxu0 0
    %99 = vmatprep.subr.bf16.mxu0 0
    %100 = vmatpush1.bf16.msra.mxu0 0
    %101 = vmatprep.subr.bf16.mxu0 0
    %102 = vmatpush1.bf16.msra.mxu0 0
    %103 = vmatprep.subr.bf16.mxu0 0
    %104 = vmatpush1.bf16.msra.mxu0 0
    %105 = vmatprep.subr.bf16.mxu0 0
    %106 = vmatpush1.bf16.msra.mxu0 0
    %107 = vmatprep.subr.bf16.mxu0 0
    %108 = vmatpush1.bf16.msra.mxu0 0
    %109 = vmatprep.mubr.bf16.mxu0 0
    %110 = vmatmul.mubr.bf16.gmra.mrb[0].mxu0 %v75
    %v111 = vpop.f32.mrb[0].mxu0
    %v112 = vadd.f32 %v54, %v111
    %v113 = vpop.f32.mrb[0].mxu0
    %v114 = vpop.f32.mrb[0].mxu0
    %v115 = vadd.f32 %v54, %v114
    %v116 = vpop.f32.mrb[0].mxu0
    %117 = vdwg.mxu0
    %118 = vst.msk [vmem:[%s3] sm:$0xff] %vm73, %v112
    %119 = vst.msk [vmem:[%s3 + $0x8] sm:$0xff] %vm73, %v115
    // Predicated region
    $region22: #{transformer_forward.5} parent=1 // pred_check
      _
    $region23: #{transformer_forward.5} parent=1 // pred_check_branch
      %121 = sbr.rel (0) target = $region25
    $region24: #{transformer_forward.5} parent=1 // pred_region
      _
    $region25: #{transformer_forward.5} parent=1 // pred_fallthru
      _
    // Predicated region
    $region26: #{transformer_forward.5} parent=1 // pred_check
      _
    $region27: #{transformer_forward.5} parent=1 // pred_check_branch
      %123 = sbr.rel (0) target = $region29
    $region28: #{transformer_forward.5} parent=1 // pred_region
      _
    $region29: #{transformer_forward.5} parent=1 // pred_fallthru
      _
    %124 = vsyncpa [#allocation3], 1
    %125 = vsyncpa [#allocation5], 1

// kernel: transformer_forward.3
$region0: #{transformer_forward.3}
  #allocation0 [shape = 'u32[]', space=smem, size = 0x4, offset = 0x4, fixed_abs, tag = 'smem constant byte address 0x4 - core index']
  #allocation1 [shape = 'u32[144,128]{1,0:T(1,128)}', space=vmem, size = 0x12000, scoped, tag = 'internal scratch']
  %s0 = inlined_call_operand.hbm [shape: f32[2,8,32], index: 0, kind: input, shape index: {}]
  %s1 = inlined_call_operand.hbm [shape: f32[8,32], index: 1, kind: input, shape index: {}]
  %s2 = inlined_call_operand.hbm [shape: bf16[32,96], index: 2, kind: input, shape index: {}]
  %s3 = inlined_call_operand.hbm [shape: f32[1,96], index: 3, kind: input, shape index: {}]
  %s4 = inlined_call_operand.hbm [shape: bf16[32,32], index: 4, kind: input, shape index: {}]
  %s5 = inlined_call_operand.hbm [shape: f32[1,32], index: 5, kind: input, shape index: {}]
  %s6 = inlined_call_operand.hbm [shape: bf16[32,64], index: 6, kind: input, shape index: {}]
  %s7 = inlined_call_operand.hbm [shape: bf16[64,32], index: 7, kind: input, shape index: {}]
  %s8 = inlined_call_operand.hbm [shape: bf16[2,8,32], index: 8, kind: output, shape index: {}]
  %s9 = sld [smem:[#allocation0]]
  $region97: #{transformer_forward.3} parent=0
    _
  %s11 = ssub.s32 1, %s9
  %s12 = scalar_select 0, %s11, %s9
  $region1: #{transformer_forward.3} parent=0
    #allocation2 [shape = 'u8[8192]{0}', space=vmem, size = 0x2000, scoped, tag = 'input window, operand 0']
    #allocation3 [shape = 's32[2]{0}', space=sflag, size = 0x8, scoped, tag = 'scoped memory for transformer_forward.3']
    #allocation4 [shape = 's32[2]{0}', space=sflag, size = 0x8, scoped, tag = 'scoped memory for transformer_forward.3']
    #allocation5 [shape = 'u8[4096]{0}', space=vmem, size = 0x1000, scoped, tag = 'input window, operand 1, single buffered']
    #allocation6 [shape = 's32[1]{0}', space=sflag, size = 0x4, scoped, tag = 'scoped memory for transformer_forward.3']
    #allocation7 [shape = 'u8[8192]{0}', space=vmem, size = 0x2000, scoped, tag = 'input window, operand 2, single buffered']
    #allocation8 [shape = 'u8[512]{0}', space=vmem, size = 0x400, scoped, tag = 'input window, operand 3, single buffered']
    #allocation9 [shape = 's32[1]{0}', space=sflag, size = 0x4, scoped, tag = 'scoped memory for transformer_forward.3']
    #allocation10 [shape = 'u8[8192]{0}', space=vmem, size = 0x2000, scoped, tag = 'input window, operand 4, single buffered']
    #allocation11 [shape = 'u8[512]{0}', space=vmem, size = 0x400, scoped, tag = 'input window, operand 5, single buffered']
    #allocation12 [shape = 's32[1]{0}', space=sflag, size = 0x4, scoped, tag = 'scoped memory for transformer_forward.3']
    #allocation13 [shape = 'u8[8192]{0}', space=vmem, size = 0x2000, scoped, tag = 'input window, operand 6, single buffered']
    #allocation14 [shape = 'u8[16384]{0}', space=vmem, size = 0x4000, scoped, tag = 'input window, operand 7, single buffered']
    #allocation15 [shape = 's32[1]{0}', space=sflag, size = 0x4, scoped, tag = 'scoped memory for transformer_forward.3']
    #allocation16 [shape = 'u8[4096]{0}', space=vmem, size = 0x1000, scoped, tag = 'output window, operand 0']
    %13 = vsyncpa [#allocation3], 0
    %s14 = scalar_lea.sflag [#allocation3], 1
    %15 = vsyncpa %s14, 0
    %16 = vsyncpa [#allocation6], 0
    %17 = vsyncpa [#allocation9], 0
    %18 = vsyncpa [#allocation12], 0
    %19 = vsyncpa [#allocation15], 0
    %20 = vsyncpa [#allocation4], 0
    %s21 = scalar_lea.sflag [#allocation4], 1
    %22 = vsyncpa %s21, 0
    loop: start=0, step=1, limit=4
    $region2: #{transformer_forward.3} parent=1 // loop_pre_header
      _
    $region3: #{transformer_forward.3} parent=1 // loop_header
      %s24 = sphi 0, %s28
      %p25 = scmp.ge.s32.totalorder %s24, 4
      %s34 = sphi 0, %s36
      %s37 = sphi 0, %s34
      %s38 = sphi 0, %s37
      %s54 = sphi 0, %s38
      %s58 = sphi 0, %s58
      %s60 = sphi 0, %s58
      %s61 = sphi 0, %s60
      %s75 = sphi 0, %s61
      %s79 = sphi 0, %s79
      %s81 = sphi 0, %s79
      %s82 = sphi 0, %s81
      %s96 = sphi 0, %s82
      %s100 = sphi 0, %s100
      %s102 = sphi 0, %s100
      %s103 = sphi 0, %s102
      %s117 = sphi 0, %s103
      %s121 = sphi 0, %s121
      %s123 = sphi 0, %s121
      %s124 = sphi 0, %s123
      %s138 = sphi 0, %s124
      %s142 = sphi 0, %s142
      %s144 = sphi 0, %s142
      %s145 = sphi 0, %s144
      %s159 = sphi 0, %s145
      %s163 = sphi 0, %s163
      %s165 = sphi 0, %s163
      %s166 = sphi 0, %s165
      %s180 = sphi 0, %s166
      %s184 = sphi 0, %s184
      %s186 = sphi 0, %s184
      %s187 = sphi 0, %s186
      %s201 = sphi 0, %s187
      %s207 = sphi 0, %s209
      %s210 = sphi 0, %s207
      %s211 = sphi 0, %s210
      %s227 = sphi 0, %s211
    $region4: #{transformer_forward.3} parent=1 // loop_header_branch
      %27 = sbr.rel (%p25) target = $region8
    $region5: #{transformer_forward.3} parent=1 // loop_body
      %s29 = ssub.s32 %s24, 1
      %s30 = ssub.s32 %s24, 2
      %s31 = sadd.s32 %s24, 1
      %s32 = ssub.s32 %s24, %s31
      %p33 = scmp.eq.s32.totalorder %s32, 0
      %s35 = sadd.s32 %s34, 1
      %s36 = scalar_select %p33, %s34, %s35
      %p39 = pneg %p33
      %p40 = scmp.eq.s32.totalorder %s24, 1
      %p41 = por %p39, %p40
      %p42 = scmp.ne.s32.totalorder %s34, %s37
      %p43 = scmp.eq.s32.totalorder %s24, 0
      %p44 = por %p42, %p43
      %p45 = scmp.ne.s32.totalorder %s34, %s37
      %p46 = scmp.eq.s32.totalorder %s29, 1
      %p47 = por %p45, %p46
      %p48 = scmp.ne.s32.totalorder %s37, %s38
      %p49 = scmp.eq.s32.totalorder %s29, 0
      %p50 = por %p48, %p49
      %p51 = scmp.ne.s32.totalorder %s37, %s38
      %p52 = scmp.eq.s32.totalorder %s30, 1
      %p53 = por %p51, %p52
      %p55 = scmp.ne.s32.totalorder %s38, %s54
      %p56 = scmp.eq.s32.totalorder %s30, 0
      %p57 = por %p55, %p56
      %s59 = sadd.s32 %s58, 1
      %p62 = scmp.eq.s32.totalorder %s24, 1
      %p63 = scmp.ne.s32.totalorder %s58, %s60
      %p64 = scmp.eq.s32.totalorder %s24, 0
      %p65 = por %p63, %p64
      %p66 = scmp.ne.s32.totalorder %s58, %s60
      %p67 = scmp.eq.s32.totalorder %s29, 1
      %p68 = por %p66, %p67
      %p69 = scmp.ne.s32.totalorder %s60, %s61
      %p70 = scmp.eq.s32.totalorder %s29, 0
      %p71 = por %p69, %p70
      %p72 = scmp.ne.s32.totalorder %s60, %s61
      %p73 = scmp.eq.s32.totalorder %s30, 1
      %p74 = por %p72, %p73
      %p76 = scmp.ne.s32.totalorder %s61, %s75
      %p77 = scmp.eq.s32.totalorder %s30, 0
      %p78 = por %p76, %p77
      %s80 = sadd.s32 %s79, 1
      %p83 = scmp.eq.s32.totalorder %s24, 1
      %p84 = scmp.ne.s32.totalorder %s79, %s81
      %p85 = scmp.eq.s32.totalorder %s24, 0
      %p86 = por %p84, %p85
      %p87 = scmp.ne.s32.totalorder %s79, %s81
      %p88 = scmp.eq.s32.totalorder %s29, 1
      %p89 = por %p87, %p88
      %p90 = scmp.ne.s32.totalorder %s81, %s82
      %p91 = scmp.eq.s32.totalorder %s29, 0
      %p92 = por %p90, %p91
      %p93 = scmp.ne.s32.totalorder %s81, %s82
      %p94 = scmp.eq.s32.totalorder %s30, 1
      %p95 = por %p93, %p94
      %p97 = scmp.ne.s32.totalorder %s82, %s96
      %p98 = scmp.eq.s32.totalorder %s30, 0
      %p99 = por %p97, %p98
      %s101 = sadd.s32 %s100, 1
      %p104 = scmp.eq.s32.totalorder %s24, 1
      %p105 = scmp.ne.s32.totalorder %s100, %s102
      %p106 = scmp.eq.s32.totalorder %s24, 0
      %p107 = por %p105, %p106
      %p108 = scmp.ne.s32.totalorder %s100, %s102
      %p109 = scmp.eq.s32.totalorder %s29, 1
      %p110 = por %p108, %p109
      %p111 = scmp.ne.s32.totalorder %s102, %s103
      %p112 = scmp.eq.s32.totalorder %s29, 0
      %p113 = por %p111, %p112
      %p114 = scmp.ne.s32.totalorder %s102, %s103
      %p115 = scmp.eq.s32.totalorder %s30, 1
      %p116 = por %p114, %p115
      %p118 = scmp.ne.s32.totalorder %s103, %s117
      %p119 = scmp.eq.s32.totalorder %s30, 0
      %p120 = por %p118, %p119
      %s122 = sadd.s32 %s121, 1
      %p125 = scmp.eq.s32.totalorder %s24, 1
      %p126 = scmp.ne.s32.totalorder %s121, %s123
      %p127 = scmp.eq.s32.totalorder %s24, 0
      %p128 = por %p126, %p127
      %p129 = scmp.ne.s32.totalorder %s121, %s123
      %p130 = scmp.eq.s32.totalorder %s29, 1
      %p131 = por %p129, %p130
      %p132 = scmp.ne.s32.totalorder %s123, %s124
      %p133 = scmp.eq.s32.totalorder %s29, 0
      %p134 = por %p132, %p133
      %p135 = scmp.ne.s32.totalorder %s123, %s124
      %p136 = scmp.eq.s32.totalorder %s30, 1
      %p137 = por %p135, %p136
      %p139 = scmp.ne.s32.totalorder %s124, %s138
      %p140 = scmp.eq.s32.totalorder %s30, 0
      %p141 = por %p139, %p140
      %s143 = sadd.s32 %s142, 1
      %p146 = scmp.eq.s32.totalorder %s24, 1
      %p147 = scmp.ne.s32.totalorder %s142, %s144
      %p148 = scmp.eq.s32.totalorder %s24, 0
      %p149 = por %p147, %p148
      %p150 = scmp.ne.s32.totalorder %s142, %s144
      %p151 = scmp.eq.s32.totalorder %s29, 1
      %p152 = por %p150, %p151
      %p153 = scmp.ne.s32.totalorder %s144, %s145
      %p154 = scmp.eq.s32.totalorder %s29, 0
      %p155 = por %p153, %p154
      %p156 = scmp.ne.s32.totalorder %s144, %s145
      %p157 = scmp.eq.s32.totalorder %s30, 1
      %p158 = por %p156, %p157
      %p160 = scmp.ne.s32.totalorder %s145, %s159
      %p161 = scmp.eq.s32.totalorder %s30, 0
      %p162 = por %p160, %p161
      %s164 = sadd.s32 %s163, 1
      %p167 = scmp.eq.s32.totalorder %s24, 1
      %p168 = scmp.ne.s32.totalorder %s163, %s165
      %p169 = scmp.eq.s32.totalorder %s24, 0
      %p170 = por %p168, %p169
      %p171 = scmp.ne.s32.totalorder %s163, %s165
      %p172 = scmp.eq.s32.totalorder %s29, 1
      %p173 = por %p171, %p172
      %p174 = scmp.ne.s32.totalorder %s165, %s166
      %p175 = scmp.eq.s32.totalorder %s29, 0
      %p176 = por %p174, %p175
      %p177 = scmp.ne.s32.totalorder %s165, %s166
      %p178 = scmp.eq.s32.totalorder %s30, 1
      %p179 = por %p177, %p178
      %p181 = scmp.ne.s32.totalorder %s166, %s180
      %p182 = scmp.eq.s32.totalorder %s30, 0
      %p183 = por %p181, %p182
      %s185 = sadd.s32 %s184, 1
      %p188 = scmp.eq.s32.totalorder %s24, 1
      %p189 = scmp.ne.s32.totalorder %s184, %s186
      %p190 = scmp.eq.s32.totalorder %s24, 0
      %p191 = por %p189, %p190
      %p192 = scmp.ne.s32.totalorder %s184, %s186
      %p193 = scmp.eq.s32.totalorder %s29, 1
      %p194 = por %p192, %p193
      %p195 = scmp.ne.s32.totalorder %s186, %s187
      %p196 = scmp.eq.s32.totalorder %s29, 0
      %p197 = por %p195, %p196
      %p198 = scmp.ne.s32.totalorder %s186, %s187
      %p199 = scmp.eq.s32.totalorder %s30, 1
      %p200 = por %p198, %p199
      %p202 = scmp.ne.s32.totalorder %s187, %s201
      %p203 = scmp.eq.s32.totalorder %s30, 0
      %p204 = por %p202, %p203
      %s205 = ssub.s32 %s24, %s31
      %p206 = scmp.eq.s32.totalorder %s205, 0
      %s208 = sadd.s32 %s207, 1
      %s209 = scalar_select %p206, %s207, %s208
      %p212 = pneg %p206
      %p213 = scmp.eq.s32.totalorder %s24, 1
      %p214 = por %p212, %p213
      %p215 = scmp.ne.s32.totalorder %s207, %s210
      %p216 = scmp.eq.s32.totalorder %s24, 0
      %p217 = por %p215, %p216
      %p218 = scmp.ne.s32.totalorder %s207, %s210
      %p219 = scmp.eq.s32.totalorder %s29, 1
      %p220 = por %p218, %p219
      %p221 = scmp.ne.s32.totalorder %s210, %s211
      %p222 = scmp.eq.s32.totalorder %s29, 0
      %p223 = por %p221, %p222
      %p224 = scmp.ne.s32.totalorder %s210, %s211
      %p225 = scmp.eq.s32.totalorder %s30, 1
      %p226 = por %p224, %p225
      %p228 = scmp.ne.s32.totalorder %s211, %s227
      %p229 = scmp.eq.s32.totalorder %s30, 0
      %p230 = por %p228, %p229
      %p231 = scmp.le.s32.totalorder 1, %s24
      %p232 = scmp.lt.s32.totalorder %s24, 3
      %p233 = pnand %p231, %p232
      %p234 = pneg %p233
      // Predicated region
      $region9: #{transformer_forward.3} parent=5 // pred_check
        _
      $region10: #{transformer_forward.3} parent=5 // pred_check_branch
        %236 = sbr.rel (%p233) target = $region12
      $region11: #{transformer_forward.3} parent=5 // pred_region
        %s237 = ssub.s32 %s24, 1
        // Predicated region
        $region13: #{transformer_forward.3} parent=11 // pred_check
          %p238 = pneg %p71
        $region14: #{transformer_forward.3} parent=11 // pred_check_branch
          %240 = sbr.rel (%p238) target = $region16
        $region15: #{transformer_forward.3} parent=11 // pred_region
          %s242 = ssub.s32 128, 128
          %243 = vsyncadd [#allocation6], %s242
          %s245 = sshll.u32 [#allocation5], 4
          %s246 = int_to_ptr.vmem [resolvable:$true] %s245
          %248 = dma.hbm_to_vmem [thread:$0]  %s1, 128, %s246, [#allocation6]
        $region16: #{transformer_forward.3} parent=11 // pred_fallthru
          _
        // Predicated region
        $region17: #{transformer_forward.3} parent=11 // pred_check
          %p249 = pneg %p92
        $region18: #{transformer_forward.3} parent=11 // pred_check_branch
          %251 = sbr.rel (%p249) target = $region20
        $region19: #{transformer_forward.3} parent=11 // pred_region
          %s253 = ssub.s32 256, 256
          %254 = vsyncadd [#allocation6], %s253
          %s255 = sshll.u32 [#allocation7], 4
          %s256 = int_to_ptr.vmem [resolvable:$true] %s255
          %261 = dma.hbm_to_vmem [thread:$0]  %s2, 256, %s256, [#allocation6], 64, 64, 4
        $region20: #{transformer_forward.3} parent=11 // pred_fallthru
          _
        // Predicated region
        $region21: #{transformer_forward.3} parent=11 // pred_check
          %p262 = pneg %p113
        $region22: #{transformer_forward.3} parent=11 // pred_check_branch
          %264 = sbr.rel (%p262) target = $region24
        $region23: #{transformer_forward.3} parent=11 // pred_region
          %s266 = ssub.s32 16, 16
          %267 = vsyncadd [#allocation9], %s266
          %s269 = sshll.u32 [#allocation8], 4
          %s270 = int_to_ptr.vmem [resolvable:$true] %s269
          %272 = dma.hbm_to_vmem [thread:$0]  %s3, 16, %s270, [#allocation9]
        $region24: #{transformer_forward.3} parent=11 // pred_fallthru
          _
        // Predicated region
        $region25: #{transformer_forward.3} parent=11 // pred_check
          %p273 = pneg %p134
        $region26: #{transformer_forward.3} parent=11 // pred_check_branch
          %275 = sbr.rel (%p273) target = $region28
        $region27: #{transformer_forward.3} parent=11 // pred_region
          %s277 = ssub.s32 256, 256
          %278 = vsyncadd [#allocation9], %s277
          %s279 = sshll.u32 [#allocation10], 4
          %s280 = int_to_ptr.vmem [resolvable:$true] %s279
          %285 = dma.hbm_to_vmem [thread:$0]  %s4, 256, %s280, [#allocation9], 64, 64, 4
        $region28: #{transformer_forward.3} parent=11 // pred_fallthru
          _
        // Predicated region
        $region29: #{transformer_forward.3} parent=11 // pred_check
          %p286 = pneg %p155
        $region30: #{transformer_forward.3} parent=11 // pred_check_branch
          %288 = sbr.rel (%p286) target = $region32
        $region31: #{transformer_forward.3} parent=11 // pred_region
          %s290 = ssub.s32 16, 16
          %291 = vsyncadd [#allocation12], %s290
          %s293 = sshll.u32 [#allocation11], 4
          %s294 = int_to_ptr.vmem [resolvable:$true] %s293
          %296 = dma.hbm_to_vmem [thread:$0]  %s5, 16, %s294, [#allocation12]
        $region32: #{transformer_forward.3} parent=11 // pred_fallthru
          _
        // Predicated region
        $region33: #{transformer_forward.3} parent=11 // pred_check
          %p297 = pneg %p176
        $region34: #{transformer_forward.3} parent=11 // pred_check_branch
          %299 = sbr.rel (%p297) target = $region36
        $region35: #{transformer_forward.3} parent=11 // pred_region
          %s301 = ssub.s32 256, 256
          %302 = vsyncadd [#allocation12], %s301
          %s303 = sshll.u32 [#allocation13], 4
          %s304 = int_to_ptr.vmem [resolvable:$true] %s303
          %309 = dma.hbm_to_vmem [thread:$0]  %s6, 256, %s304, [#allocation12], 64, 64, 4
        $region36: #{transformer_forward.3} parent=11 // pred_fallthru
          _
        // Predicated region
        $region37: #{transformer_forward.3} parent=11 // pred_check
          %p310 = pneg %p197
        $region38: #{transformer_forward.3} parent=11 // pred_check_branch
          %312 = sbr.rel (%p310) target = $region40
        $region39: #{transformer_forward.3} parent=11 // pred_region
          %s314 = ssub.s32 512, 512
          %315 = vsyncadd [#allocation15], %s314
          %s316 = sshll.u32 [#allocation14], 4
          %s317 = int_to_ptr.vmem [resolvable:$true] %s316
          %322 = dma.hbm_to_vmem [thread:$0]  %s7, 512, %s317, [#allocation15], 64, 64, 4
        $region40: #{transformer_forward.3} parent=11 // pred_fallthru
          _
      $region12: #{transformer_forward.3} parent=5 // pred_fallthru
        _
      %p323 = scmp.lt.s32.totalorder %s24, 2
      // Predicated region
      $region41: #{transformer_forward.3} parent=5 // pred_check
        %p324 = pneg %p323
      $region42: #{transformer_forward.3} parent=5 // pred_check_branch
        %326 = sbr.rel (%p324) target = $region44
      $region43: #{transformer_forward.3} parent=5 // pred_region
        // Predicated region
        $region45: #{transformer_forward.3} parent=43 // pred_check
          %p327 = pneg %p44
        $region46: #{transformer_forward.3} parent=43 // pred_check_branch
          %329 = sbr.rel (%p327) target = $region48
        $region47: #{transformer_forward.3} parent=43 // pred_region
          %s330 = sand.u32 %s34, 1
          %s331 = scalar_lea.sflag [#allocation3], %s330
          %s332 = sand.u32 %s34, 1
          %s333 = smul.addr %s332, 8
          %s334 = scalar_lea.vmem [#allocation2], %s333
          %s336 = ssub.s32 128, 128
          %337 = vsyncadd %s331, %s336
          %s338 = smul.addr %s24, 128
          %s339 = scalar_lea.hbm %s0, %s338
          %s341 = sshll.u32 %s334, 4
          %s342 = int_to_ptr.vmem [resolvable:$true] %s341
          %344 = dma.hbm_to_vmem [thread:$0]  %s339, 128, %s342, %s331
        $region48: #{transformer_forward.3} parent=43 // pred_fallthru
          _
      $region44: #{transformer_forward.3} parent=5 // pred_fallthru
        _
      %p345 = scmp.le.s32.totalorder 1, %s24
      %p346 = scmp.lt.s32.totalorder %s24, 3
      %p347 = pnand %p345, %p346
      %p348 = pneg %p347
      // Predicated region
      $region49: #{transformer_forward.3} parent=5 // pred_check
        _
      $region50: #{transformer_forward.3} parent=5 // pred_check_branch
        %350 = sbr.rel (%p347) target = $region52
      $region51: #{transformer_forward.3} parent=5 // pred_region
        %s351 = ssub.s32 %s24, 1
        %s352 = sand.u32 %s37, 1
        %s353 = scalar_lea.sflag [#allocation3], %s352
        %s354 = sand.u32 %s37, 1
        %s355 = smul.addr %s354, 8
        %s356 = scalar_lea.vmem [#allocation2], %s355
        // Predicated region
        $region53: #{transformer_forward.3} parent=51 // pred_check
          %p357 = pneg %p50
        $region54: #{transformer_forward.3} parent=51 // pred_check_branch
          %359 = sbr.rel (%p357) target = $region56
        $region55: #{transformer_forward.3} parent=51 // pred_region
          %360 = dma.done %s353, 128
        $region56: #{transformer_forward.3} parent=51 // pred_fallthru
          _
        // Predicated region
        $region57: #{transformer_forward.3} parent=51 // pred_check
          %p361 = pneg %p71
        $region58: #{transformer_forward.3} parent=51 // pred_check_branch
          %363 = sbr.rel (%p361) target = $region60
        $region59: #{transformer_forward.3} parent=51 // pred_region
          %364 = dma.done [#allocation6], 128
        $region60: #{transformer_forward.3} parent=51 // pred_fallthru
          _
        // Predicated region
        $region61: #{transformer_forward.3} parent=51 // pred_check
          %p365 = pneg %p92
        $region62: #{transformer_forward.3} parent=51 // pred_check_branch
          %367 = sbr.rel (%p365) target = $region64
        $region63: #{transformer_forward.3} parent=51 // pred_region
          %368 = dma.done [#allocation6], 256
        $region64: #{transformer_forward.3} parent=51 // pred_fallthru
          _
        // Predicated region
        $region65: #{transformer_forward.3} parent=51 // pred_check
          %p369 = pneg %p113
        $region66: #{transformer_forward.3} parent=51 // pred_check_branch
          %371 = sbr.rel (%p369) target = $region68
        $region67: #{transformer_forward.3} parent=51 // pred_region
          %372 = dma.done [#allocation9], 16
        $region68: #{transformer_forward.3} parent=51 // pred_fallthru
          _
        // Predicated region
        $region69: #{transformer_forward.3} parent=51 // pred_check
          %p373 = pneg %p134
        $region70: #{transformer_forward.3} parent=51 // pred_check_branch
          %375 = sbr.rel (%p373) target = $region72
        $region71: #{transformer_forward.3} parent=51 // pred_region
          %376 = dma.done [#allocation9], 256
        $region72: #{transformer_forward.3} parent=51 // pred_fallthru
          _
        // Predicated region
        $region73: #{transformer_forward.3} parent=51 // pred_check
          %p377 = pneg %p155
        $region74: #{transformer_forward.3} parent=51 // pred_check_branch
          %379 = sbr.rel (%p377) target = $region76
        $region75: #{transformer_forward.3} parent=51 // pred_region
          %380 = dma.done [#allocation12], 16
        $region76: #{transformer_forward.3} parent=51 // pred_fallthru
          _
        // Predicated region
        $region77: #{transformer_forward.3} parent=51 // pred_check
          %p381 = pneg %p176
        $region78: #{transformer_forward.3} parent=51 // pred_check_branch
          %383 = sbr.rel (%p381) target = $region80
        $region79: #{transformer_forward.3} parent=51 // pred_region
          %384 = dma.done [#allocation12], 256
        $region80: #{transformer_forward.3} parent=51 // pred_fallthru
          _
        // Predicated region
        $region81: #{transformer_forward.3} parent=51 // pred_check
          %p385 = pneg %p197
        $region82: #{transformer_forward.3} parent=51 // pred_check_branch
          %387 = sbr.rel (%p385) target = $region84
        $region83: #{transformer_forward.3} parent=51 // pred_region
          %388 = dma.done [#allocation15], 512
        $region84: #{transformer_forward.3} parent=51 // pred_fallthru
          _
        %s389 = sand.u32 %s37, 1
        %s390 = scalar_lea.sflag [#allocation3], %s389
        %s391 = sand.u32 %s37, 1
        %s392 = smul.addr %s391, 8
        %s393 = scalar_lea.vmem [#allocation2], %s392
        %p394 = pneg %p50
        %p395 = pneg %p47
        %p396 = pneg %p71
        %p397 = pneg %p68
        %p398 = pneg %p92
        %p399 = pneg %p89
        %p400 = pneg %p113
        %p401 = pneg %p110
        %p402 = pneg %p134
        %p403 = pneg %p131
        %p404 = pneg %p155
        %p405 = pneg %p152
        %p406 = pneg %p176
        %p407 = pneg %p173
        %p408 = pneg %p197
        %p409 = pneg %p194
        %p410 = pneg %p223
        %p411 = pneg %p220
        %s412 = sand.u32 %s210, 1
        %s413 = scalar_lea.sflag [#allocation4], %s412
        %s414 = sand.u32 %s210, 1
        %s415 = smul.addr %s414, 4
        %s416 = scalar_lea.vmem [#allocation16], %s415
        %v418 = vld [vmem:[%s356] sm:$0xff]
        %v419 = vmul.f32 %v418, 5.656854
        %v420 = vld [vmem:[#allocation5] sm:$0xff]
        %v421 = vadd.f32 %v419, %v420
        %v422 = vpack.c.bf16 %v421, %v421
        %v423 = vld [vmem:[#allocation7] sm:$0xf]
        %v424 = vld [vmem:[#allocation7 + $0x4] sm:$0xf]
        %v425 = vld [vmem:[#allocation7 + $0x8] sm:$0xf]
        %v426 = vld [vmem:[#allocation7 + $0xc] sm:$0xf]
        %v427 = vld [vmem:[#allocation8] sm:$0x1]
        %v429 = vlaneseq
        %v430 = vshrl.u32 %v429, 7
        %v431 = vsub.s32 0, %v430
        %v432 = vrot.slane %v427, %v431
        %v438 = vunpack.c.l.b16 %v423
        %v439 = vunpack.c.l.b16 %v424
        %v440 = vunpack.c.l.b16 %v425
        %v441 = vunpack.c.l.b16 %v426
        %v442 = vpack.c.b16 %v439, %v438
        %v443 = vpack.c.b16 %v441, %v440
        %vm446 = vcmask 261120
        %v448 = vsel %vm446, %v422, 0
        %450 = vmatprep.subr.bf16.mxu0 0
        %451 = vmatpush1.bf16.msra.mxu0 %v442
        %452 = vmatprep.subr.bf16.mxu0 0
        %453 = vmatpush1.bf16.msra.mxu0 %v443
        %454 = vmatprep.subr.bf16.mxu0 0
        %455 = vmatpush1.bf16.msra.mxu0 0
        %456 = vmatprep.subr.bf16.mxu0 0
        %457 = vmatpush1.bf16.msra.mxu0 0
        %458 = vmatprep.subr.bf16.mxu0 0
        %459 = vmatpush1.bf16.msra.mxu0 0
        %460 = vmatprep.subr.bf16.mxu0 0
        %461 = vmatpush1.bf16.msra.mxu0 0
        %462 = vmatprep.subr.bf16.mxu0 0
        %463 = vmatpush1.bf16.msra.mxu0 0
        %464 = vmatprep.subr.bf16.mxu0 0
        %465 = vmatpush1.bf16.msra.mxu0 0
        %466 = vmatprep.subr.bf16.mxu0 0
        %467 = vmatpush1.bf16.msra.mxu0 0
        %468 = vmatprep.subr.bf16.mxu0 0
        %469 = vmatpush1.bf16.msra.mxu0 0
        %470 = vmatprep.subr.bf16.mxu0 0
        %471 = vmatpush1.bf16.msra.mxu0 0
        %472 = vmatprep.subr.bf16.mxu0 0
        %473 = vmatpush1.bf16.msra.mxu0 0
        %474 = vmatprep.subr.bf16.mxu0 0
        %475 = vmatpush1.bf16.msra.mxu0 0
        %476 = vmatprep.subr.bf16.mxu0 0
        %477 = vmatpush1.bf16.msra.mxu0 0
        %478 = vmatprep.subr.bf16.mxu0 0
        %479 = vmatpush1.bf16.msra.mxu0 0
        %480 = vmatprep.subr.bf16.mxu0 0
        %481 = vmatpush1.bf16.msra.mxu0 0
        %482 = vmatprep.mubr.bf16.mxu0 0
        %483 = vmatmul.mubr.bf16.gmra.mrb[0].mxu0 %v448
        %v484 = vpop.f32.mrb[0].mxu0
        %v485 = vadd.f32 %v432, %v484
        %v486 = vpop.f32.mrb[0].mxu0
        %v487 = vpop.f32.mrb[0].mxu0
        %v488 = vpop.f32.mrb[0].mxu0
        %489 = vdwg.mxu0
        %v490 = vpack.c.bf16 %v485, %v485
        %492 = vrot.lane.b32.xlu0 %v490, 120
        %v493 = vpop.permute.xlu0 %492
        %494 = vrot.lane.b32.xlu0 %v490, 112
        %v495 = vpop.permute.xlu0 %494
        %496 = vrot.lane.b32.xlu0 %v490, 104
        %v497 = vpop.permute.xlu0 %496
        %498 = vrot.lane.b32.xlu0 %v490, 96
        %v499 = vpop.permute.xlu0 %498
        %vm500 = vcmask 64512
        %v502 = vsel %vm500, %v490, 0
        %v505 = vsel %vm500, %v499, 0
        %507 = vmatprep.subr.bf16.mxu0 0
        %508 = vmatpush1.bf16.xpose.msra.mxu0 %v505
        %509 = vmatprep.subr.bf16.mxu0 0
        %510 = vmatpush1.bf16.xpose.msra.mxu0 0
        %511 = vmatprep.subr.bf16.mxu0 0
        %512 = vmatpush1.bf16.xpose.msra.mxu0 0
        %513 = vmatprep.subr.bf16.mxu0 0
        %514 = vmatpush1.bf16.xpose.msra.mxu0 0
        %515 = vmatprep.subr.bf16.mxu0 0
        %516 = vmatpush1.bf16.xpose.msra.mxu0 0
        %517 = vmatprep.subr.bf16.mxu0 0
        %518 = vmatpush1.bf16.xpose.msra.mxu0 0
        %519 = vmatprep.subr.bf16.mxu0 0
        %520 = vmatpush1.bf16.xpose.msra.mxu0 0
        %521 = vmatprep.subr.bf16.mxu0 0
        %522 = vmatpush1.bf16.xpose.msra.mxu0 0
        %523 = vmatprep.subr.bf16.mxu0 0
        %524 = vmatpush1.bf16.xpose.msra.mxu0 0
        %525 = vmatprep.subr.bf16.mxu0 0
        %526 = vmatpush1.bf16.xpose.msra.mxu0 0
        %527 = vmatprep.subr.bf16.mxu0 0
        %528 = vmatpush1.bf16.xpose.msra.mxu0 0
        %529 = vmatprep.subr.bf16.mxu0 0
        %530 = vmatpush1.bf16.xpose.msra.mxu0 0
        %531 = vmatprep.subr.bf16.mxu0 0
        %532 = vmatpush1.bf16.xpose.msra.mxu0 0
        %533 = vmatprep.subr.bf16.mxu0 0
        %534 = vmatpush1.bf16.xpose.msra.mxu0 0
        %535 = vmatprep.subr.bf16.mxu0 0
        %536 = vmatpush1.bf16.xpose.msra.mxu0 0
        %537 = vmatprep.subr.bf16.mxu0 0
        %538 = vmatpush1.bf16.xpose.msra.mxu0 0
        %539 = vmatprep.mubr.bf16.mxu0 0
        %540 = vmatmul.mubr.bf16.gmra.mrb[0].mxu0 %v502
        %v541 = vpop.f32.mrb[0].mxu0
        %v542 = vadd.f32 0.0, %v541
        %v543 = vpop.f32.mrb[0].mxu0
        %v544 = vpop.f32.mrb[0].mxu0
        %v545 = vpop.f32.mrb[0].mxu0
        %546 = vdwg.mxu0
        %547 = vrot.lane.b32.xlu0 %v493, 96
        %v548 = vpop.permute.xlu0 %547
        %v550 = vsel %vm500, %v493, 0
        %v553 = vsel %vm500, %v548, 0
        %555 = vmatprep.subr.bf16.mxu0 0
        %556 = vmatpush1.bf16.xpose.msra.mxu0 %v553
        %557 = vmatprep.subr.bf16.mxu0 0
        %558 = vmatpush1.bf16.xpose.msra.mxu0 0
        %559 = vmatprep.subr.bf16.mxu0 0
        %560 = vmatpush1.bf16.xpose.msra.mxu0 0
        %561 = vmatprep.subr.bf16.mxu0 0
        %562 = vmatpush1.bf16.xpose.msra.mxu0 0
        %563 = vmatprep.subr.bf16.mxu0 0
        %564 = vmatpush1.bf16.xpose.msra.mxu0 0
        %565 = vmatprep.subr.bf16.mxu0 0
        %566 = vmatpush1.bf16.xpose.msra.mxu0 0
        %567 = vmatprep.subr.bf16.mxu0 0
        %568 = vmatpush1.bf16.xpose.msra.mxu0 0
        %569 = vmatprep.subr.bf16.mxu0 0
        %570 = vmatpush1.bf16.xpose.msra.mxu0 0
        %571 = vmatprep.subr.bf16.mxu0 0
        %572 = vmatpush1.bf16.xpose.msra.mxu0 0
        %573 = vmatprep.subr.bf16.mxu0 0
        %574 = vmatpush1.bf16.xpose.msra.mxu0 0
        %575 = vmatprep.subr.bf16.mxu0 0
        %576 = vmatpush1.bf16.xpose.msra.mxu0 0
        %577 = vmatprep.subr.bf16.mxu0 0
        %578 = vmatpush1.bf16.xpose.msra.mxu0 0
        %579 = vmatprep.subr.bf16.mxu0 0
        %580 = vmatpush1.bf16.xpose.msra.mxu0 0
        %581 = vmatprep.subr.bf16.mxu0 0
        %582 = vmatpush1.bf16.xpose.msra.mxu0 0
        %583 = vmatprep.subr.bf16.mxu0 0
        %584 = vmatpush1.bf16.xpose.msra.mxu0 0
        %585 = vmatprep.subr.bf16.mxu0 0
        %586 = vmatpush1.bf16.xpose.msra.mxu0 0
        %587 = vmatprep.mubr.bf16.mxu0 0
        %588 = vmatmul.mubr.bf16.gmra.mrb[0].mxu0 %v550
        %v589 = vpop.f32.mrb[0].mxu0
        %v590 = vadd.f32 0.0, %v589
        %v591 = vpop.f32.mrb[0].mxu0
        %v592 = vpop.f32.mrb[0].mxu0
        %v593 = vpop.f32.mrb[0].mxu0
        %594 = vdwg.mxu0
        %595 = vrot.lane.b32.xlu0 %v495, 96
        %v596 = vpop.permute.xlu0 %595
        %v598 = vsel %vm500, %v495, 0
        %v601 = vsel %vm500, %v596, 0
        %603 = vmatprep.subr.bf16.mxu0 0
        %604 = vmatpush1.bf16.xpose.msra.mxu0 %v601
        %605 = vmatprep.subr.bf16.mxu0 0
        %606 = vmatpush1.bf16.xpose.msra.mxu0 0
        %607 = vmatprep.subr.bf16.mxu0 0
        %608 = vmatpush1.bf16.xpose.msra.mxu0 0
        %609 = vmatprep.subr.bf16.mxu0 0
        %610 = vmatpush1.bf16.xpose.msra.mxu0 0
        %611 = vmatprep.subr.bf16.mxu0 0
        %612 = vmatpush1.bf16.xpose.msra.mxu0 0
        %613 = vmatprep.subr.bf16.mxu0 0
        %614 = vmatpush1.bf16.xpose.msra.mxu0 0
        %615 = vmatprep.subr.bf16.mxu0 0
        %616 = vmatpush1.bf16.xpose.msra.mxu0 0
        %617 = vmatprep.subr.bf16.mxu0 0
        %618 = vmatpush1.bf16.xpose.msra.mxu0 0
        %619 = vmatprep.subr.bf16.mxu0 0
        %620 = vmatpush1.bf16.xpose.msra.mxu0 0
        %621 = vmatprep.subr.bf16.mxu0 0
        %622 = vmatpush1.bf16.xpose.msra.mxu0 0
        %623 = vmatprep.subr.bf16.mxu0 0
        %624 = vmatpush1.bf16.xpose.msra.mxu0 0
        %625 = vmatprep.subr.bf16.mxu0 0
        %626 = vmatpush1.bf16.xpose.msra.mxu0 0
        %627 = vmatprep.subr.bf16.mxu0 0
        %628 = vmatpush1.bf16.xpose.msra.mxu0 0
        %629 = vmatprep.subr.bf16.mxu0 0
        %630 = vmatpush1.bf16.xpose.msra.mxu0 0
        %631 = vmatprep.subr.bf16.mxu0 0
        %632 = vmatpush1.bf16.xpose.msra.mxu0 0
        %633 = vmatprep.subr.bf16.mxu0 0
        %634 = vmatpush1.bf16.xpose.msra.mxu0 0
        %635 = vmatprep.mubr.bf16.mxu0 0
        %636 = vmatmul.mubr.bf16.gmra.mrb[0].mxu0 %v598
        %v637 = vpop.f32.mrb[0].mxu0
        %v638 = vadd.f32 0.0, %v637
        %v639 = vpop.f32.mrb[0].mxu0
        %v640 = vpop.f32.mrb[0].mxu0
        %v641 = vpop.f32.mrb[0].mxu0
        %642 = vdwg.mxu0
        %643 = vrot.lane.b32.xlu0 %v497, 96
        %v644 = vpop.permute.xlu0 %643
        %v646 = vsel %vm500, %v497, 0
        %v649 = vsel %vm500, %v644, 0
        %651 = vmatprep.subr.bf16.mxu0 0
        %652 = vmatpush1.bf16.xpose.msra.mxu0 %v649
        %653 = vmatprep.subr.bf16.mxu0 0
        %654 = vmatpush1.bf16.xpose.msra.mxu0 0
        %655 = vmatprep.subr.bf16.mxu0 0
        %656 = vmatpush1.bf16.xpose.msra.mxu0 0
        %657 = vmatprep.subr.bf16.mxu0 0
        %658 = vmatpush1.bf16.xpose.msra.mxu0 0
        %659 = vmatprep.subr.bf16.mxu0 0
        %660 = vmatpush1.bf16.xpose.msra.mxu0 0
        %661 = vmatprep.subr.bf16.mxu0 0
        %662 = vmatpush1.bf16.xpose.msra.mxu0 0
        %663 = vmatprep.subr.bf16.mxu0 0
        %664 = vmatpush1.bf16.xpose.msra.mxu0 0
        %665 = vmatprep.subr.bf16.mxu0 0
        %666 = vmatpush1.bf16.xpose.msra.mxu0 0
        %667 = vmatprep.subr.bf16.mxu0 0
        %668 = vmatpush1.bf16.xpose.msra.mxu0 0
        %669 = vmatprep.subr.bf16.mxu0 0
        %670 = vmatpush1.bf16.xpose.msra.mxu0 0
        %671 = vmatprep.subr.bf16.mxu0 0
        %672 = vmatpush1.bf16.xpose.msra.mxu0 0
        %673 = vmatprep.subr.bf16.mxu0 0
        %674 = vmatpush1.bf16.xpose.msra.mxu0 0
        %675 = vmatprep.subr.bf16.mxu0 0
        %676 = vmatpush1.bf16.xpose.msra.mxu0 0
        %677 = vmatprep.subr.bf16.mxu0 0
        %678 = vmatpush1.bf16.xpose.msra.mxu0 0
        %679 = vmatprep.subr.bf16.mxu0 0
        %680 = vmatpush1.bf16.xpose.msra.mxu0 0
        %681 = vmatprep.subr.bf16.mxu0 0
        %682 = vmatpush1.bf16.xpose.msra.mxu0 0
        %683 = vmatprep.mubr.bf16.mxu0 0
        %684 = vmatmul.mubr.bf16.gmra.mrb[0].mxu0 %v646
        %v685 = vpop.f32.mrb[0].mxu0
        %v686 = vadd.f32 0.0, %v685
        %v687 = vpop.f32.mrb[0].mxu0
        %v688 = vpop.f32.mrb[0].mxu0
        %v689 = vpop.f32.mrb[0].mxu0
        %690 = vdwg.mxu0
        %v691 = vlaneseq
        %v692 = vshrl.u32 %v691, 7
        %v693 = vlaneseq
        %v694 = vand.u32 %v693, 127
        %vm695 = vcmp.le.s32.totalorder %v694, %v692
        %v696 = vsel %vm695, 1, 0
        %vm697 = vcmp.eq.s32.totalorder %v696, 1
        %v698 = vsel %vm697, %v542, -1e+30
        %v699 = vsel %vm697, %v590, -1e+30
        %v700 = vsel %vm697, %v638, -1e+30
        %v701 = vsel %vm697, %v686, -1e+30
        %v702 = vsel %vm500, %v698, -inf
        %703 = vmax.xlane.f32.xlu0 %v702
        %v704 = vpop.xlane.xlu0 %703
        %v705 = vsel %vm500, %v699, -inf
        %706 = vmax.xlane.f32.xlu0 %v705
        %v707 = vpop.xlane.xlu0 %706
        %v708 = vsel %vm500, %v700, -inf
        %709 = vmax.xlane.f32.xlu0 %v708
        %v710 = vpop.xlane.xlu0 %709
        %v711 = vsel %vm500, %v701, -inf
        %712 = vmax.xlane.f32.xlu0 %v711
        %v713 = vpop.xlane.xlu0 %712
        %v714 = vsub.f32 %v698, %v704
        %v715 = vsub.f32 %v699, %v707
        %v716 = vsub.f32 %v700, %v710
        %v717 = vsub.f32 %v701, %v713
        %v718 = vmul.f32 %v714, 1.442695
        %v719 = vpow.pop %v718
        %v720 = vmul.f32 %v715, 1.442695
        %v721 = vpow.pop %v720
        %v722 = vmul.f32 %v716, 1.442695
        %v723 = vpow.pop %v722
        %v724 = vmul.f32 %v717, 1.442695
        %v725 = vpow.pop %v724
        %v726 = vsel %vm500, %v719, 0.0
        %727 = vadd.xlane.f32.xlu0 %v726
        %v728 = vpop.xlane.xlu0 %727
        %v729 = vsel %vm500, %v721, 0.0
        %730 = vadd.xlane.f32.xlu0 %v729
        %v731 = vpop.xlane.xlu0 %730
        %v732 = vsel %vm500, %v723, 0.0
        %733 = vadd.xlane.f32.xlu0 %v732
        %v734 = vpop.xlane.xlu0 %733
        %v735 = vsel %vm500, %v725, 0.0
        %736 = vadd.xlane.f32.xlu0 %v735
        %v737 = vpop.xlane.xlu0 %736
        %v738 = vrcp.pop %v728
        %v739 = vrcp.pop %v731
        %v740 = vrcp.pop %v734
        %v741 = vrcp.pop %v737
        %v742 = vmul.f32 %v719, %v738
        %v743 = vmul.f32 %v721, %v739
        %v744 = vmul.f32 %v723, %v740
        %v745 = vmul.f32 %v725, %v741
        %v746 = vpack.c.bf16 %v742, %v742
        %v747 = vpack.c.bf16 %v743, %v743
        %v748 = vpack.c.bf16 %v744, %v744
        %v749 = vpack.c.bf16 %v745, %v745
        %750 = vrot.lane.b32.xlu0 %v490, 64
        %v751 = vpop.permute.xlu0 %750
        %v753 = vsel %vm500, %v746, 0
        %vm755 = vcmask 1043456
        %v757 = vsel %vm755, %v751, 0
        %759 = vmatprep.subr.bf16.mxu0 0
        %760 = vmatpush1.bf16.msra.mxu0 %v757
        %761 = vmatprep.subr.bf16.mxu0 0
        %762 = vmatpush1.bf16.msra.mxu0 0
        %763 = vmatprep.subr.bf16.mxu0 0
        %764 = vmatpush1.bf16.msra.mxu0 0
        %765 = vmatprep.subr.bf16.mxu0 0
        %766 = vmatpush1.bf16.msra.mxu0 0
        %767 = vmatprep.subr.bf16.mxu0 0
        %768 = vmatpush1.bf16.msra.mxu0 0
        %769 = vmatprep.subr.bf16.mxu0 0
        %770 = vmatpush1.bf16.msra.mxu0 0
        %771 = vmatprep.subr.bf16.mxu0 0
        %772 = vmatpush1.bf16.msra.mxu0 0
        %773 = vmatprep.subr.bf16.mxu0 0
        %774 = vmatpush1.bf16.msra.mxu0 0
        %775 = vmatprep.subr.bf16.mxu0 0
        %776 = vmatpush1.bf16.msra.mxu0 0
        %777 = vmatprep.subr.bf16.mxu0 0
        %778 = vmatpush1.bf16.msra.mxu0 0
        %779 = vmatprep.subr.bf16.mxu0 0
        %780 = vmatpush1.bf16.msra.mxu0 0
        %781 = vmatprep.subr.bf16.mxu0 0
        %782 = vmatpush1.bf16.msra.mxu0 0
        %783 = vmatprep.subr.bf16.mxu0 0
        %784 = vmatpush1.bf16.msra.mxu0 0
        %785 = vmatprep.subr.bf16.mxu0 0
        %786 = vmatpush1.bf16.msra.mxu0 0
        %787 = vmatprep.subr.bf16.mxu0 0
        %788 = vmatpush1.bf16.msra.mxu0 0
        %789 = vmatprep.subr.bf16.mxu0 0
        %790 = vmatpush1.bf16.msra.mxu0 0
        %791 = vmatprep.mubr.bf16.mxu0 0
        %792 = vmatmul.mubr.bf16.gmra.mrb[0].mxu0 %v753
        %v793 = vpop.f32.mrb[0].mxu0
        %v794 = vadd.f32 0.0, %v793
        %v795 = vpop.f32.mrb[0].mxu0
        %v796 = vpop.f32.mrb[0].mxu0
        %v797 = vpop.f32.mrb[0].mxu0
        %798 = vdwg.mxu0
        %799 = vrot.lane.b32.xlu0 %v493, 64
        %v800 = vpop.permute.xlu0 %799
        %v802 = vsel %vm500, %v747, 0
        %v805 = vsel %vm755, %v800, 0
        %807 = vmatprep.subr.bf16.mxu0 0
        %808 = vmatpush1.bf16.msra.mxu0 %v805
        %809 = vmatprep.subr.bf16.mxu0 0
        %810 = vmatpush1.bf16.msra.mxu0 0
        %811 = vmatprep.subr.bf16.mxu0 0
        %812 = vmatpush1.bf16.msra.mxu0 0
        %813 = vmatprep.subr.bf16.mxu0 0
        %814 = vmatpush1.bf16.msra.mxu0 0
        %815 = vmatprep.subr.bf16.mxu0 0
        %816 = vmatpush1.bf16.msra.mxu0 0
        %817 = vmatprep.subr.bf16.mxu0 0
        %818 = vmatpush1.bf16.msra.mxu0 0
        %819 = vmatprep.subr.bf16.mxu0 0
        %820 = vmatpush1.bf16.msra.mxu0 0
        %821 = vmatprep.subr.bf16.mxu0 0
        %822 = vmatpush1.bf16.msra.mxu0 0
        %823 = vmatprep.subr.bf16.mxu0 0
        %824 = vmatpush1.bf16.msra.mxu0 0
        %825 = vmatprep.subr.bf16.mxu0 0
        %826 = vmatpush1.bf16.msra.mxu0 0
        %827 = vmatprep.subr.bf16.mxu0 0
        %828 = vmatpush1.bf16.msra.mxu0 0
        %829 = vmatprep.subr.bf16.mxu0 0
        %830 = vmatpush1.bf16.msra.mxu0 0
        %831 = vmatprep.subr.bf16.mxu0 0
        %832 = vmatpush1.bf16.msra.mxu0 0
        %833 = vmatprep.subr.bf16.mxu0 0
        %834 = vmatpush1.bf16.msra.mxu0 0
        %835 = vmatprep.subr.bf16.mxu0 0
        %836 = vmatpush1.bf16.msra.mxu0 0
        %837 = vmatprep.subr.bf16.mxu0 0
        %838 = vmatpush1.bf16.msra.mxu0 0
        %839 = vmatprep.mubr.bf16.mxu0 0
        %840 = vmatmul.mubr.bf16.gmra.mrb[0].mxu0 %v802
        %v841 = vpop.f32.mrb[0].mxu0
        %v842 = vadd.f32 0.0, %v841
        %v843 = vpop.f32.mrb[0].mxu0
        %v844 = vpop.f32.mrb[0].mxu0
        %v845 = vpop.f32.mrb[0].mxu0
        %846 = vdwg.mxu0
        %847 = vrot.lane.b32.xlu0 %v495, 64
        %v848 = vpop.permute.xlu0 %847
        %v850 = vsel %vm500, %v748, 0
        %v853 = vsel %vm755, %v848, 0
        %855 = vmatprep.subr.bf16.mxu0 0
        %856 = vmatpush1.bf16.msra.mxu0 %v853
        %857 = vmatprep.subr.bf16.mxu0 0
        %858 = vmatpush1.bf16.msra.mxu0 0
        %859 = vmatprep.subr.bf16.mxu0 0
        %860 = vmatpush1.bf16.msra.mxu0 0
        %861 = vmatprep.subr.bf16.mxu0 0
        %862 = vmatpush1.bf16.msra.mxu0 0
        %863 = vmatprep.subr.bf16.mxu0 0
        %864 = vmatpush1.bf16.msra.mxu0 0
        %865 = vmatprep.subr.bf16.mxu0 0
        %866 = vmatpush1.bf16.msra.mxu0 0
        %867 = vmatprep.subr.bf16.mxu0 0
        %868 = vmatpush1.bf16.msra.mxu0 0
        %869 = vmatprep.subr.bf16.mxu0 0
        %870 = vmatpush1.bf16.msra.mxu0 0
        %871 = vmatprep.subr.bf16.mxu0 0
        %872 = vmatpush1.bf16.msra.mxu0 0
        %873 = vmatprep.subr.bf16.mxu0 0
        %874 = vmatpush1.bf16.msra.mxu0 0
        %875 = vmatprep.subr.bf16.mxu0 0
        %876 = vmatpush1.bf16.msra.mxu0 0
        %877 = vmatprep.subr.bf16.mxu0 0
        %878 = vmatpush1.bf16.msra.mxu0 0
        %879 = vmatprep.subr.bf16.mxu0 0
        %880 = vmatpush1.bf16.msra.mxu0 0
        %881 = vmatprep.subr.bf16.mxu0 0
        %882 = vmatpush1.bf16.msra.mxu0 0
        %883 = vmatprep.subr.bf16.mxu0 0
        %884 = vmatpush1.bf16.msra.mxu0 0
        %885 = vmatprep.subr.bf16.mxu0 0
        %886 = vmatpush1.bf16.msra.mxu0 0
        %887 = vmatprep.mubr.bf16.mxu0 0
        %888 = vmatmul.mubr.bf16.gmra.mrb[0].mxu0 %v850
        %v889 = vpop.f32.mrb[0].mxu0
        %v890 = vadd.f32 0.0, %v889
        %v891 = vpop.f32.mrb[0].mxu0
        %v892 = vpop.f32.mrb[0].mxu0
        %v893 = vpop.f32.mrb[0].mxu0
        %894 = vdwg.mxu0
        %895 = vrot.lane.b32.xlu0 %v497, 64
        %v896 = vpop.permute.xlu0 %895
        %v898 = vsel %vm500, %v749, 0
        %v901 = vsel %vm755, %v896, 0
        %903 = vmatprep.subr.bf16.mxu0 0
        %904 = vmatpush1.bf16.msra.mxu0 %v901
        %905 = vmatprep.subr.bf16.mxu0 0
        %906 = vmatpush1.bf16.msra.mxu0 0
        %907 = vmatprep.subr.bf16.mxu0 0
        %908 = vmatpush1.bf16.msra.mxu0 0
        %909 = vmatprep.subr.bf16.mxu0 0
        %910 = vmatpush1.bf16.msra.mxu0 0
        %911 = vmatprep.subr.bf16.mxu0 0
        %912 = vmatpush1.bf16.msra.mxu0 0
        %913 = vmatprep.subr.bf16.mxu0 0
        %914 = vmatpush1.bf16.msra.mxu0 0
        %915 = vmatprep.subr.bf16.mxu0 0
        %916 = vmatpush1.bf16.msra.mxu0 0
        %917 = vmatprep.subr.bf16.mxu0 0
        %918 = vmatpush1.bf16.msra.mxu0 0
        %919 = vmatprep.subr.bf16.mxu0 0
        %920 = vmatpush1.bf16.msra.mxu0 0
        %921 = vmatprep.subr.bf16.mxu0 0
        %922 = vmatpush1.bf16.msra.mxu0 0
        %923 = vmatprep.subr.bf16.mxu0 0
        %924 = vmatpush1.bf16.msra.mxu0 0
        %925 = vmatprep.subr.bf16.mxu0 0
        %926 = vmatpush1.bf16.msra.mxu0 0
        %927 = vmatprep.subr.bf16.mxu0 0
        %928 = vmatpush1.bf16.msra.mxu0 0
        %929 = vmatprep.subr.bf16.mxu0 0
        %930 = vmatpush1.bf16.msra.mxu0 0
        %931 = vmatprep.subr.bf16.mxu0 0
        %932 = vmatpush1.bf16.msra.mxu0 0
        %933 = vmatprep.subr.bf16.mxu0 0
        %934 = vmatpush1.bf16.msra.mxu0 0
        %935 = vmatprep.mubr.bf16.mxu0 0
        %936 = vmatmul.mubr.bf16.gmra.mrb[0].mxu0 %v898
        %v937 = vpop.f32.mrb[0].mxu0
        %v938 = vadd.f32 0.0, %v937
        %v939 = vpop.f32.mrb[0].mxu0
        %v940 = vpop.f32.mrb[0].mxu0
        %v941 = vpop.f32.mrb[0].mxu0
        %942 = vdwg.mxu0
        %944 = vrot.lane.b32.xlu0 %v842, 8
        %v945 = vpop.permute.xlu0 %944
        %948 = vrot.lane.b32.xlu0 %v890, 16
        %v949 = vpop.permute.xlu0 %948
        %952 = vrot.lane.b32.xlu0 %v938, 24
        %v953 = vpop.permute.xlu0 %952
        %v955 = vsel %vm500, %v794, %v945
        %vm956 = vcmask 130048
        %v957 = vsel %vm956, %v955, %v949
        %vm958 = vcmask 195584
        %v959 = vsel %vm958, %v957, %v953
        %v960 = vpack.c.bf16 %v959, %v959
        %v961 = vld [vmem:[#allocation10] sm:$0xf]
        %v962 = vld [vmem:[#allocation10 + $0x4] sm:$0xf]
        %v963 = vld [vmem:[#allocation10 + $0x8] sm:$0xf]
        %v964 = vld [vmem:[#allocation10 + $0xc] sm:$0xf]
        %v965 = vld [vmem:[#allocation11] sm:$0x1]
        %v967 = vlaneseq
        %v968 = vshrl.u32 %v967, 7
        %v969 = vsub.s32 0, %v968
        %v970 = vrot.slane %v965, %v969
        %v976 = vunpack.c.l.b16 %v961
        %v977 = vunpack.c.l.b16 %v962
        %v978 = vunpack.c.l.b16 %v963
        %v979 = vunpack.c.l.b16 %v964
        %v980 = vpack.c.b16 %v977, %v976
        %v981 = vpack.c.b16 %v979, %v978
        %v985 = vsel %vm446, %v960, 0
        %987 = vmatprep.subr.bf16.mxu0 0
        %988 = vmatpush1.bf16.msra.mxu0 %v980
        %989 = vmatprep.subr.bf16.mxu0 0
        %990 = vmatpush1.bf16.msra.mxu0 %v981
        %991 = vmatprep.subr.bf16.mxu0 0
        %992 = vmatpush1.bf16.msra.mxu0 0
        %993 = vmatprep.subr.bf16.mxu0 0
        %994 = vmatpush1.bf16.msra.mxu0 0
        %995 = vmatprep.subr.bf16.mxu0 0
        %996 = vmatpush1.bf16.msra.mxu0 0
        %997 = vmatprep.subr.bf16.mxu0 0
        %998 = vmatpush1.bf16.msra.mxu0 0
        %999 = vmatprep.subr.bf16.mxu0 0
        %1000 = vmatpush1.bf16.msra.mxu0 0
        %1001 = vmatprep.subr.bf16.mxu0 0
        %1002 = vmatpush1.bf16.msra.mxu0 0
        %1003 = vmatprep.subr.bf16.mxu0 0
        %1004 = vmatpush1.bf16.msra.mxu0 0
        %1005 = vmatprep.subr.bf16.mxu0 0
        %1006 = vmatpush1.bf16.msra.mxu0 0
        %1007 = vmatprep.subr.bf16.mxu0 0
        %1008 = vmatpush1.bf16.msra.mxu0 0
        %1009 = vmatprep.subr.bf16.mxu0 0
        %1010 = vmatpush1.bf16.msra.mxu0 0
        %1011 = vmatprep.subr.bf16.mxu0 0
        %1012 = vmatpush1.bf16.msra.mxu0 0
        %1013 = vmatprep.subr.bf16.mxu0 0
        %1014 = vmatpush1.bf16.msra.mxu0 0
        %1015 = vmatprep.subr.bf16.mxu0 0
        %1016 = vmatpush1.bf16.msra.mxu0 0
        %1017 = vmatprep.subr.bf16.mxu0 0
        %1018 = vmatpush1.bf16.msra.mxu0 0
        %1019 = vmatprep.mubr.bf16.mxu0 0
        %1020 = vmatmul.mubr.bf16.gmra.mrb[0].mxu0 %v985
        %v1021 = vpop.f32.mrb[0].mxu0
        %v1022 = vadd.f32 %v970, %v1021
        %v1023 = vpop.f32.mrb[0].mxu0
        %v1024 = vpop.f32.mrb[0].mxu0
        %v1025 = vpop.f32.mrb[0].mxu0
        %1026 = vdwg.mxu0
        %v1027 = vpack.c.bf16 %v1022, %v1022
        %v1028 = vld [vmem:[#allocation13] sm:$0xf]
        %v1029 = vld [vmem:[#allocation13 + $0x4] sm:$0xf]
        %v1030 = vld [vmem:[#allocation13 + $0x8] sm:$0xf]
        %v1031 = vld [vmem:[#allocation13 + $0xc] sm:$0xf]
        %v1036 = vunpack.c.l.b16 %v1028
        %v1037 = vunpack.c.l.b16 %v1029
        %v1038 = vunpack.c.l.b16 %v1030
        %v1039 = vunpack.c.l.b16 %v1031
        %v1040 = vpack.c.b16 %v1037, %v1036
        %v1041 = vpack.c.b16 %v1039, %v1038
        %v1045 = vsel %vm446, %v1027, 0
        %1047 = vmatprep.subr.bf16.mxu0 0
        %1048 = vmatpush1.bf16.msra.mxu0 %v1040
        %1049 = vmatprep.subr.bf16.mxu0 0
        %1050 = vmatpush1.bf16.msra.mxu0 %v1041
        %1051 = vmatprep.subr.bf16.mxu0 0
        %1052 = vmatpush1.bf16.msra.mxu0 0
        %1053 = vmatprep.subr.bf16.mxu0 0
        %1054 = vmatpush1.bf16.msra.mxu0 0
        %1055 = vmatprep.subr.bf16.mxu0 0
        %1056 = vmatpush1.bf16.msra.mxu0 0
        %1057 = vmatprep.subr.bf16.mxu0 0
        %1058 = vmatpush1.bf16.msra.mxu0 0
        %1059 = vmatprep.subr.bf16.mxu0 0
        %1060 = vmatpush1.bf16.msra.mxu0 0
        %1061 = vmatprep.subr.bf16.mxu0 0
        %1062 = vmatpush1.bf16.msra.mxu0 0
        %1063 = vmatprep.subr.bf16.mxu0 0
        %1064 = vmatpush1.bf16.msra.mxu0 0
        %1065 = vmatprep.subr.bf16.mxu0 0
        %1066 = vmatpush1.bf16.msra.mxu0 0
        %1067 = vmatprep.subr.bf16.mxu0 0
        %1068 = vmatpush1.bf16.msra.mxu0 0
        %1069 = vmatprep.subr.bf16.mxu0 0
        %1070 = vmatpush1.bf16.msra.mxu0 0
        %1071 = vmatprep.subr.bf16.mxu0 0
        %1072 = vmatpush1.bf16.msra.mxu0 0
        %1073 = vmatprep.subr.bf16.mxu0 0
        %1074 = vmatpush1.bf16.msra.mxu0 0
        %1075 = vmatprep.subr.bf16.mxu0 0
        %1076 = vmatpush1.bf16.msra.mxu0 0
        %1077 = vmatprep.subr.bf16.mxu0 0
        %1078 = vmatpush1.bf16.msra.mxu0 0
        %1079 = vmatprep.mubr.bf16.mxu0 0
        %1080 = vmatmul.mubr.bf16.gmra.mrb[0].mxu0 %v1045
        %v1081 = vpop.f32.mrb[0].mxu0
        %v1082 = vadd.f32 0.0, %v1081
        %v1083 = vpop.f32.mrb[0].mxu0
        %v1084 = vpop.f32.mrb[0].mxu0
        %v1085 = vpop.f32.mrb[0].mxu0
        %1086 = vdwg.mxu0
        %v1087 = vmax.f32 %v1082, 0.0
        %v1088 = vpack.c.bf16 %v1087, %v1087
        %v1089 = vld [vmem:[#allocation14] sm:$0xf]
        %v1090 = vld [vmem:[#allocation14 + $0x4] sm:$0xf]
        %v1091 = vld [vmem:[#allocation14 + $0x8] sm:$0xf]
        %v1092 = vld [vmem:[#allocation14 + $0xc] sm:$0xf]
        %v1093 = vld [vmem:[#allocation14 + $0x10] sm:$0xf]
        %v1094 = vld [vmem:[#allocation14 + $0x14] sm:$0xf]
        %v1095 = vld [vmem:[#allocation14 + $0x18] sm:$0xf]
        %v1096 = vld [vmem:[#allocation14 + $0x1c] sm:$0xf]
        %v1105 = vunpack.c.l.b16 %v1089
        %v1106 = vunpack.c.l.b16 %v1090
        %v1107 = vunpack.c.l.b16 %v1091
        %v1108 = vunpack.c.l.b16 %v1092
        %v1109 = vunpack.c.l.b16 %v1093
        %v1110 = vunpack.c.l.b16 %v1094
        %v1111 = vunpack.c.l.b16 %v1095
        %v1112 = vunpack.c.l.b16 %v1096
        %v1113 = vpack.c.b16 %v1106, %v1105
        %v1114 = vpack.c.b16 %v1108, %v1107
        %v1115 = vpack.c.b16 %v1110, %v1109
        %v1116 = vpack.c.b16 %v1112, %v1111
        %vm1121 = vcmask 523264
        %v1123 = vsel %vm1121, %v1088, 0
        %1125 = vmatprep.subr.bf16.mxu0 0
        %1126 = vmatpush1.bf16.msra.mxu0 %v1113
        %1127 = vmatprep.subr.bf16.mxu0 0
        %1128 = vmatpush1.bf16.msra.mxu0 %v1114
        %1129 = vmatprep.subr.bf16.mxu0 0
        %1130 = vmatpush1.bf16.msra.mxu0 %v1115
        %1131 = vmatprep.subr.bf16.mxu0 0
        %1132 = vmatpush1.bf16.msra.mxu0 %v1116
        %1133 = vmatprep.subr.bf16.mxu0 0
        %1134 = vmatpush1.bf16.msra.mxu0 0
        %1135 = vmatprep.subr.bf16.mxu0 0
        %1136 = vmatpush1.bf16.msra.mxu0 0
        %1137 = vmatprep.subr.bf16.mxu0 0
        %1138 = vmatpush1.bf16.msra.mxu0 0
        %1139 = vmatprep.subr.bf16.mxu0 0
        %1140 = vmatpush1.bf16.msra.mxu0 0
        %1141 = vmatprep.subr.bf16.mxu0 0
        %1142 = vmatpush1.bf16.msra.mxu0 0
        %1143 = vmatprep.subr.bf16.mxu0 0
        %1144 = vmatpush1.bf16.msra.mxu0 0
        %1145 = vmatprep.subr.bf16.mxu0 0
        %1146 = vmatpush1.bf16.msra.mxu0 0
        %1147 = vmatprep.subr.bf16.mxu0 0
        %1148 = vmatpush1.bf16.msra.mxu0 0
        %1149 = vmatprep.subr.bf16.mxu0 0
        %1150 = vmatpush1.bf16.msra.mxu0 0
        %1151 = vmatprep.subr.bf16.mxu0 0
        %1152 = vmatpush1.bf16.msra.mxu0 0
        %1153 = vmatprep.subr.bf16.mxu0 0
        %1154 = vmatpush1.bf16.msra.mxu0 0
        %1155 = vmatprep.subr.bf16.mxu0 0
        %1156 = vmatpush1.bf16.msra.mxu0 0
        %1157 = vmatprep.mubr.bf16.mxu0 0
        %1158 = vmatmul.mubr.bf16.gmra.mrb[0].mxu0 %v1123
        %v1159 = vpop.f32.mrb[0].mxu0
        %v1160 = vadd.f32 %v1022, %v1159
        %v1161 = vpop.f32.mrb[0].mxu0
        %v1162 = vpop.f32.mrb[0].mxu0
        %v1163 = vpop.f32.mrb[0].mxu0
        %1164 = vdwg.mxu0
        %v1165 = vsel %vm446, %v1160, 0.0
        %1166 = vadd.xlane.f32.xlu0 %v1165
        %v1167 = vpop.xlane.xlu0 %1166
        %v1168 = vrcp.pop 32.0
        %v1169 = vmul.f32 %v1167, %v1168
        %v1170 = vsub.f32 %v1160, %v1169
        %v1171 = vmul.f32 %v1170, %v1170
        %v1172 = vsel %vm446, %v1171, 0.0
        %1173 = vadd.xlane.f32.xlu0 %v1172
        %v1174 = vpop.xlane.xlu0 %1173
        %v1175 = vmul.f32 %v1174, %v1168
        %v1176 = vadd.f32 %v1175, 1e-05
        %v1177 = vrsqrt.pop %v1176
        %v1178 = vmul.f32 %v1170, %v1177
        %v1179 = vpack.c.bf16 %v1178, %v1178
        %vm1180 = vcmask 257024
        %1181 = vst.msk [vmem:[%s416] sm:$0xf] %vm1180, %v1179
        %s1182 = sand.u32 %s210, 1
        %s1183 = scalar_lea.sflag [#allocation4], %s1182
        %s1184 = sand.u32 %s210, 1
        %s1185 = smul.addr %s1184, 4
        %s1186 = scalar_lea.vmem [#allocation16], %s1185
        // Predicated region
        $region85: #{transformer_forward.3} parent=51 // pred_check
          %p1187 = pneg %p220
        $region86: #{transformer_forward.3} parent=51 // pred_check_branch
          %1189 = sbr.rel (%p1187) target = $region88
        $region87: #{transformer_forward.3} parent=51 // pred_region
          %s1191 = ssub.s32 64, 64
          %1192 = vsyncadd %s1183, %s1191
          %s1193 = smul.addr %s29, 64
          %s1194 = scalar_lea.hbm %s8, %s1193
          %s1196 = sshll.u32 %s1186, 4
          %s1197 = int_to_ptr.vmem [resolvable:$true] %s1196
          %1199 = dma.vmem_to_hbm [thread:$0]  %s1197, 64, %s1194, %s1183
        $region88: #{transformer_forward.3} parent=51 // pred_fallthru
          _
      $region52: #{transformer_forward.3} parent=5 // pred_fallthru
        _
      %p1200 = scmp.le.s32.totalorder 2, %s24
      // Predicated region
      $region89: #{transformer_forward.3} parent=5 // pred_check
        %p1201 = pneg %p1200
      $region90: #{transformer_forward.3} parent=5 // pred_check_branch
        %1203 = sbr.rel (%p1201) target = $region92
      $region91: #{transformer_forward.3} parent=5 // pred_region
        %s1204 = ssub.s32 %s24, 2
        // Predicated region
        $region93: #{transformer_forward.3} parent=91 // pred_check
          %p1205 = pneg %p226
        $region94: #{transformer_forward.3} parent=91 // pred_check_branch
          %1207 = sbr.rel (%p1205) target = $region96
        $region95: #{transformer_forward.3} parent=91 // pred_region
          %s1208 = sand.u32 %s211, 1
          %s1209 = scalar_lea.sflag [#allocation4], %s1208
          %s1210 = sand.u32 %s211, 1
          %s1211 = smul.addr %s1210, 4
          %s1212 = scalar_lea.vmem [#allocation16], %s1211
          %1213 = dma.done %s1209, 64
        $region96: #{transformer_forward.3} parent=91 // pred_fallthru
          _
      $region92: #{transformer_forward.3} parent=5 // pred_fallthru
        _
    $region6: #{transformer_forward.3} parent=1 // loop_footer
      %s28 = sadd.s32 1, %s24
    $region7: #{transformer_forward.3} parent=1 // loop_footer_branch
      %23 = sbr.rel target = $region3
    $region8: #{transformer_forward.3} parent=1 // loop_exit
      _
    %1214 = vsyncpa [#allocation3], 1
    %s1215 = scalar_lea.sflag [#allocation3], 1
    %1216 = vsyncpa %s1215, 1
    %1217 = vsyncpa [#allocation6], 1
    %1218 = vsyncpa [#allocation9], 1
    %1219 = vsyncpa [#allocation12], 1
    %1220 = vsyncpa [#allocation15], 1
    %1221 = vsyncpa [#allocation4], 1
    %s1222 = scalar_lea.sflag [#allocation4], 1
    %1223 = vsyncpa %s1222, 1

// kernel: transformer_forward.4
$region0: #{transformer_forward.4}
  #allocation0 [shape = 'u32[]', space=smem, size = 0x4, offset = 0x4, fixed_abs, tag = 'smem constant byte address 0x4 - core index']
  #allocation1 [shape = 'u32[144,128]{1,0:T(1,128)}', space=vmem, size = 0x12000, scoped, tag = 'internal scratch']
  %s0 = inlined_call_operand.hbm [shape: bf16[2,8,32], index: 0, kind: input, shape index: {}]
  %s1 = inlined_call_operand.hbm [shape: bf16[32,96], index: 1, kind: input, shape index: {}]
  %s2 = inlined_call_operand.hbm [shape: f32[1,96], index: 2, kind: input, shape index: {}]
  %s3 = inlined_call_operand.hbm [shape: bf16[32,32], index: 3, kind: input, shape index: {}]
  %s4 = inlined_call_operand.hbm [shape: f32[1,32], index: 4, kind: input, shape index: {}]
  %s5 = inlined_call_operand.hbm [shape: bf16[32,64], index: 5, kind: input, shape index: {}]
  %s6 = inlined_call_operand.hbm [shape: bf16[64,32], index: 6, kind: input, shape index: {}]
  %s7 = inlined_call_operand.hbm [shape: bf16[2,8,32], index: 7, kind: output, shape index: {0}]
  %s8 = inlined_call_operand.hbm [shape: f32[2,8,8], index: 8, kind: output, shape index: {1}]
  %9 = xla_tuple %s7, %s8
  %s10 = sld [smem:[#allocation0]]
  $region97: #{transformer_forward.4} parent=0
    _
  %s12 = ssub.s32 1, %s10
  %s13 = scalar_select 0, %s12, %s10
  $region1: #{transformer_forward.4} parent=0
    #allocation2 [shape = 'u8[4096]{0}', space=vmem, size = 0x1000, scoped, tag = 'input window, operand 0']
    #allocation3 [shape = 's32[2]{0}', space=sflag, size = 0x8, scoped, tag = 'scoped memory for transformer_forward.4']
    #allocation4 [shape = 's32[2]{0}', space=sflag, size = 0x8, scoped, tag = 'scoped memory for transformer_forward.4']
    #allocation5 [shape = 'u8[8192]{0}', space=vmem, size = 0x2000, scoped, tag = 'input window, operand 1, single buffered']
    #allocation6 [shape = 's32[1]{0}', space=sflag, size = 0x4, scoped, tag = 'scoped memory for transformer_forward.4']
    #allocation7 [shape = 'u8[512]{0}', space=vmem, size = 0x400, scoped, tag = 'input window, operand 2, single buffered']
    #allocation8 [shape = 'u8[8192]{0}', space=vmem, size = 0x2000, scoped, tag = 'input window, operand 3, single buffered']
    #allocation9 [shape = 's32[1]{0}', space=sflag, size = 0x4, scoped, tag = 'scoped memory for transformer_forward.4']
    #allocation10 [shape = 'u8[512]{0}', space=vmem, size = 0x400, scoped, tag = 'input window, operand 4, single buffered']
    #allocation11 [shape = 'u8[8192]{0}', space=vmem, size = 0x2000, scoped, tag = 'input window, operand 5, single buffered']
    #allocation12 [shape = 's32[1]{0}', space=sflag, size = 0x4, scoped, tag = 'scoped memory for transformer_forward.4']
    #allocation13 [shape = 'u8[16384]{0}', space=vmem, size = 0x4000, scoped, tag = 'input window, operand 6, single buffered']
    #allocation14 [shape = 'u8[4096]{0}', space=vmem, size = 0x1000, scoped, tag = 'output window, operand 0']
    #allocation15 [shape = 'u8[8192]{0}', space=vmem, size = 0x2000, scoped, tag = 'output window, operand 1']
    #allocation16 [shape = 's32[2]{0}', space=sflag, size = 0x8, scoped, tag = 'scoped memory for transformer_forward.4']
    %14 = vsyncpa [#allocation3], 0
    %s15 = scalar_lea.sflag [#allocation3], 1
    %16 = vsyncpa %s15, 0
    %17 = vsyncpa [#allocation6], 0
    %18 = vsyncpa [#allocation9], 0
    %19 = vsyncpa [#allocation12], 0
    %20 = vsyncpa [#allocation4], 0
    %s21 = scalar_lea.sflag [#allocation4], 1
    %22 = vsyncpa %s21, 0
    %23 = vsyncpa [#allocation16], 0
    %s24 = scalar_lea.sflag [#allocation16], 1
    %25 = vsyncpa %s24, 0
    loop: start=0, step=1, limit=4
    $region2: #{transformer_forward.4} parent=1 // loop_pre_header
      _
    $region3: #{transformer_forward.4} parent=1 // loop_header
      %s27 = sphi 0, %s31
      %p28 = scmp.ge.s32.totalorder %s27, 4
      %s37 = sphi 0, %s39
      %s40 = sphi 0, %s37
      %s41 = sphi 0, %s40
      %s57 = sphi 0, %s41
      %s61 = sphi 0, %s61
      %s63 = sphi 0, %s61
      %s64 = sphi 0, %s63
      %s78 = sphi 0, %s64
      %s82 = sphi 0, %s82
      %s84 = sphi 0, %s82
      %s85 = sphi 0, %s84
      %s99 = sphi 0, %s85
      %s103 = sphi 0, %s103
      %s105 = sphi 0, %s103
      %s106 = sphi 0, %s105
      %s120 = sphi 0, %s106
      %s124 = sphi 0, %s124
      %s126 = sphi 0, %s124
      %s127 = sphi 0, %s126
      %s141 = sphi 0, %s127
      %s145 = sphi 0, %s145
      %s147 = sphi 0, %s145
      %s148 = sphi 0, %s147
      %s162 = sphi 0, %s148
      %s166 = sphi 0, %s166
      %s168 = sphi 0, %s166
      %s169 = sphi 0, %s168
      %s183 = sphi 0, %s169
      %s189 = sphi 0, %s191
      %s192 = sphi 0, %s189
      %s193 = sphi 0, %s192
      %s209 = sphi 0, %s193
      %s215 = sphi 0, %s217
      %s218 = sphi 0, %s215
      %s219 = sphi 0, %s218
      %s235 = sphi 0, %s219
    $region4: #{transformer_forward.4} parent=1 // loop_header_branch
      %30 = sbr.rel (%p28) target = $region8
    $region5: #{transformer_forward.4} parent=1 // loop_body
      %s32 = ssub.s32 %s27, 1
      %s33 = ssub.s32 %s27, 2
      %s34 = sadd.s32 %s27, 1
      %s35 = ssub.s32 %s27, %s34
      %p36 = scmp.eq.s32.totalorder %s35, 0
      %s38 = sadd.s32 %s37, 1
      %s39 = scalar_select %p36, %s37, %s38
      %p42 = pneg %p36
      %p43 = scmp.eq.s32.totalorder %s27, 1
      %p44 = por %p42, %p43
      %p45 = scmp.ne.s32.totalorder %s37, %s40
      %p46 = scmp.eq.s32.totalorder %s27, 0
      %p47 = por %p45, %p46
      %p48 = scmp.ne.s32.totalorder %s37, %s40
      %p49 = scmp.eq.s32.totalorder %s32, 1
      %p50 = por %p48, %p49
      %p51 = scmp.ne.s32.totalorder %s40, %s41
      %p52 = scmp.eq.s32.totalorder %s32, 0
      %p53 = por %p51, %p52
      %p54 = scmp.ne.s32.totalorder %s40, %s41
      %p55 = scmp.eq.s32.totalorder %s33, 1
      %p56 = por %p54, %p55
      %p58 = scmp.ne.s32.totalorder %s41, %s57
      %p59 = scmp.eq.s32.totalorder %s33, 0
      %p60 = por %p58, %p59
      %s62 = sadd.s32 %s61, 1
      %p65 = scmp.eq.s32.totalorder %s27, 1
      %p66 = scmp.ne.s32.totalorder %s61, %s63
      %p67 = scmp.eq.s32.totalorder %s27, 0
      %p68 = por %p66, %p67
      %p69 = scmp.ne.s32.totalorder %s61, %s63
      %p70 = scmp.eq.s32.totalorder %s32, 1
      %p71 = por %p69, %p70
      %p72 = scmp.ne.s32.totalorder %s63, %s64
      %p73 = scmp.eq.s32.totalorder %s32, 0
      %p74 = por %p72, %p73
      %p75 = scmp.ne.s32.totalorder %s63, %s64
      %p76 = scmp.eq.s32.totalorder %s33, 1
      %p77 = por %p75, %p76
      %p79 = scmp.ne.s32.totalorder %s64, %s78
      %p80 = scmp.eq.s32.totalorder %s33, 0
      %p81 = por %p79, %p80
      %s83 = sadd.s32 %s82, 1
      %p86 = scmp.eq.s32.totalorder %s27, 1
      %p87 = scmp.ne.s32.totalorder %s82, %s84
      %p88 = scmp.eq.s32.totalorder %s27, 0
      %p89 = por %p87, %p88
      %p90 = scmp.ne.s32.totalorder %s82, %s84
      %p91 = scmp.eq.s32.totalorder %s32, 1
      %p92 = por %p90, %p91
      %p93 = scmp.ne.s32.totalorder %s84, %s85
      %p94 = scmp.eq.s32.totalorder %s32, 0
      %p95 = por %p93, %p94
      %p96 = scmp.ne.s32.totalorder %s84, %s85
      %p97 = scmp.eq.s32.totalorder %s33, 1
      %p98 = por %p96, %p97
      %p100 = scmp.ne.s32.totalorder %s85, %s99
      %p101 = scmp.eq.s32.totalorder %s33, 0
      %p102 = por %p100, %p101
      %s104 = sadd.s32 %s103, 1
      %p107 = scmp.eq.s32.totalorder %s27, 1
      %p108 = scmp.ne.s32.totalorder %s103, %s105
      %p109 = scmp.eq.s32.totalorder %s27, 0
      %p110 = por %p108, %p109
      %p111 = scmp.ne.s32.totalorder %s103, %s105
      %p112 = scmp.eq.s32.totalorder %s32, 1
      %p113 = por %p111, %p112
      %p114 = scmp.ne.s32.totalorder %s105, %s106
      %p115 = scmp.eq.s32.totalorder %s32, 0
      %p116 = por %p114, %p115
      %p117 = scmp.ne.s32.totalorder %s105, %s106
      %p118 = scmp.eq.s32.totalorder %s33, 1
      %p119 = por %p117, %p118
      %p121 = scmp.ne.s32.totalorder %s106, %s120
      %p122 = scmp.eq.s32.totalorder %s33, 0
      %p123 = por %p121, %p122
      %s125 = sadd.s32 %s124, 1
      %p128 = scmp.eq.s32.totalorder %s27, 1
      %p129 = scmp.ne.s32.totalorder %s124, %s126
      %p130 = scmp.eq.s32.totalorder %s27, 0
      %p131 = por %p129, %p130
      %p132 = scmp.ne.s32.totalorder %s124, %s126
      %p133 = scmp.eq.s32.totalorder %s32, 1
      %p134 = por %p132, %p133
      %p135 = scmp.ne.s32.totalorder %s126, %s127
      %p136 = scmp.eq.s32.totalorder %s32, 0
      %p137 = por %p135, %p136
      %p138 = scmp.ne.s32.totalorder %s126, %s127
      %p139 = scmp.eq.s32.totalorder %s33, 1
      %p140 = por %p138, %p139
      %p142 = scmp.ne.s32.totalorder %s127, %s141
      %p143 = scmp.eq.s32.totalorder %s33, 0
      %p144 = por %p142, %p143
      %s146 = sadd.s32 %s145, 1
      %p149 = scmp.eq.s32.totalorder %s27, 1
      %p150 = scmp.ne.s32.totalorder %s145, %s147
      %p151 = scmp.eq.s32.totalorder %s27, 0
      %p152 = por %p150, %p151
      %p153 = scmp.ne.s32.totalorder %s145, %s147
      %p154 = scmp.eq.s32.totalorder %s32, 1
      %p155 = por %p153, %p154
      %p156 = scmp.ne.s32.totalorder %s147, %s148
      %p157 = scmp.eq.s32.totalorder %s32, 0
      %p158 = por %p156, %p157
      %p159 = scmp.ne.s32.totalorder %s147, %s148
      %p160 = scmp.eq.s32.totalorder %s33, 1
      %p161 = por %p159, %p160
      %p163 = scmp.ne.s32.totalorder %s148, %s162
      %p164 = scmp.eq.s32.totalorder %s33, 0
      %p165 = por %p163, %p164
      %s167 = sadd.s32 %s166, 1
      %p170 = scmp.eq.s32.totalorder %s27, 1
      %p171 = scmp.ne.s32.totalorder %s166, %s168
      %p172 = scmp.eq.s32.totalorder %s27, 0
      %p173 = por %p171, %p172
      %p174 = scmp.ne.s32.totalorder %s166, %s168
      %p175 = scmp.eq.s32.totalorder %s32, 1
      %p176 = por %p174, %p175
      %p177 = scmp.ne.s32.totalorder %s168, %s169
      %p178 = scmp.eq.s32.totalorder %s32, 0
      %p179 = por %p177, %p178
      %p180 = scmp.ne.s32.totalorder %s168, %s169
      %p181 = scmp.eq.s32.totalorder %s33, 1
      %p182 = por %p180, %p181
      %p184 = scmp.ne.s32.totalorder %s169, %s183
      %p185 = scmp.eq.s32.totalorder %s33, 0
      %p186 = por %p184, %p185
      %s187 = ssub.s32 %s27, %s34
      %p188 = scmp.eq.s32.totalorder %s187, 0
      %s190 = sadd.s32 %s189, 1
      %s191 = scalar_select %p188, %s189, %s190
      %p194 = pneg %p188
      %p195 = scmp.eq.s32.totalorder %s27, 1
      %p196 = por %p194, %p195
      %p197 = scmp.ne.s32.totalorder %s189, %s192
      %p198 = scmp.eq.s32.totalorder %s27, 0
      %p199 = por %p197, %p198
      %p200 = scmp.ne.s32.totalorder %s189, %s192
      %p201 = scmp.eq.s32.totalorder %s32, 1
      %p202 = por %p200, %p201
      %p203 = scmp.ne.s32.totalorder %s192, %s193
      %p204 = scmp.eq.s32.totalorder %s32, 0
      %p205 = por %p203, %p204
      %p206 = scmp.ne.s32.totalorder %s192, %s193
      %p207 = scmp.eq.s32.totalorder %s33, 1
      %p208 = por %p206, %p207
      %p210 = scmp.ne.s32.totalorder %s193, %s209
      %p211 = scmp.eq.s32.totalorder %s33, 0
      %p212 = por %p210, %p211
      %s213 = ssub.s32 %s27, %s34
      %p214 = scmp.eq.s32.totalorder %s213, 0
      %s216 = sadd.s32 %s215, 1
      %s217 = scalar_select %p214, %s215, %s216
      %p220 = pneg %p214
      %p221 = scmp.eq.s32.totalorder %s27, 1
      %p222 = por %p220, %p221
      %p223 = scmp.ne.s32.totalorder %s215, %s218
      %p224 = scmp.eq.s32.totalorder %s27, 0
      %p225 = por %p223, %p224
      %p226 = scmp.ne.s32.totalorder %s215, %s218
      %p227 = scmp.eq.s32.totalorder %s32, 1
      %p228 = por %p226, %p227
      %p229 = scmp.ne.s32.totalorder %s218, %s219
      %p230 = scmp.eq.s32.totalorder %s32, 0
      %p231 = por %p229, %p230
      %p232 = scmp.ne.s32.totalorder %s218, %s219
      %p233 = scmp.eq.s32.totalorder %s33, 1
      %p234 = por %p232, %p233
      %p236 = scmp.ne.s32.totalorder %s219, %s235
      %p237 = scmp.eq.s32.totalorder %s33, 0
      %p238 = por %p236, %p237
      %p239 = scmp.le.s32.totalorder 1, %s27
      %p240 = scmp.lt.s32.totalorder %s27, 3
      %p241 = pnand %p239, %p240
      %p242 = pneg %p241
      // Predicated region
      $region9: #{transformer_forward.4} parent=5 // pred_check
        _
      $region10: #{transformer_forward.4} parent=5 // pred_check_branch
        %244 = sbr.rel (%p241) target = $region12
      $region11: #{transformer_forward.4} parent=5 // pred_region
        %s245 = ssub.s32 %s27, 1
        // Predicated region
        $region13: #{transformer_forward.4} parent=11 // pred_check
          %p246 = pneg %p74
        $region14: #{transformer_forward.4} parent=11 // pred_check_branch
          %248 = sbr.rel (%p246) target = $region16
        $region15: #{transformer_forward.4} parent=11 // pred_region
          %s250 = ssub.s32 256, 256
          %251 = vsyncadd [#allocation6], %s250
          %s252 = sshll.u32 [#allocation5], 4
          %s253 = int_to_ptr.vmem [resolvable:$true] %s252
          %258 = dma.hbm_to_vmem [thread:$0]  %s1, 256, %s253, [#allocation6], 64, 64, 4
        $region16: #{transformer_forward.4} parent=11 // pred_fallthru
          _
        // Predicated region
        $region17: #{transformer_forward.4} parent=11 // pred_check
          %p259 = pneg %p95
        $region18: #{transformer_forward.4} parent=11 // pred_check_branch
          %261 = sbr.rel (%p259) target = $region20
        $region19: #{transformer_forward.4} parent=11 // pred_region
          %s263 = ssub.s32 16, 16
          %264 = vsyncadd [#allocation6], %s263
          %s266 = sshll.u32 [#allocation7], 4
          %s267 = int_to_ptr.vmem [resolvable:$true] %s266
          %269 = dma.hbm_to_vmem [thread:$0]  %s2, 16, %s267, [#allocation6]
        $region20: #{transformer_forward.4} parent=11 // pred_fallthru
          _
        // Predicated region
        $region21: #{transformer_forward.4} parent=11 // pred_check
          %p270 = pneg %p116
        $region22: #{transformer_forward.4} parent=11 // pred_check_branch
          %272 = sbr.rel (%p270) target = $region24
        $region23: #{transformer_forward.4} parent=11 // pred_region
          %s274 = ssub.s32 256, 256
          %275 = vsyncadd [#allocation9], %s274
          %s276 = sshll.u32 [#allocation8], 4
          %s277 = int_to_ptr.vmem [resolvable:$true] %s276
          %282 = dma.hbm_to_vmem [thread:$0]  %s3, 256, %s277, [#allocation9], 64, 64, 4
        $region24: #{transformer_forward.4} parent=11 // pred_fallthru
          _
        // Predicated region
        $region25: #{transformer_forward.4} parent=11 // pred_check
          %p283 = pneg %p137
        $region26: #{transformer_forward.4} parent=11 // pred_check_branch
          %285 = sbr.rel (%p283) target = $region28
        $region27: #{transformer_forward.4} parent=11 // pred_region
          %s287 = ssub.s32 16, 16
          %288 = vsyncadd [#allocation9], %s287
          %s290 = sshll.u32 [#allocation10], 4
          %s291 = int_to_ptr.vmem [resolvable:$true] %s290
          %293 = dma.hbm_to_vmem [thread:$0]  %s4, 16, %s291, [#allocation9]
        $region28: #{transformer_forward.4} parent=11 // pred_fallthru
          _
        // Predicated region
        $region29: #{transformer_forward.4} parent=11 // pred_check
          %p294 = pneg %p158
        $region30: #{transformer_forward.4} parent=11 // pred_check_branch
          %296 = sbr.rel (%p294) target = $region32
        $region31: #{transformer_forward.4} parent=11 // pred_region
          %s298 = ssub.s32 256, 256
          %299 = vsyncadd [#allocation12], %s298
          %s300 = sshll.u32 [#allocation11], 4
          %s301 = int_to_ptr.vmem [resolvable:$true] %s300
          %306 = dma.hbm_to_vmem [thread:$0]  %s5, 256, %s301, [#allocation12], 64, 64, 4
        $region32: #{transformer_forward.4} parent=11 // pred_fallthru
          _
        // Predicated region
        $region33: #{transformer_forward.4} parent=11 // pred_check
          %p307 = pneg %p179
        $region34: #{transformer_forward.4} parent=11 // pred_check_branch
          %309 = sbr.rel (%p307) target = $region36
        $region35: #{transformer_forward.4} parent=11 // pred_region
          %s311 = ssub.s32 512, 512
          %312 = vsyncadd [#allocation12], %s311
          %s313 = sshll.u32 [#allocation13], 4
          %s314 = int_to_ptr.vmem [resolvable:$true] %s313
          %319 = dma.hbm_to_vmem [thread:$0]  %s6, 512, %s314, [#allocation12], 64, 64, 4
        $region36: #{transformer_forward.4} parent=11 // pred_fallthru
          _
      $region12: #{transformer_forward.4} parent=5 // pred_fallthru
        _
      %p320 = scmp.lt.s32.totalorder %s27, 2
      // Predicated region
      $region37: #{transformer_forward.4} parent=5 // pred_check
        %p321 = pneg %p320
      $region38: #{transformer_forward.4} parent=5 // pred_check_branch
        %323 = sbr.rel (%p321) target = $region40
      $region39: #{transformer_forward.4} parent=5 // pred_region
        // Predicated region
        $region41: #{transformer_forward.4} parent=39 // pred_check
          %p324 = pneg %p47
        $region42: #{transformer_forward.4} parent=39 // pred_check_branch
          %326 = sbr.rel (%p324) target = $region44
        $region43: #{transformer_forward.4} parent=39 // pred_region
          %s327 = sand.u32 %s37, 1
          %s328 = scalar_lea.sflag [#allocation3], %s327
          %s329 = sand.u32 %s37, 1
          %s330 = smul.addr %s329, 4
          %s331 = scalar_lea.vmem [#allocation2], %s330
          %s333 = ssub.s32 64, 64
          %334 = vsyncadd %s328, %s333
          %s335 = smul.addr %s27, 64
          %s336 = scalar_lea.hbm %s0, %s335
          %s338 = sshll.u32 %s331, 4
          %s339 = int_to_ptr.vmem [resolvable:$true] %s338
          %341 = dma.hbm_to_vmem [thread:$0]  %s336, 64, %s339, %s328
        $region44: #{transformer_forward.4} parent=39 // pred_fallthru
          _
      $region40: #{transformer_forward.4} parent=5 // pred_fallthru
        _
      %p342 = scmp.le.s32.totalorder 1, %s27
      %p343 = scmp.lt.s32.totalorder %s27, 3
      %p344 = pnand %p342, %p343
      %p345 = pneg %p344
      // Predicated region
      $region45: #{transformer_forward.4} parent=5 // pred_check
        _
      $region46: #{transformer_forward.4} parent=5 // pred_check_branch
        %347 = sbr.rel (%p344) target = $region48
      $region47: #{transformer_forward.4} parent=5 // pred_region
        %s348 = ssub.s32 %s27, 1
        %s349 = sand.u32 %s40, 1
        %s350 = scalar_lea.sflag [#allocation3], %s349
        %s351 = sand.u32 %s40, 1
        %s352 = smul.addr %s351, 4
        %s353 = scalar_lea.vmem [#allocation2], %s352
        // Predicated region
        $region49: #{transformer_forward.4} parent=47 // pred_check
          %p354 = pneg %p53
        $region50: #{transformer_forward.4} parent=47 // pred_check_branch
          %356 = sbr.rel (%p354) target = $region52
        $region51: #{transformer_forward.4} parent=47 // pred_region
          %357 = dma.done %s350, 64
        $region52: #{transformer_forward.4} parent=47 // pred_fallthru
          _
        // Predicated region
        $region53: #{transformer_forward.4} parent=47 // pred_check
          %p358 = pneg %p74
        $region54: #{transformer_forward.4} parent=47 // pred_check_branch
          %360 = sbr.rel (%p358) target = $region56
        $region55: #{transformer_forward.4} parent=47 // pred_region
          %361 = dma.done [#allocation6], 256
        $region56: #{transformer_forward.4} parent=47 // pred_fallthru
          _
        // Predicated region
        $region57: #{transformer_forward.4} parent=47 // pred_check
          %p362 = pneg %p95
        $region58: #{transformer_forward.4} parent=47 // pred_check_branch
          %364 = sbr.rel (%p362) target = $region60
        $region59: #{transformer_forward.4} parent=47 // pred_region
          %365 = dma.done [#allocation6], 16
        $region60: #{transformer_forward.4} parent=47 // pred_fallthru
          _
        // Predicated region
        $region61: #{transformer_forward.4} parent=47 // pred_check
          %p366 = pneg %p116
        $region62: #{transformer_forward.4} parent=47 // pred_check_branch
          %368 = sbr.rel (%p366) target = $region64
        $region63: #{transformer_forward.4} parent=47 // pred_region
          %369 = dma.done [#allocation9], 256
        $region64: #{transformer_forward.4} parent=47 // pred_fallthru
          _
        // Predicated region
        $region65: #{transformer_forward.4} parent=47 // pred_check
          %p370 = pneg %p137
        $region66: #{transformer_forward.4} parent=47 // pred_check_branch
          %372 = sbr.rel (%p370) target = $region68
        $region67: #{transformer_forward.4} parent=47 // pred_region
          %373 = dma.done [#allocation9], 16
        $region68: #{transformer_forward.4} parent=47 // pred_fallthru
          _
        // Predicated region
        $region69: #{transformer_forward.4} parent=47 // pred_check
          %p374 = pneg %p158
        $region70: #{transformer_forward.4} parent=47 // pred_check_branch
          %376 = sbr.rel (%p374) target = $region72
        $region71: #{transformer_forward.4} parent=47 // pred_region
          %377 = dma.done [#allocation12], 256
        $region72: #{transformer_forward.4} parent=47 // pred_fallthru
          _
        // Predicated region
        $region73: #{transformer_forward.4} parent=47 // pred_check
          %p378 = pneg %p179
        $region74: #{transformer_forward.4} parent=47 // pred_check_branch
          %380 = sbr.rel (%p378) target = $region76
        $region75: #{transformer_forward.4} parent=47 // pred_region
          %381 = dma.done [#allocation12], 512
        $region76: #{transformer_forward.4} parent=47 // pred_fallthru
          _
        %s382 = sand.u32 %s40, 1
        %s383 = scalar_lea.sflag [#allocation3], %s382
        %s384 = sand.u32 %s40, 1
        %s385 = smul.addr %s384, 4
        %s386 = scalar_lea.vmem [#allocation2], %s385
        %p387 = pneg %p53
        %p388 = pneg %p50
        %p389 = pneg %p74
        %p390 = pneg %p71
        %p391 = pneg %p95
        %p392 = pneg %p92
        %p393 = pneg %p116
        %p394 = pneg %p113
        %p395 = pneg %p137
        %p396 = pneg %p134
        %p397 = pneg %p158
        %p398 = pneg %p155
        %p399 = pneg %p179
        %p400 = pneg %p176
        %p401 = pneg %p205
        %p402 = pneg %p202
        %s403 = sand.u32 %s192, 1
        %s404 = scalar_lea.sflag [#allocation4], %s403
        %s405 = sand.u32 %s192, 1
        %s406 = smul.addr %s405, 4
        %s407 = scalar_lea.vmem [#allocation14], %s406
        %p408 = pneg %p231
        %p409 = pneg %p228
        %s410 = sand.u32 %s218, 1
        %s411 = scalar_lea.sflag [#allocation16], %s410
        %s412 = sand.u32 %s218, 1
        %s413 = smul.addr %s412, 8
        %s414 = scalar_lea.vmem [#allocation15], %s413
        %v416 = vld [vmem:[%s353] sm:$0xf]
        %v417 = vld [vmem:[#allocation5] sm:$0xf]
        %v418 = vld [vmem:[#allocation5 + $0x4] sm:$0xf]
        %v419 = vld [vmem:[#allocation5 + $0x8] sm:$0xf]
        %v420 = vld [vmem:[#allocation5 + $0xc] sm:$0xf]
        %v421 = vld [vmem:[#allocation7] sm:$0x1]
        %v423 = vlaneseq
        %v424 = vshrl.u32 %v423, 7
        %v425 = vsub.s32 0, %v424
        %v426 = vrot.slane %v421, %v425
        %v432 = vunpack.c.l.b16 %v417
        %v433 = vunpack.c.l.b16 %v418
        %v434 = vunpack.c.l.b16 %v419
        %v435 = vunpack.c.l.b16 %v420
        %v436 = vpack.c.b16 %v433, %v432
        %v437 = vpack.c.b16 %v435, %v434
        %vm440 = vcmask 261120
        %v442 = vsel %vm440, %v416, 0
        %444 = vmatprep.subr.bf16.mxu0 0
        %445 = vmatpush1.bf16.msra.mxu0 %v436
        %446 = vmatprep.subr.bf16.mxu0 0
        %447 = vmatpush1.bf16.msra.mxu0 %v437
        %448 = vmatprep.subr.bf16.mxu0 0
        %449 = vmatpush1.bf16.msra.mxu0 0
        %450 = vmatprep.subr.bf16.mxu0 0
        %451 = vmatpush1.bf16.msra.mxu0 0
        %452 = vmatprep.subr.bf16.mxu0 0
        %453 = vmatpush1.bf16.msra.mxu0 0
        %454 = vmatprep.subr.bf16.mxu0 0
        %455 = vmatpush1.bf16.msra.mxu0 0
        %456 = vmatprep.subr.bf16.mxu0 0
        %457 = vmatpush1.bf16.msra.mxu0 0
        %458 = vmatprep.subr.bf16.mxu0 0
        %459 = vmatpush1.bf16.msra.mxu0 0
        %460 = vmatprep.subr.bf16.mxu0 0
        %461 = vmatpush1.bf16.msra.mxu0 0
        %462 = vmatprep.subr.bf16.mxu0 0
        %463 = vmatpush1.bf16.msra.mxu0 0
        %464 = vmatprep.subr.bf16.mxu0 0
        %465 = vmatpush1.bf16.msra.mxu0 0
        %466 = vmatprep.subr.bf16.mxu0 0
        %467 = vmatpush1.bf16.msra.mxu0 0
        %468 = vmatprep.subr.bf16.mxu0 0
        %469 = vmatpush1.bf16.msra.mxu0 0
        %470 = vmatprep.subr.bf16.mxu0 0
        %471 = vmatpush1.bf16.msra.mxu0 0
        %472 = vmatprep.subr.bf16.mxu0 0
        %473 = vmatpush1.bf16.msra.mxu0 0
        %474 = vmatprep.subr.bf16.mxu0 0
        %475 = vmatpush1.bf16.msra.mxu0 0
        %476 = vmatprep.mubr.bf16.mxu0 0
        %477 = vmatmul.mubr.bf16.gmra.mrb[0].mxu0 %v442
        %v478 = vpop.f32.mrb[0].mxu0
        %v479 = vadd.f32 %v426, %v478
        %v480 = vpop.f32.mrb[0].mxu0
        %v481 = vpop.f32.mrb[0].mxu0
        %v482 = vpop.f32.mrb[0].mxu0
        %483 = vdwg.mxu0
        %v484 = vpack.c.bf16 %v479, %v479
        %486 = vrot.lane.b32.xlu0 %v484, 120
        %v487 = vpop.permute.xlu0 %486
        %488 = vrot.lane.b32.xlu0 %v484, 112
        %v489 = vpop.permute.xlu0 %488
        %490 = vrot.lane.b32.xlu0 %v484, 104
        %v491 = vpop.permute.xlu0 %490
        %492 = vrot.lane.b32.xlu0 %v484, 96
        %v493 = vpop.permute.xlu0 %492
        %vm494 = vcmask 64512
        %v496 = vsel %vm494, %v484, 0
        %v499 = vsel %vm494, %v493, 0
        %501 = vmatprep.subr.bf16.mxu0 0
        %502 = vmatpush1.bf16.xpose.msra.mxu0 %v499
        %503 = vmatprep.subr.bf16.mxu0 0
        %504 = vmatpush1.bf16.xpose.msra.mxu0 0
        %505 = vmatprep.subr.bf16.mxu0 0
        %506 = vmatpush1.bf16.xpose.msra.mxu0 0
        %507 = vmatprep.subr.bf16.mxu0 0
        %508 = vmatpush1.bf16.xpose.msra.mxu0 0
        %509 = vmatprep.subr.bf16.mxu0 0
        %510 = vmatpush1.bf16.xpose.msra.mxu0 0
        %511 = vmatprep.subr.bf16.mxu0 0
        %512 = vmatpush1.bf16.xpose.msra.mxu0 0
        %513 = vmatprep.subr.bf16.mxu0 0
        %514 = vmatpush1.bf16.xpose.msra.mxu0 0
        %515 = vmatprep.subr.bf16.mxu0 0
        %516 = vmatpush1.bf16.xpose.msra.mxu0 0
        %517 = vmatprep.subr.bf16.mxu0 0
        %518 = vmatpush1.bf16.xpose.msra.mxu0 0
        %519 = vmatprep.subr.bf16.mxu0 0
        %520 = vmatpush1.bf16.xpose.msra.mxu0 0
        %521 = vmatprep.subr.bf16.mxu0 0
        %522 = vmatpush1.bf16.xpose.msra.mxu0 0
        %523 = vmatprep.subr.bf16.mxu0 0
        %524 = vmatpush1.bf16.xpose.msra.mxu0 0
        %525 = vmatprep.subr.bf16.mxu0 0
        %526 = vmatpush1.bf16.xpose.msra.mxu0 0
        %527 = vmatprep.subr.bf16.mxu0 0
        %528 = vmatpush1.bf16.xpose.msra.mxu0 0
        %529 = vmatprep.subr.bf16.mxu0 0
        %530 = vmatpush1.bf16.xpose.msra.mxu0 0
        %531 = vmatprep.subr.bf16.mxu0 0
        %532 = vmatpush1.bf16.xpose.msra.mxu0 0
        %533 = vmatprep.mubr.bf16.mxu0 0
        %534 = vmatmul.mubr.bf16.gmra.mrb[0].mxu0 %v496
        %v535 = vpop.f32.mrb[0].mxu0
        %v536 = vadd.f32 0.0, %v535
        %v537 = vpop.f32.mrb[0].mxu0
        %v538 = vpop.f32.mrb[0].mxu0
        %v539 = vpop.f32.mrb[0].mxu0
        %540 = vdwg.mxu0
        %541 = vrot.lane.b32.xlu0 %v487, 96
        %v542 = vpop.permute.xlu0 %541
        %v544 = vsel %vm494, %v487, 0
        %v547 = vsel %vm494, %v542, 0
        %549 = vmatprep.subr.bf16.mxu0 0
        %550 = vmatpush1.bf16.xpose.msra.mxu0 %v547
        %551 = vmatprep.subr.bf16.mxu0 0
        %552 = vmatpush1.bf16.xpose.msra.mxu0 0
        %553 = vmatprep.subr.bf16.mxu0 0
        %554 = vmatpush1.bf16.xpose.msra.mxu0 0
        %555 = vmatprep.subr.bf16.mxu0 0
        %556 = vmatpush1.bf16.xpose.msra.mxu0 0
        %557 = vmatprep.subr.bf16.mxu0 0
        %558 = vmatpush1.bf16.xpose.msra.mxu0 0
        %559 = vmatprep.subr.bf16.mxu0 0
        %560 = vmatpush1.bf16.xpose.msra.mxu0 0
        %561 = vmatprep.subr.bf16.mxu0 0
        %562 = vmatpush1.bf16.xpose.msra.mxu0 0
        %563 = vmatprep.subr.bf16.mxu0 0
        %564 = vmatpush1.bf16.xpose.msra.mxu0 0
        %565 = vmatprep.subr.bf16.mxu0 0
        %566 = vmatpush1.bf16.xpose.msra.mxu0 0
        %567 = vmatprep.subr.bf16.mxu0 0
        %568 = vmatpush1.bf16.xpose.msra.mxu0 0
        %569 = vmatprep.subr.bf16.mxu0 0
        %570 = vmatpush1.bf16.xpose.msra.mxu0 0
        %571 = vmatprep.subr.bf16.mxu0 0
        %572 = vmatpush1.bf16.xpose.msra.mxu0 0
        %573 = vmatprep.subr.bf16.mxu0 0
        %574 = vmatpush1.bf16.xpose.msra.mxu0 0
        %575 = vmatprep.subr.bf16.mxu0 0
        %576 = vmatpush1.bf16.xpose.msra.mxu0 0
        %577 = vmatprep.subr.bf16.mxu0 0
        %578 = vmatpush1.bf16.xpose.msra.mxu0 0
        %579 = vmatprep.subr.bf16.mxu0 0
        %580 = vmatpush1.bf16.xpose.msra.mxu0 0
        %581 = vmatprep.mubr.bf16.mxu0 0
        %582 = vmatmul.mubr.bf16.gmra.mrb[0].mxu0 %v544
        %v583 = vpop.f32.mrb[0].mxu0
        %v584 = vadd.f32 0.0, %v583
        %v585 = vpop.f32.mrb[0].mxu0
        %v586 = vpop.f32.mrb[0].mxu0
        %v587 = vpop.f32.mrb[0].mxu0
        %588 = vdwg.mxu0
        %589 = vrot.lane.b32.xlu0 %v489, 96
        %v590 = vpop.permute.xlu0 %589
        %v592 = vsel %vm494, %v489, 0
        %v595 = vsel %vm494, %v590, 0
        %597 = vmatprep.subr.bf16.mxu0 0
        %598 = vmatpush1.bf16.xpose.msra.mxu0 %v595
        %599 = vmatprep.subr.bf16.mxu0 0
        %600 = vmatpush1.bf16.xpose.msra.mxu0 0
        %601 = vmatprep.subr.bf16.mxu0 0
        %602 = vmatpush1.bf16.xpose.msra.mxu0 0
        %603 = vmatprep.subr.bf16.mxu0 0
        %604 = vmatpush1.bf16.xpose.msra.mxu0 0
        %605 = vmatprep.subr.bf16.mxu0 0
        %606 = vmatpush1.bf16.xpose.msra.mxu0 0
        %607 = vmatprep.subr.bf16.mxu0 0
        %608 = vmatpush1.bf16.xpose.msra.mxu0 0
        %609 = vmatprep.subr.bf16.mxu0 0
        %610 = vmatpush1.bf16.xpose.msra.mxu0 0
        %611 = vmatprep.subr.bf16.mxu0 0
        %612 = vmatpush1.bf16.xpose.msra.mxu0 0
        %613 = vmatprep.subr.bf16.mxu0 0
        %614 = vmatpush1.bf16.xpose.msra.mxu0 0
        %615 = vmatprep.subr.bf16.mxu0 0
        %616 = vmatpush1.bf16.xpose.msra.mxu0 0
        %617 = vmatprep.subr.bf16.mxu0 0
        %618 = vmatpush1.bf16.xpose.msra.mxu0 0
        %619 = vmatprep.subr.bf16.mxu0 0
        %620 = vmatpush1.bf16.xpose.msra.mxu0 0
        %621 = vmatprep.subr.bf16.mxu0 0
        %622 = vmatpush1.bf16.xpose.msra.mxu0 0
        %623 = vmatprep.subr.bf16.mxu0 0
        %624 = vmatpush1.bf16.xpose.msra.mxu0 0
        %625 = vmatprep.subr.bf16.mxu0 0
        %626 = vmatpush1.bf16.xpose.msra.mxu0 0
        %627 = vmatprep.subr.bf16.mxu0 0
        %628 = vmatpush1.bf16.xpose.msra.mxu0 0
        %629 = vmatprep.mubr.bf16.mxu0 0
        %630 = vmatmul.mubr.bf16.gmra.mrb[0].mxu0 %v592
        %v631 = vpop.f32.mrb[0].mxu0
        %v632 = vadd.f32 0.0, %v631
        %v633 = vpop.f32.mrb[0].mxu0
        %v634 = vpop.f32.mrb[0].mxu0
        %v635 = vpop.f32.mrb[0].mxu0
        %636 = vdwg.mxu0
        %637 = vrot.lane.b32.xlu0 %v491, 96
        %v638 = vpop.permute.xlu0 %637
        %v640 = vsel %vm494, %v491, 0
        %v643 = vsel %vm494, %v638, 0
        %645 = vmatprep.subr.bf16.mxu0 0
        %646 = vmatpush1.bf16.xpose.msra.mxu0 %v643
        %647 = vmatprep.subr.bf16.mxu0 0
        %648 = vmatpush1.bf16.xpose.msra.mxu0 0
        %649 = vmatprep.subr.bf16.mxu0 0
        %650 = vmatpush1.bf16.xpose.msra.mxu0 0
        %651 = vmatprep.subr.bf16.mxu0 0
        %652 = vmatpush1.bf16.xpose.msra.mxu0 0
        %653 = vmatprep.subr.bf16.mxu0 0
        %654 = vmatpush1.bf16.xpose.msra.mxu0 0
        %655 = vmatprep.subr.bf16.mxu0 0
        %656 = vmatpush1.bf16.xpose.msra.mxu0 0
        %657 = vmatprep.subr.bf16.mxu0 0
        %658 = vmatpush1.bf16.xpose.msra.mxu0 0
        %659 = vmatprep.subr.bf16.mxu0 0
        %660 = vmatpush1.bf16.xpose.msra.mxu0 0
        %661 = vmatprep.subr.bf16.mxu0 0
        %662 = vmatpush1.bf16.xpose.msra.mxu0 0
        %663 = vmatprep.subr.bf16.mxu0 0
        %664 = vmatpush1.bf16.xpose.msra.mxu0 0
        %665 = vmatprep.subr.bf16.mxu0 0
        %666 = vmatpush1.bf16.xpose.msra.mxu0 0
        %667 = vmatprep.subr.bf16.mxu0 0
        %668 = vmatpush1.bf16.xpose.msra.mxu0 0
        %669 = vmatprep.subr.bf16.mxu0 0
        %670 = vmatpush1.bf16.xpose.msra.mxu0 0
        %671 = vmatprep.subr.bf16.mxu0 0
        %672 = vmatpush1.bf16.xpose.msra.mxu0 0
        %673 = vmatprep.subr.bf16.mxu0 0
        %674 = vmatpush1.bf16.xpose.msra.mxu0 0
        %675 = vmatprep.subr.bf16.mxu0 0
        %676 = vmatpush1.bf16.xpose.msra.mxu0 0
        %677 = vmatprep.mubr.bf16.mxu0 0
        %678 = vmatmul.mubr.bf16.gmra.mrb[0].mxu0 %v640
        %v679 = vpop.f32.mrb[0].mxu0
        %v680 = vadd.f32 0.0, %v679
        %v681 = vpop.f32.mrb[0].mxu0
        %v682 = vpop.f32.mrb[0].mxu0
        %v683 = vpop.f32.mrb[0].mxu0
        %684 = vdwg.mxu0
        %v685 = vlaneseq
        %v686 = vshrl.u32 %v685, 7
        %v687 = vlaneseq
        %v688 = vand.u32 %v687, 127
        %vm689 = vcmp.le.s32.totalorder %v688, %v686
        %v690 = vsel %vm689, 1, 0
        %vm691 = vcmp.eq.s32.totalorder %v690, 1
        %v692 = vsel %vm691, %v536, -1e+30
        %v693 = vsel %vm691, %v584, -1e+30
        %v694 = vsel %vm691, %v632, -1e+30
        %v695 = vsel %vm691, %v680, -1e+30
        %v696 = vsel %vm494, %v692, -inf
        %697 = vmax.xlane.f32.xlu0 %v696
        %v698 = vpop.xlane.xlu0 %697
        %v699 = vsel %vm494, %v693, -inf
        %700 = vmax.xlane.f32.xlu0 %v699
        %v701 = vpop.xlane.xlu0 %700
        %v702 = vsel %vm494, %v694, -inf
        %703 = vmax.xlane.f32.xlu0 %v702
        %v704 = vpop.xlane.xlu0 %703
        %v705 = vsel %vm494, %v695, -inf
        %706 = vmax.xlane.f32.xlu0 %v705
        %v707 = vpop.xlane.xlu0 %706
        %v708 = vsub.f32 %v692, %v698
        %v709 = vsub.f32 %v693, %v701
        %v710 = vsub.f32 %v694, %v704
        %v711 = vsub.f32 %v695, %v707
        %v712 = vmul.f32 %v708, 1.442695
        %v713 = vpow.pop %v712
        %v714 = vmul.f32 %v709, 1.442695
        %v715 = vpow.pop %v714
        %v716 = vmul.f32 %v710, 1.442695
        %v717 = vpow.pop %v716
        %v718 = vmul.f32 %v711, 1.442695
        %v719 = vpow.pop %v718
        %v720 = vsel %vm494, %v713, 0.0
        %721 = vadd.xlane.f32.xlu0 %v720
        %v722 = vpop.xlane.xlu0 %721
        %v723 = vsel %vm494, %v715, 0.0
        %724 = vadd.xlane.f32.xlu0 %v723
        %v725 = vpop.xlane.xlu0 %724
        %v726 = vsel %vm494, %v717, 0.0
        %727 = vadd.xlane.f32.xlu0 %v726
        %v728 = vpop.xlane.xlu0 %727
        %v729 = vsel %vm494, %v719, 0.0
        %730 = vadd.xlane.f32.xlu0 %v729
        %v731 = vpop.xlane.xlu0 %730
        %v732 = vrcp.pop %v722
        %v733 = vrcp.pop %v725
        %v734 = vrcp.pop %v728
        %v735 = vrcp.pop %v731
        %v736 = vmul.f32 %v713, %v732
        %v737 = vmul.f32 %v715, %v733
        %v738 = vmul.f32 %v717, %v734
        %v739 = vmul.f32 %v719, %v735
        %v740 = vsel %vm494, %v736, 0.0
        %v741 = vsel %vm494, %v737, 0.0
        %v742 = vadd.f32 %v740, %v741
        %v743 = vsel %vm494, %v738, 0.0
        %v744 = vadd.f32 %v742, %v743
        %v745 = vsel %vm494, %v739, 0.0
        %v746 = vadd.f32 %v744, %v745
        %v747 = vmul.f32 %v746, 0.25
        %748 = vst.msk [vmem:[%s414] sm:$0xff] %vm494, %v747
        %v749 = vpack.c.bf16 %v736, %v736
        %v750 = vpack.c.bf16 %v737, %v737
        %v751 = vpack.c.bf16 %v738, %v738
        %v752 = vpack.c.bf16 %v739, %v739
        %753 = vrot.lane.b32.xlu0 %v484, 64
        %v754 = vpop.permute.xlu0 %753
        %v756 = vsel %vm494, %v749, 0
        %vm758 = vcmask 1043456
        %v760 = vsel %vm758, %v754, 0
        %762 = vmatprep.subr.bf16.mxu0 0
        %763 = vmatpush1.bf16.msra.mxu0 %v760
        %764 = vmatprep.subr.bf16.mxu0 0
        %765 = vmatpush1.bf16.msra.mxu0 0
        %766 = vmatprep.subr.bf16.mxu0 0
        %767 = vmatpush1.bf16.msra.mxu0 0
        %768 = vmatprep.subr.bf16.mxu0 0
        %769 = vmatpush1.bf16.msra.mxu0 0
        %770 = vmatprep.subr.bf16.mxu0 0
        %771 = vmatpush1.bf16.msra.mxu0 0
        %772 = vmatprep.subr.bf16.mxu0 0
        %773 = vmatpush1.bf16.msra.mxu0 0
        %774 = vmatprep.subr.bf16.mxu0 0
        %775 = vmatpush1.bf16.msra.mxu0 0
        %776 = vmatprep.subr.bf16.mxu0 0
        %777 = vmatpush1.bf16.msra.mxu0 0
        %778 = vmatprep.subr.bf16.mxu0 0
        %779 = vmatpush1.bf16.msra.mxu0 0
        %780 = vmatprep.subr.bf16.mxu0 0
        %781 = vmatpush1.bf16.msra.mxu0 0
        %782 = vmatprep.subr.bf16.mxu0 0
        %783 = vmatpush1.bf16.msra.mxu0 0
        %784 = vmatprep.subr.bf16.mxu0 0
        %785 = vmatpush1.bf16.msra.mxu0 0
        %786 = vmatprep.subr.bf16.mxu0 0
        %787 = vmatpush1.bf16.msra.mxu0 0
        %788 = vmatprep.subr.bf16.mxu0 0
        %789 = vmatpush1.bf16.msra.mxu0 0
        %790 = vmatprep.subr.bf16.mxu0 0
        %791 = vmatpush1.bf16.msra.mxu0 0
        %792 = vmatprep.subr.bf16.mxu0 0
        %793 = vmatpush1.bf16.msra.mxu0 0
        %794 = vmatprep.mubr.bf16.mxu0 0
        %795 = vmatmul.mubr.bf16.gmra.mrb[0].mxu0 %v756
        %v796 = vpop.f32.mrb[0].mxu0
        %v797 = vadd.f32 0.0, %v796
        %v798 = vpop.f32.mrb[0].mxu0
        %v799 = vpop.f32.mrb[0].mxu0
        %v800 = vpop.f32.mrb[0].mxu0
        %801 = vdwg.mxu0
        %802 = vrot.lane.b32.xlu0 %v487, 64
        %v803 = vpop.permute.xlu0 %802
        %v805 = vsel %vm494, %v750, 0
        %v808 = vsel %vm758, %v803, 0
        %810 = vmatprep.subr.bf16.mxu0 0
        %811 = vmatpush1.bf16.msra.mxu0 %v808
        %812 = vmatprep.subr.bf16.mxu0 0
        %813 = vmatpush1.bf16.msra.mxu0 0
        %814 = vmatprep.subr.bf16.mxu0 0
        %815 = vmatpush1.bf16.msra.mxu0 0
        %816 = vmatprep.subr.bf16.mxu0 0
        %817 = vmatpush1.bf16.msra.mxu0 0
        %818 = vmatprep.subr.bf16.mxu0 0
        %819 = vmatpush1.bf16.msra.mxu0 0
        %820 = vmatprep.subr.bf16.mxu0 0
        %821 = vmatpush1.bf16.msra.mxu0 0
        %822 = vmatprep.subr.bf16.mxu0 0
        %823 = vmatpush1.bf16.msra.mxu0 0
        %824 = vmatprep.subr.bf16.mxu0 0
        %825 = vmatpush1.bf16.msra.mxu0 0
        %826 = vmatprep.subr.bf16.mxu0 0
        %827 = vmatpush1.bf16.msra.mxu0 0
        %828 = vmatprep.subr.bf16.mxu0 0
        %829 = vmatpush1.bf16.msra.mxu0 0
        %830 = vmatprep.subr.bf16.mxu0 0
        %831 = vmatpush1.bf16.msra.mxu0 0
        %832 = vmatprep.subr.bf16.mxu0 0
        %833 = vmatpush1.bf16.msra.mxu0 0
        %834 = vmatprep.subr.bf16.mxu0 0
        %835 = vmatpush1.bf16.msra.mxu0 0
        %836 = vmatprep.subr.bf16.mxu0 0
        %837 = vmatpush1.bf16.msra.mxu0 0
        %838 = vmatprep.subr.bf16.mxu0 0
        %839 = vmatpush1.bf16.msra.mxu0 0
        %840 = vmatprep.subr.bf16.mxu0 0
        %841 = vmatpush1.bf16.msra.mxu0 0
        %842 = vmatprep.mubr.bf16.mxu0 0
        %843 = vmatmul.mubr.bf16.gmra.mrb[0].mxu0 %v805
        %v844 = vpop.f32.mrb[0].mxu0
        %v845 = vadd.f32 0.0, %v844
        %v846 = vpop.f32.mrb[0].mxu0
        %v847 = vpop.f32.mrb[0].mxu0
        %v848 = vpop.f32.mrb[0].mxu0
        %849 = vdwg.mxu0
        %850 = vrot.lane.b32.xlu0 %v489, 64
        %v851 = vpop.permute.xlu0 %850
        %v853 = vsel %vm494, %v751, 0
        %v856 = vsel %vm758, %v851, 0
        %858 = vmatprep.subr.bf16.mxu0 0
        %859 = vmatpush1.bf16.msra.mxu0 %v856
        %860 = vmatprep.subr.bf16.mxu0 0
        %861 = vmatpush1.bf16.msra.mxu0 0
        %862 = vmatprep.subr.bf16.mxu0 0
        %863 = vmatpush1.bf16.msra.mxu0 0
        %864 = vmatprep.subr.bf16.mxu0 0
        %865 = vmatpush1.bf16.msra.mxu0 0
        %866 = vmatprep.subr.bf16.mxu0 0
        %867 = vmatpush1.bf16.msra.mxu0 0
        %868 = vmatprep.subr.bf16.mxu0 0
        %869 = vmatpush1.bf16.msra.mxu0 0
        %870 = vmatprep.subr.bf16.mxu0 0
        %871 = vmatpush1.bf16.msra.mxu0 0
        %872 = vmatprep.subr.bf16.mxu0 0
        %873 = vmatpush1.bf16.msra.mxu0 0
        %874 = vmatprep.subr.bf16.mxu0 0
        %875 = vmatpush1.bf16.msra.mxu0 0
        %876 = vmatprep.subr.bf16.mxu0 0
        %877 = vmatpush1.bf16.msra.mxu0 0
        %878 = vmatprep.subr.bf16.mxu0 0
        %879 = vmatpush1.bf16.msra.mxu0 0
        %880 = vmatprep.subr.bf16.mxu0 0
        %881 = vmatpush1.bf16.msra.mxu0 0
        %882 = vmatprep.subr.bf16.mxu0 0
        %883 = vmatpush1.bf16.msra.mxu0 0
        %884 = vmatprep.subr.bf16.mxu0 0
        %885 = vmatpush1.bf16.msra.mxu0 0
        %886 = vmatprep.subr.bf16.mxu0 0
        %887 = vmatpush1.bf16.msra.mxu0 0
        %888 = vmatprep.subr.bf16.mxu0 0
        %889 = vmatpush1.bf16.msra.mxu0 0
        %890 = vmatprep.mubr.bf16.mxu0 0
        %891 = vmatmul.mubr.bf16.gmra.mrb[0].mxu0 %v853
        %v892 = vpop.f32.mrb[0].mxu0
        %v893 = vadd.f32 0.0, %v892
        %v894 = vpop.f32.mrb[0].mxu0
        %v895 = vpop.f32.mrb[0].mxu0
        %v896 = vpop.f32.mrb[0].mxu0
        %897 = vdwg.mxu0
        %898 = vrot.lane.b32.xlu0 %v491, 64
        %v899 = vpop.permute.xlu0 %898
        %v901 = vsel %vm494, %v752, 0
        %v904 = vsel %vm758, %v899, 0
        %906 = vmatprep.subr.bf16.mxu0 0
        %907 = vmatpush1.bf16.msra.mxu0 %v904
        %908 = vmatprep.subr.bf16.mxu0 0
        %909 = vmatpush1.bf16.msra.mxu0 0
        %910 = vmatprep.subr.bf16.mxu0 0
        %911 = vmatpush1.bf16.msra.mxu0 0
        %912 = vmatprep.subr.bf16.mxu0 0
        %913 = vmatpush1.bf16.msra.mxu0 0
        %914 = vmatprep.subr.bf16.mxu0 0
        %915 = vmatpush1.bf16.msra.mxu0 0
        %916 = vmatprep.subr.bf16.mxu0 0
        %917 = vmatpush1.bf16.msra.mxu0 0
        %918 = vmatprep.subr.bf16.mxu0 0
        %919 = vmatpush1.bf16.msra.mxu0 0
        %920 = vmatprep.subr.bf16.mxu0 0
        %921 = vmatpush1.bf16.msra.mxu0 0
        %922 = vmatprep.subr.bf16.mxu0 0
        %923 = vmatpush1.bf16.msra.mxu0 0
        %924 = vmatprep.subr.bf16.mxu0 0
        %925 = vmatpush1.bf16.msra.mxu0 0
        %926 = vmatprep.subr.bf16.mxu0 0
        %927 = vmatpush1.bf16.msra.mxu0 0
        %928 = vmatprep.subr.bf16.mxu0 0
        %929 = vmatpush1.bf16.msra.mxu0 0
        %930 = vmatprep.subr.bf16.mxu0 0
        %931 = vmatpush1.bf16.msra.mxu0 0
        %932 = vmatprep.subr.bf16.mxu0 0
        %933 = vmatpush1.bf16.msra.mxu0 0
        %934 = vmatprep.subr.bf16.mxu0 0
        %935 = vmatpush1.bf16.msra.mxu0 0
        %936 = vmatprep.subr.bf16.mxu0 0
        %937 = vmatpush1.bf16.msra.mxu0 0
        %938 = vmatprep.mubr.bf16.mxu0 0
        %939 = vmatmul.mubr.bf16.gmra.mrb[0].mxu0 %v901
        %v940 = vpop.f32.mrb[0].mxu0
        %v941 = vadd.f32 0.0, %v940
        %v942 = vpop.f32.mrb[0].mxu0
        %v943 = vpop.f32.mrb[0].mxu0
        %v944 = vpop.f32.mrb[0].mxu0
        %945 = vdwg.mxu0
        %947 = vrot.lane.b32.xlu0 %v845, 8
        %v948 = vpop.permute.xlu0 %947
        %951 = vrot.lane.b32.xlu0 %v893, 16
        %v952 = vpop.permute.xlu0 %951
        %955 = vrot.lane.b32.xlu0 %v941, 24
        %v956 = vpop.permute.xlu0 %955
        %v958 = vsel %vm494, %v797, %v948
        %vm959 = vcmask 130048
        %v960 = vsel %vm959, %v958, %v952
        %vm961 = vcmask 195584
        %v962 = vsel %vm961, %v960, %v956
        %v963 = vpack.c.bf16 %v962, %v962
        %v964 = vld [vmem:[#allocation8] sm:$0xf]
        %v965 = vld [vmem:[#allocation8 + $0x4] sm:$0xf]
        %v966 = vld [vmem:[#allocation8 + $0x8] sm:$0xf]
        %v967 = vld [vmem:[#allocation8 + $0xc] sm:$0xf]
        %v968 = vld [vmem:[#allocation10] sm:$0x1]
        %v970 = vlaneseq
        %v971 = vshrl.u32 %v970, 7
        %v972 = vsub.s32 0, %v971
        %v973 = vrot.slane %v968, %v972
        %v979 = vunpack.c.l.b16 %v964
        %v980 = vunpack.c.l.b16 %v965
        %v981 = vunpack.c.l.b16 %v966
        %v982 = vunpack.c.l.b16 %v967
        %v983 = vpack.c.b16 %v980, %v979
        %v984 = vpack.c.b16 %v982, %v981
        %v988 = vsel %vm440, %v963, 0
        %990 = vmatprep.subr.bf16.mxu0 0
        %991 = vmatpush1.bf16.msra.mxu0 %v983
        %992 = vmatprep.subr.bf16.mxu0 0
        %993 = vmatpush1.bf16.msra.mxu0 %v984
        %994 = vmatprep.subr.bf16.mxu0 0
        %995 = vmatpush1.bf16.msra.mxu0 0
        %996 = vmatprep.subr.bf16.mxu0 0
        %997 = vmatpush1.bf16.msra.mxu0 0
        %998 = vmatprep.subr.bf16.mxu0 0
        %999 = vmatpush1.bf16.msra.mxu0 0
        %1000 = vmatprep.subr.bf16.mxu0 0
        %1001 = vmatpush1.bf16.msra.mxu0 0
        %1002 = vmatprep.subr.bf16.mxu0 0
        %1003 = vmatpush1.bf16.msra.mxu0 0
        %1004 = vmatprep.subr.bf16.mxu0 0
        %1005 = vmatpush1.bf16.msra.mxu0 0
        %1006 = vmatprep.subr.bf16.mxu0 0
        %1007 = vmatpush1.bf16.msra.mxu0 0
        %1008 = vmatprep.subr.bf16.mxu0 0
        %1009 = vmatpush1.bf16.msra.mxu0 0
        %1010 = vmatprep.subr.bf16.mxu0 0
        %1011 = vmatpush1.bf16.msra.mxu0 0
        %1012 = vmatprep.subr.bf16.mxu0 0
        %1013 = vmatpush1.bf16.msra.mxu0 0
        %1014 = vmatprep.subr.bf16.mxu0 0
        %1015 = vmatpush1.bf16.msra.mxu0 0
        %1016 = vmatprep.subr.bf16.mxu0 0
        %1017 = vmatpush1.bf16.msra.mxu0 0
        %1018 = vmatprep.subr.bf16.mxu0 0
        %1019 = vmatpush1.bf16.msra.mxu0 0
        %1020 = vmatprep.subr.bf16.mxu0 0
        %1021 = vmatpush1.bf16.msra.mxu0 0
        %1022 = vmatprep.mubr.bf16.mxu0 0
        %1023 = vmatmul.mubr.bf16.gmra.mrb[0].mxu0 %v988
        %v1024 = vpop.f32.mrb[0].mxu0
        %v1025 = vadd.f32 %v973, %v1024
        %v1026 = vpop.f32.mrb[0].mxu0
        %v1027 = vpop.f32.mrb[0].mxu0
        %v1028 = vpop.f32.mrb[0].mxu0
        %1029 = vdwg.mxu0
        %v1030 = vpack.c.bf16 %v1025, %v1025
        %v1031 = vld [vmem:[#allocation11] sm:$0xf]
        %v1032 = vld [vmem:[#allocation11 + $0x4] sm:$0xf]
        %v1033 = vld [vmem:[#allocation11 + $0x8] sm:$0xf]
        %v1034 = vld [vmem:[#allocation11 + $0xc] sm:$0xf]
        %v1039 = vunpack.c.l.b16 %v1031
        %v1040 = vunpack.c.l.b16 %v1032
        %v1041 = vunpack.c.l.b16 %v1033
        %v1042 = vunpack.c.l.b16 %v1034
        %v1043 = vpack.c.b16 %v1040, %v1039
        %v1044 = vpack.c.b16 %v1042, %v1041
        %v1048 = vsel %vm440, %v1030, 0
        %1050 = vmatprep.subr.bf16.mxu0 0
        %1051 = vmatpush1.bf16.msra.mxu0 %v1043
        %1052 = vmatprep.subr.bf16.mxu0 0
        %1053 = vmatpush1.bf16.msra.mxu0 %v1044
        %1054 = vmatprep.subr.bf16.mxu0 0
        %1055 = vmatpush1.bf16.msra.mxu0 0
        %1056 = vmatprep.subr.bf16.mxu0 0
        %1057 = vmatpush1.bf16.msra.mxu0 0
        %1058 = vmatprep.subr.bf16.mxu0 0
        %1059 = vmatpush1.bf16.msra.mxu0 0
        %1060 = vmatprep.subr.bf16.mxu0 0
        %1061 = vmatpush1.bf16.msra.mxu0 0
        %1062 = vmatprep.subr.bf16.mxu0 0
        %1063 = vmatpush1.bf16.msra.mxu0 0
        %1064 = vmatprep.subr.bf16.mxu0 0
        %1065 = vmatpush1.bf16.msra.mxu0 0
        %1066 = vmatprep.subr.bf16.mxu0 0
        %1067 = vmatpush1.bf16.msra.mxu0 0
        %1068 = vmatprep.subr.bf16.mxu0 0
        %1069 = vmatpush1.bf16.msra.mxu0 0
        %1070 = vmatprep.subr.bf16.mxu0 0
        %1071 = vmatpush1.bf16.msra.mxu0 0
        %1072 = vmatprep.subr.bf16.mxu0 0
        %1073 = vmatpush1.bf16.msra.mxu0 0
        %1074 = vmatprep.subr.bf16.mxu0 0
        %1075 = vmatpush1.bf16.msra.mxu0 0
        %1076 = vmatprep.subr.bf16.mxu0 0
        %1077 = vmatpush1.bf16.msra.mxu0 0
        %1078 = vmatprep.subr.bf16.mxu0 0
        %1079 = vmatpush1.bf16.msra.mxu0 0
        %1080 = vmatprep.subr.bf16.mxu0 0
        %1081 = vmatpush1.bf16.msra.mxu0 0
        %1082 = vmatprep.mubr.bf16.mxu0 0
        %1083 = vmatmul.mubr.bf16.gmra.mrb[0].mxu0 %v1048
        %v1084 = vpop.f32.mrb[0].mxu0
        %v1085 = vadd.f32 0.0, %v1084
        %v1086 = vpop.f32.mrb[0].mxu0
        %v1087 = vpop.f32.mrb[0].mxu0
        %v1088 = vpop.f32.mrb[0].mxu0
        %1089 = vdwg.mxu0
        %v1090 = vmax.f32 %v1085, 0.0
        %v1091 = vpack.c.bf16 %v1090, %v1090
        %v1092 = vld [vmem:[#allocation13] sm:$0xf]
        %v1093 = vld [vmem:[#allocation13 + $0x4] sm:$0xf]
        %v1094 = vld [vmem:[#allocation13 + $0x8] sm:$0xf]
        %v1095 = vld [vmem:[#allocation13 + $0xc] sm:$0xf]
        %v1096 = vld [vmem:[#allocation13 + $0x10] sm:$0xf]
        %v1097 = vld [vmem:[#allocation13 + $0x14] sm:$0xf]
        %v1098 = vld [vmem:[#allocation13 + $0x18] sm:$0xf]
        %v1099 = vld [vmem:[#allocation13 + $0x1c] sm:$0xf]
        %v1108 = vunpack.c.l.b16 %v1092
        %v1109 = vunpack.c.l.b16 %v1093
        %v1110 = vunpack.c.l.b16 %v1094
        %v1111 = vunpack.c.l.b16 %v1095
        %v1112 = vunpack.c.l.b16 %v1096
        %v1113 = vunpack.c.l.b16 %v1097
        %v1114 = vunpack.c.l.b16 %v1098
        %v1115 = vunpack.c.l.b16 %v1099
        %v1116 = vpack.c.b16 %v1109, %v1108
        %v1117 = vpack.c.b16 %v1111, %v1110
        %v1118 = vpack.c.b16 %v1113, %v1112
        %v1119 = vpack.c.b16 %v1115, %v1114
        %vm1124 = vcmask 523264
        %v1126 = vsel %vm1124, %v1091, 0
        %1128 = vmatprep.subr.bf16.mxu0 0
        %1129 = vmatpush1.bf16.msra.mxu0 %v1116
        %1130 = vmatprep.subr.bf16.mxu0 0
        %1131 = vmatpush1.bf16.msra.mxu0 %v1117
        %1132 = vmatprep.subr.bf16.mxu0 0
        %1133 = vmatpush1.bf16.msra.mxu0 %v1118
        %1134 = vmatprep.subr.bf16.mxu0 0
        %1135 = vmatpush1.bf16.msra.mxu0 %v1119
        %1136 = vmatprep.subr.bf16.mxu0 0
        %1137 = vmatpush1.bf16.msra.mxu0 0
        %1138 = vmatprep.subr.bf16.mxu0 0
        %1139 = vmatpush1.bf16.msra.mxu0 0
        %1140 = vmatprep.subr.bf16.mxu0 0
        %1141 = vmatpush1.bf16.msra.mxu0 0
        %1142 = vmatprep.subr.bf16.mxu0 0
        %1143 = vmatpush1.bf16.msra.mxu0 0
        %1144 = vmatprep.subr.bf16.mxu0 0
        %1145 = vmatpush1.bf16.msra.mxu0 0
        %1146 = vmatprep.subr.bf16.mxu0 0
        %1147 = vmatpush1.bf16.msra.mxu0 0
        %1148 = vmatprep.subr.bf16.mxu0 0
        %1149 = vmatpush1.bf16.msra.mxu0 0
        %1150 = vmatprep.subr.bf16.mxu0 0
        %1151 = vmatpush1.bf16.msra.mxu0 0
        %1152 = vmatprep.subr.bf16.mxu0 0
        %1153 = vmatpush1.bf16.msra.mxu0 0
        %1154 = vmatprep.subr.bf16.mxu0 0
        %1155 = vmatpush1.bf16.msra.mxu0 0
        %1156 = vmatprep.subr.bf16.mxu0 0
        %1157 = vmatpush1.bf16.msra.mxu0 0
        %1158 = vmatprep.subr.bf16.mxu0 0
        %1159 = vmatpush1.bf16.msra.mxu0 0
        %1160 = vmatprep.mubr.bf16.mxu0 0
        %1161 = vmatmul.mubr.bf16.gmra.mrb[0].mxu0 %v1126
        %v1162 = vpop.f32.mrb[0].mxu0
        %v1163 = vadd.f32 %v1025, %v1162
        %v1164 = vpop.f32.mrb[0].mxu0
        %v1165 = vpop.f32.mrb[0].mxu0
        %v1166 = vpop.f32.mrb[0].mxu0
        %1167 = vdwg.mxu0
        %v1168 = vsel %vm440, %v1163, 0.0
        %1169 = vadd.xlane.f32.xlu0 %v1168
        %v1170 = vpop.xlane.xlu0 %1169
        %v1171 = vrcp.pop 32.0
        %v1172 = vmul.f32 %v1170, %v1171
        %v1173 = vsub.f32 %v1163, %v1172
        %v1174 = vmul.f32 %v1173, %v1173
        %v1175 = vsel %vm440, %v1174, 0.0
        %1176 = vadd.xlane.f32.xlu0 %v1175
        %v1177 = vpop.xlane.xlu0 %1176
        %v1178 = vmul.f32 %v1177, %v1171
        %v1179 = vadd.f32 %v1178, 1e-05
        %v1180 = vrsqrt.pop %v1179
        %v1181 = vmul.f32 %v1173, %v1180
        %v1182 = vpack.c.bf16 %v1181, %v1181
        %vm1183 = vcmask 257024
        %1184 = vst.msk [vmem:[%s407] sm:$0xf] %vm1183, %v1182
        %s1185 = sand.u32 %s192, 1
        %s1186 = scalar_lea.sflag [#allocation4], %s1185
        %s1187 = sand.u32 %s192, 1
        %s1188 = smul.addr %s1187, 4
        %s1189 = scalar_lea.vmem [#allocation14], %s1188
        %s1190 = sand.u32 %s218, 1
        %s1191 = scalar_lea.sflag [#allocation16], %s1190
        %s1192 = sand.u32 %s218, 1
        %s1193 = smul.addr %s1192, 8
        %s1194 = scalar_lea.vmem [#allocation15], %s1193
        // Predicated region
        $region77: #{transformer_forward.4} parent=47 // pred_check
          %p1195 = pneg %p202
        $region78: #{transformer_forward.4} parent=47 // pred_check_branch
          %1197 = sbr.rel (%p1195) target = $region80
        $region79: #{transformer_forward.4} parent=47 // pred_region
          %s1199 = ssub.s32 64, 64
          %1200 = vsyncadd %s1186, %s1199
          %s1201 = smul.addr %s32, 64
          %s1202 = scalar_lea.hbm %s7, %s1201
          %s1204 = sshll.u32 %s1189, 4
          %s1205 = int_to_ptr.vmem [resolvable:$true] %s1204
          %1207 = dma.vmem_to_hbm [thread:$0]  %s1205, 64, %s1202, %s1186
        $region80: #{transformer_forward.4} parent=47 // pred_fallthru
          _
        // Predicated region
        $region81: #{transformer_forward.4} parent=47 // pred_check
          %p1208 = pneg %p228
        $region82: #{transformer_forward.4} parent=47 // pred_check_branch
          %1210 = sbr.rel (%p1208) target = $region84
        $region83: #{transformer_forward.4} parent=47 // pred_region
          %s1212 = ssub.s32 128, 128
          %1213 = vsyncadd %s1191, %s1212
          %s1214 = smul.addr %s32, 128
          %s1215 = scalar_lea.hbm %s8, %s1214
          %s1217 = sshll.u32 %s1194, 4
          %s1218 = int_to_ptr.vmem [resolvable:$true] %s1217
          %1220 = dma.vmem_to_hbm [thread:$0]  %s1218, 128, %s1215, %s1191
        $region84: #{transformer_forward.4} parent=47 // pred_fallthru
          _
      $region48: #{transformer_forward.4} parent=5 // pred_fallthru
        _
      %p1221 = scmp.le.s32.totalorder 2, %s27
      // Predicated region
      $region85: #{transformer_forward.4} parent=5 // pred_check
        %p1222 = pneg %p1221
      $region86: #{transformer_forward.4} parent=5 // pred_check_branch
        %1224 = sbr.rel (%p1222) target = $region88
      $region87: #{transformer_forward.4} parent=5 // pred_region
        %s1225 = ssub.s32 %s27, 2
        // Predicated region
        $region89: #{transformer_forward.4} parent=87 // pred_check
          %p1226 = pneg %p208
        $region90: #{transformer_forward.4} parent=87 // pred_check_branch
          %1228 = sbr.rel (%p1226) target = $region92
        $region91: #{transformer_forward.4} parent=87 // pred_region
          %s1229 = sand.u32 %s193, 1
          %s1230 = scalar_lea.sflag [#allocation4], %s1229
          %s1231 = sand.u32 %s193, 1
          %s1232 = smul.addr %s1231, 4
          %s1233 = scalar_lea.vmem [#allocation14], %s1232
          %1234 = dma.done %s1230, 64
        $region92: #{transformer_forward.4} parent=87 // pred_fallthru
          _
        // Predicated region
        $region93: #{transformer_forward.4} parent=87 // pred_check
          %p1235 = pneg %p234
        $region94: #{transformer_forward.4} parent=87 // pred_check_branch
          %1237 = sbr.rel (%p1235) target = $region96
        $region95: #{transformer_forward.4} parent=87 // pred_region
          %s1238 = sand.u32 %s219, 1
          %s1239 = scalar_lea.sflag [#allocation16], %s1238
          %s1240 = sand.u32 %s219, 1
          %s1241 = smul.addr %s1240, 8
          %s1242 = scalar_lea.vmem [#allocation15], %s1241
          %1243 = dma.done %s1239, 128
        $region96: #{transformer_forward.4} parent=87 // pred_fallthru
          _
      $region88: #{transformer_forward.4} parent=5 // pred_fallthru
        _
    $region6: #{transformer_forward.4} parent=1 // loop_footer
      %s31 = sadd.s32 1, %s27
    $region7: #{transformer_forward.4} parent=1 // loop_footer_branch
      %26 = sbr.rel target = $region3
    $region8: #{transformer_forward.4} parent=1 // loop_exit
      _
    %1244 = vsyncpa [#allocation3], 1
    %s1245 = scalar_lea.sflag [#allocation3], 1
    %1246 = vsyncpa %s1245, 1
    %1247 = vsyncpa [#allocation6], 1
    %1248 = vsyncpa [#allocation9], 1
    %1249 = vsyncpa [#allocation12], 1
    %1250 = vsyncpa [#allocation4], 1
    %s1251 = scalar_lea.sflag [#allocation4], 1
    %1252 = vsyncpa %s1251, 1
    %1253 = vsyncpa [#allocation16], 1
    %s1254 = scalar_lea.sflag [#allocation16], 1
    %1255 = vsyncpa %s1254, 1

</llo_original>
